<compile_context>
chip_gen: v6e
topology: v6e:2x2x1
jax: 0.10.0
libtpu: 0.0.40
codegen_flags: <defaults>
</compile_context>

<pallas_src>
import functools
import math

import jax
import jax.numpy as jnp
from jax.experimental import pallas as pl
from jax.experimental.pallas import tpu as pltpu


def _round_up(x, m):
    return (x + m - 1) // m * m


def _padded_block_bytes(shape, dtype):
    """VMEM footprint of one block, accounting for (sublane, lane) tile padding."""
    itemsize = jnp.dtype(dtype).itemsize
    sublane = {4: 8, 2: 16, 1: 32}.get(itemsize, 8)
    dims = list(shape)
    dims[-1] = _round_up(dims[-1], 128)
    if len(dims) >= 2:
        dims[-2] = _round_up(dims[-2], sublane)
    total = 1
    for d in dims:
        total *= d
    return total * itemsize


def _vmem_estimate(tile_p, A, n_nbr, Cin, Cout, K, feat_dtype):
    """Tile-padded VMEM footprint (double-buffered pipelined blocks + scratch)."""
    est = 0
    est += 2 * _padded_block_bytes((3, n_nbr, tile_p), jnp.float32)        # coords
    est += 2 * _padded_block_bytes((A, n_nbr, Cin, tile_p), feat_dtype)    # features
    est += 2 * _padded_block_bytes((1, Cout, A * tile_p), jnp.float32)     # output
    est += 2 * _padded_block_bytes((Cout, K * Cin), jnp.float32)           # weights
    est += _padded_block_bytes((K * Cin, A * tile_p), jnp.float32)         # wf scratch
    return est


def _choose_tile_p(P, A, n_nbr, Cin, Cout, K, feat_dtype):
    """Generation-aware P-tile size + vmem limit (v7x: 64 MiB VMEM, v5e/v6e: 128 MiB)."""
    vmem_cap = 128 << 20
    try:
        info = pltpu.get_tpu_info()
        cap = getattr(info, "vmem_capacity_bytes", None)
        if cap:
            vmem_cap = int(cap)
    except Exception:
        pass

    budget = int(vmem_cap * 0.6)
    tile = 128
    for cand in (1024, 512, 256, 128):
        if _vmem_estimate(cand, A, n_nbr, Cin, Cout, K, feat_dtype) <= budget:
            tile = cand
            break
    # Keep >=2 P tiles when the point cloud allows it, so the "parallel" axis can span
    # both TensorCores on v7x (and megacore on v5e/v6e).
    while tile > 128 and -(-P // tile) < 2:
        tile //= 2

    est = _vmem_estimate(tile, A, n_nbr, Cin, Cout, K, feat_dtype)
    vmem_limit = int(min(max(est * 5 // 4, 32 << 20), int(vmem_cap * 0.85)))
    return tile, vmem_limit


def _kpconv_kernel(rk_ref, nbrs_ref, nx_ref, w2_ref, out_ref, wf_ref, *,
                   inv_extent, kanchor, num_k, cin, tile_p):
    """Grid = (num_p_tiles,).  All K kernel points handled in one kernel invocation.

    rk_ref   : (K, A*3)              f32, SMEM   rotated kernel points (scalar reads)
    nbrs_ref : (3, n, TILE_P)        f32, VMEM   neighbor coords centered on query pts
    nx_ref   : (A, n, Cin, TILE_P)   f32/bf16    gathered neighbor features
    w2_ref   : (Cout, K*Cin)         f32, VMEM   weights, transposed+flattened (resident)
    out_ref  : (1, Cout, A*TILE_P)   f32         output tile (lane-dense)
    wf_ref   : (K*Cin, A*TILE_P)     f32, VMEM   scratch: weighted-feature matmul operand
    """
    nbr_x = nbrs_ref[0]                       # (n, TILE_P)  lane-dense
    nbr_y = nbrs_ref[1]
    nbr_z = nbrs_ref[2]

    # Anchors outer (feature block loaded once per anchor, reused across K), kernel
    # points inner.  Each (Cin, TILE_P) block is written straight into the wf scratch:
    # no concatenate, bounded live ranges even for kanchor = 12 / 60.
    for a in range(kanchor):
        nx_a = nx_ref[a]                      # (n, Cin, TILE_P)
        col = a * tile_p
        for k in range(num_k):
            rkx = rk_ref[k, 3 * a + 0]        # scalar reads from SMEM
            rky = rk_ref[k, 3 * a + 1]
            rkz = rk_ref[k, 3 * a + 2]
            dx = nbr_x - rkx
            dy = nbr_y - rky
            dz = nbr_z - rkz
            sq = dx * dx + dy * dy + dz * dz
            # linear KP influence: clamp(1 - dist / KP_extent, 0)
            wgt = jnp.maximum(1.0 - jnp.sqrt(sq) * inv_extent, 0.0)    # (n, TILE_P) f32
            # Leading-axis reduction over neighbors: pure VPU adds, f32 accumulation
            # (bf16 features are promoted by the multiply).
            wf_blk = jnp.sum(nx_a * wgt[:, None, :], axis=0)           # (Cin, TILE_P)
            wf_ref[k * cin:(k + 1) * cin, col:col + tile_p] = wf_blk

    # Single MXU matmul per P tile: (Cout, K*Cin) @ (K*Cin, A*TILE_P).
    out = jnp.dot(w2_ref[...], wf_ref[...], preferred_element_type=jnp.float32)
    out_ref[0] = out.astype(out_ref.dtype)    # unmasked, lane-dense store


def kpconv_inter_so3_forward(q_pts, s_pts, neighb_inds, x, kernel_points,
                             anchors, weights, KP_extent,
                             feature_dtype=jnp.float32):
    P, n_nbr = neighb_inds.shape
    A = anchors.shape[0]
    K, Cin, Cout = weights.shape

    TP, vmem_limit = _choose_tile_p(P, A, n_nbr, Cin, Cout, K, feature_dtype)
    P_pad = _round_up(P, TP)
    num_p_tiles = P_pad // TP

    # ---- JAX glue: padding + data-dependent gather stays outside the kernel ----
    # TODO(synk): move the n-duplicated neighbor gather in-kernel (scalar-prefetched
    # neighb_inds + double-buffered pltpu.make_async_copy from HBM-resident x) to cut
    # HBM passes over the dominant gathered tensor from ~3 to ~1.
    s_pts_pad = jnp.concatenate([s_pts, jnp.full((1, 3), 1e6, s_pts.dtype)], axis=0)
    x_pad = jnp.concatenate([x, jnp.zeros((1, A, Cin), x.dtype)], axis=0)

    neighbors = s_pts_pad[neighb_inds] - q_pts[:, None, :]           # (P, n, 3)
    neighbors = jnp.transpose(neighbors, (2, 1, 0))                  # (3, n, P)
    neighb_x = jnp.transpose(x_pad[neighb_inds], (2, 1, 3, 0))       # (A, n, Cin, P)
    neighb_x = neighb_x.astype(feature_dtype)

    if P_pad != P:
        # Padded P columns: coords are 0 (weight may be nonzero) but features are 0,
        # so their contribution is exactly 0; the rows are sliced off below.
        neighbors = jnp.pad(neighbors, ((0, 0), (0, 0), (0, P_pad - P)))
        neighb_x = jnp.pad(neighb_x, ((0, 0), (0, 0), (0, 0), (0, P_pad - P)))

    # rotated_kernels[k, a, i] = sum_j anchors[a, i, j] * kernel_points[k, j]
    rotated_kernels = jnp.einsum('aij,kj->kai', anchors, kernel_points)   # (K, A, 3)
    rk_flat = rotated_kernels.reshape(K, A * 3).astype(jnp.float32)

    # weights (K, Cin, Cout) -> (Cout, K*Cin): contraction over K*Cin in one matmul.
    w2 = jnp.transpose(weights, (2, 0, 1)).reshape(Cout, K * Cin).astype(jnp.float32)

    out_t = pl.pallas_call(
        functools.partial(_kpconv_kernel, inv_extent=1.0 / KP_extent,
                          kanchor=A, num_k=K, cin=Cin, tile_p=TP),
        out_shape=jax.ShapeDtypeStruct((num_p_tiles, Cout, A * TP), jnp.float32),
        grid_spec=pltpu.PrefetchScalarGridSpec(
            num_scalar_prefetch=0,
            grid=(num_p_tiles,),
            in_specs=[
                # rotated kernel points: whole table in SMEM, scalar-indexed per (k, a)
                pl.BlockSpec(memory_space=pltpu.MemorySpace.SMEM),
                # neighbor coords: P tiled on lanes
                pl.BlockSpec((3, n_nbr, TP), lambda ip: (0, 0, ip)),
                # gathered features: P tiled on lanes, Cin on sublanes
                pl.BlockSpec((A, n_nbr, Cin, TP), lambda ip: (0, 0, 0, ip)),
                # weights: constant index -> loaded once, resident in VMEM
                # (TODO(synk): pipeline_mode=pl.Buffered(1) to drop its double buffer
                #  on v7x once buffer_count=1 is verified on the target toolchain.)
                pl.BlockSpec((Cout, K * Cin), lambda ip: (0, 0)),
            ],
            out_specs=pl.BlockSpec((1, Cout, A * TP), lambda ip: (ip, 0, 0)),
            scratch_shapes=[pltpu.VMEM((K * Cin, A * TP), jnp.float32)],
        ),
        compiler_params=pltpu.CompilerParams(
            dimension_semantics=("parallel",),
            vmem_limit_bytes=vmem_limit),
    )(rk_flat, neighbors, neighb_x, w2)

    # (T, Cout, A*TP) -> (T, Cout, A, TP) -> (T, TP, A, Cout) -> (P, A, Cout)
    out = out_t.reshape(num_p_tiles, Cout, A, TP)
    out = jnp.transpose(out, (0, 3, 2, 1)).reshape(num_p_tiles * TP, A, Cout)
    return out[:P]


def reference_forward(q_pts, s_pts, neighb_inds, x,
                      kernel_points, anchors, weights, KP_extent):
    """Plain-JAX transcription of the PyTorch forward (feat_gather_by_rot path)."""
    A, Cin = x.shape[1], x.shape[2]
    s_pts_pad = jnp.concatenate([s_pts, jnp.full((1, 3), 1e6, s_pts.dtype)], axis=0)
    neighbors = s_pts_pad[neighb_inds] - q_pts[:, None, :]                  # (P, n, 3)
    rk = jnp.einsum('aij,kj->kai', anchors, kernel_points)                  # (K, A, 3)
    diff = neighbors[:, :, None, None, :] - rk[None, None]                  # (P, n, K, A, 3)
    sq = jnp.sum(diff * diff, axis=-1)                                      # (P, n, K, A)
    w = jnp.maximum(1.0 - jnp.sqrt(sq) / KP_extent, 0.0)
    x_pad = jnp.concatenate([x, jnp.zeros((1, A, Cin), x.dtype)], axis=0)
    nx = x_pad[neighb_inds]                                                 # (P, n, A, Cin)
    wf = jnp.einsum('pnac,pnka->pkac', nx, w)                               # (P, K, A, Cin)
    return jnp.einsum('pkac,kcd->pad', wf, weights)                         # (P, A, Cout)


if __name__ == "__main__":
    key = jax.random.PRNGKey(0)
    P, Ns, n_nbr = 16, 32, 8
    K, A, Cin, Cout = 5, 4, 8, 16          # kernel_size=5, kanchor=4
    radius, KP_extent = 1.0, 0.6

    k1, k2, k3, k4, k5, k6 = jax.random.split(key, 6)

    q_pts = (jax.random.uniform(k1, (P, 3), jnp.float32, -1.0, 1.0) * radius)
    s_pts = (jax.random.uniform(k2, (Ns, 3), jnp.float32, -1.0, 1.0) * radius)
    # indices in [0, Ns]; value Ns is the padding row (far-away point / zero feature)
    neighb_inds = jax.random.randint(k3, (P, n_nbr), 0, Ns + 1).astype(jnp.int32)
    x = jax.random.normal(k4, (Ns, A, Cin), jnp.float32)

    # TODO(synk): kernel point layout from load_kernels() replaced by a deterministic
    # synthetic stand-in (center point + points inside the sphere).
    dirs = jax.random.normal(k5, (K - 1, 3), jnp.float32)
    dirs = dirs / jnp.linalg.norm(dirs, axis=-1, keepdims=True)
    kernel_points = jnp.concatenate(
        [jnp.zeros((1, 3), jnp.float32), 0.66 * radius * dirs], axis=0)      # (K, 3)

    # TODO(synk): anchors from L.get_anchors() replaced by kanchor z-axis rotations.
    ang = 2.0 * jnp.pi * jnp.arange(A, dtype=jnp.float32) / A
    c, s = jnp.cos(ang), jnp.sin(ang)
    z, o = jnp.zeros_like(ang), jnp.ones_like(ang)
    anchors = jnp.stack([jnp.stack([c, -s, z], axis=-1),
                         jnp.stack([s, c, z], axis=-1),
                         jnp.stack([z, z, o], axis=-1)], axis=1)             # (A, 3, 3)

    # kaiming_uniform_(a=sqrt(5)) on a (K, Cin, Cout) tensor: bound = 1/sqrt(Cin*Cout)
    bound = 1.0 / math.sqrt(Cin * Cout)
    weights = jax.random.uniform(k6, (K, Cin, Cout), jnp.float32, -bound, bound)

    ref = reference_forward(q_pts, s_pts, neighb_inds, x,
                            kernel_points, anchors, weights, KP_extent)

    # f32 path (exact semantics of the PyTorch module)
    out = kpconv_inter_so3_forward(q_pts, s_pts, neighb_inds, x,
                                   kernel_points, anchors, weights, KP_extent,
                                   feature_dtype=jnp.float32)
    out = jax.block_until_ready(out)
    assert out.shape == (P, A, Cout), out.shape
    assert jnp.allclose(out, ref, atol=2e-4, rtol=2e-4), \
        float(jnp.max(jnp.abs(out - ref)))

    # bf16-streamed features (f32 accumulation): halves HBM traffic of the big tensor.
    out_bf16 = kpconv_inter_so3_forward(q_pts, s_pts, neighb_inds, x,
                                        kernel_points, anchors, weights, KP_extent,
                                        feature_dtype=jnp.bfloat16)
    out_bf16 = jax.block_until_ready(out_bf16)
    assert jnp.allclose(out_bf16, ref, atol=1e-1, rtol=1e-1), \
        float(jnp.max(jnp.abs(out_bf16 - ref)))

    print("KERNEL_OK")
</pallas_src>

<mosaic_0001>
module attributes {stable_mosaic.version = 11 : i64} {
  func.func @_kpconv_kernel(%arg0: i32, %arg1: memref<5x12xf32, #tpu.memory_space<smem>>, %arg2: memref<3x8x128xf32, #tpu.memory_space<vmem>>, %arg3: memref<4x8x8x128xf32, #tpu.memory_space<vmem>>, %arg4: memref<16x40xf32, #tpu.memory_space<vmem>>, %arg5: memref<1x16x512xf32, #tpu.memory_space<vmem>>, %arg6: memref<40x512xf32, #tpu.memory_space<vmem>>) attributes {dimension_semantics = [#tpu.dimension_semantics<parallel>], iteration_bounds = array<i64: 1>, scalar_prefetch = 0 : i64, scratch_operands = 1 : i64, tpu.core_type = #tpu.core_type<tc>, window_params = [{transform_indices = @transform_0, window_bounds = array<i64: 5, 12>}, {transform_indices = @transform_1, window_bounds = array<i64: 3, 8, 128>}, {transform_indices = @transform_2, window_bounds = array<i64: 4, 8, 8, 128>}, {pipeline_mode = #tpu.pipeline_mode<synchronous>, transform_indices = @transform_3, window_bounds = array<i64: 16, 40>}, {transform_indices = @transform_4, window_bounds = array<i64: 1, 16, 512>}]} {
    %c0 = arith.constant 0 : index
    %c0_0 = arith.constant 0 : index
    %c0_1 = arith.constant 0 : index
    %0 = vector.load %arg2[%c0, %c0_0, %c0_1] : memref<3x8x128xf32, #tpu.memory_space<vmem>>, vector<1x8x128xf32>
    %1 = vector.shape_cast %0 : vector<1x8x128xf32> to vector<8x128xf32>
    %c1 = arith.constant 1 : index
    %c0_2 = arith.constant 0 : index
    %c0_3 = arith.constant 0 : index
    %2 = vector.load %arg2[%c1, %c0_2, %c0_3] : memref<3x8x128xf32, #tpu.memory_space<vmem>>, vector<1x8x128xf32>
    %3 = vector.shape_cast %2 : vector<1x8x128xf32> to vector<8x128xf32>
    %c2 = arith.constant 2 : index
    %c0_4 = arith.constant 0 : index
    %c0_5 = arith.constant 0 : index
    %4 = vector.load %arg2[%c2, %c0_4, %c0_5] : memref<3x8x128xf32, #tpu.memory_space<vmem>>, vector<1x8x128xf32>
    %5 = vector.shape_cast %4 : vector<1x8x128xf32> to vector<8x128xf32>
    %c0_6 = arith.constant 0 : index
    %c0_7 = arith.constant 0 : index
    %c0_8 = arith.constant 0 : index
    %c0_9 = arith.constant 0 : index
    %6 = vector.load %arg3[%c0_6, %c0_7, %c0_8, %c0_9] : memref<4x8x8x128xf32, #tpu.memory_space<vmem>>, vector<1x8x8x128xf32>
    %7 = vector.shape_cast %6 : vector<1x8x8x128xf32> to vector<8x8x128xf32>
    %c0_10 = arith.constant 0 : index
    %c0_11 = arith.constant 0 : index
    %8 = memref.load %arg1[%c0_10, %c0_11] : memref<5x12xf32, #tpu.memory_space<smem>>
    %c0_12 = arith.constant 0 : index
    %c1_13 = arith.constant 1 : index
    %9 = memref.load %arg1[%c0_12, %c1_13] : memref<5x12xf32, #tpu.memory_space<smem>>
    %c0_14 = arith.constant 0 : index
    %c2_15 = arith.constant 2 : index
    %10 = memref.load %arg1[%c0_14, %c2_15] : memref<5x12xf32, #tpu.memory_space<smem>>
    %11 = vector.broadcast %8 : f32 to vector<8x128xf32>
    %12 = arith.subf %1, %11 : vector<8x128xf32>
    %13 = vector.broadcast %9 : f32 to vector<8x128xf32>
    %14 = arith.subf %3, %13 : vector<8x128xf32>
    %15 = vector.broadcast %10 : f32 to vector<8x128xf32>
    %16 = arith.subf %5, %15 : vector<8x128xf32>
    %17 = arith.mulf %12, %12 : vector<8x128xf32>
    %18 = arith.mulf %14, %14 : vector<8x128xf32>
    %19 = arith.addf %17, %18 : vector<8x128xf32>
    %20 = arith.mulf %16, %16 : vector<8x128xf32>
    %21 = arith.addf %19, %20 : vector<8x128xf32>
    %22 = math.sqrt %21 : vector<8x128xf32>
    %cst = arith.constant 1.66666663 : f32
    %23 = vector.broadcast %cst : f32 to vector<8x128xf32>
    %24 = arith.mulf %22, %23 : vector<8x128xf32>
    %cst_16 = arith.constant 1.000000e+00 : f32
    %25 = vector.broadcast %cst_16 : f32 to vector<8x128xf32>
    %26 = arith.subf %25, %24 : vector<8x128xf32>
    %cst_17 = arith.constant 0.000000e+00 : f32
    %27 = vector.broadcast %cst_17 : f32 to vector<8x128xf32>
    %28 = arith.maximumf %26, %27 : vector<8x128xf32>
    %29 = vector.shape_cast %28 : vector<8x128xf32> to vector<8x1x128xf32>
    %30 = vector.broadcast %29 : vector<8x1x128xf32> to vector<8x8x128xf32>
    %31 = arith.mulf %7, %30 : vector<8x8x128xf32>
    %cst_18 = arith.constant dense<0.000000e+00> : vector<8x128xf32>
    %32 = vector.multi_reduction <add>, %31, %cst_18 [0] : vector<8x8x128xf32> to vector<8x128xf32>
    %c0_19 = arith.constant 0 : index
    %c0_20 = arith.constant 0 : index
    %33 = vector.load %arg6[%c0_19, %c0_20] : memref<40x512xf32, #tpu.memory_space<vmem>>, vector<8x128xf32>
    tpu.vector_store %arg6[%c0_19, %c0_20], %32 {strides = array<i32>} : memref<40x512xf32, #tpu.memory_space<vmem>>, vector<8x128xf32>,
    %c1_21 = arith.constant 1 : index
    %c0_22 = arith.constant 0 : index
    %34 = memref.load %arg1[%c1_21, %c0_22] : memref<5x12xf32, #tpu.memory_space<smem>>
    %c1_23 = arith.constant 1 : index
    %c1_24 = arith.constant 1 : index
    %35 = memref.load %arg1[%c1_23, %c1_24] : memref<5x12xf32, #tpu.memory_space<smem>>
    %c1_25 = arith.constant 1 : index
    %c2_26 = arith.constant 2 : index
    %36 = memref.load %arg1[%c1_25, %c2_26] : memref<5x12xf32, #tpu.memory_space<smem>>
    %37 = vector.broadcast %34 : f32 to vector<8x128xf32>
    %38 = arith.subf %1, %37 : vector<8x128xf32>
    %39 = vector.broadcast %35 : f32 to vector<8x128xf32>
    %40 = arith.subf %3, %39 : vector<8x128xf32>
    %41 = vector.broadcast %36 : f32 to vector<8x128xf32>
    %42 = arith.subf %5, %41 : vector<8x128xf32>
    %43 = arith.mulf %38, %38 : vector<8x128xf32>
    %44 = arith.mulf %40, %40 : vector<8x128xf32>
    %45 = arith.addf %43, %44 : vector<8x128xf32>
    %46 = arith.mulf %42, %42 : vector<8x128xf32>
    %47 = arith.addf %45, %46 : vector<8x128xf32>
    %48 = math.sqrt %47 : vector<8x128xf32>
    %cst_27 = arith.constant 1.66666663 : f32
    %49 = vector.broadcast %cst_27 : f32 to vector<8x128xf32>
    %50 = arith.mulf %48, %49 : vector<8x128xf32>
    %cst_28 = arith.constant 1.000000e+00 : f32
    %51 = vector.broadcast %cst_28 : f32 to vector<8x128xf32>
    %52 = arith.subf %51, %50 : vector<8x128xf32>
    %cst_29 = arith.constant 0.000000e+00 : f32
    %53 = vector.broadcast %cst_29 : f32 to vector<8x128xf32>
    %54 = arith.maximumf %52, %53 : vector<8x128xf32>
    %55 = vector.shape_cast %54 : vector<8x128xf32> to vector<8x1x128xf32>
    %56 = vector.broadcast %55 : vector<8x1x128xf32> to vector<8x8x128xf32>
    %57 = arith.mulf %7, %56 : vector<8x8x128xf32>
    %cst_30 = arith.constant dense<0.000000e+00> : vector<8x128xf32>
    %58 = vector.multi_reduction <add>, %57, %cst_30 [0] : vector<8x8x128xf32> to vector<8x128xf32>
    %c8 = arith.constant 8 : index
    %c0_31 = arith.constant 0 : index
    %59 = vector.load %arg6[%c8, %c0_31] : memref<40x512xf32, #tpu.memory_space<vmem>>, vector<8x128xf32>
    tpu.vector_store %arg6[%c8, %c0_31], %58 {strides = array<i32>} : memref<40x512xf32, #tpu.memory_space<vmem>>, vector<8x128xf32>,
    %c2_32 = arith.constant 2 : index
    %c0_33 = arith.constant 0 : index
    %60 = memref.load %arg1[%c2_32, %c0_33] : memref<5x12xf32, #tpu.memory_space<smem>>
    %c2_34 = arith.constant 2 : index
    %c1_35 = arith.constant 1 : index
    %61 = memref.load %arg1[%c2_34, %c1_35] : memref<5x12xf32, #tpu.memory_space<smem>>
    %c2_36 = arith.constant 2 : index
    %c2_37 = arith.constant 2 : index
    %62 = memref.load %arg1[%c2_36, %c2_37] : memref<5x12xf32, #tpu.memory_space<smem>>
    %63 = vector.broadcast %60 : f32 to vector<8x128xf32>
    %64 = arith.subf %1, %63 : vector<8x128xf32>
    %65 = vector.broadcast %61 : f32 to vector<8x128xf32>
    %66 = arith.subf %3, %65 : vector<8x128xf32>
    %67 = vector.broadcast %62 : f32 to vector<8x128xf32>
    %68 = arith.subf %5, %67 : vector<8x128xf32>
    %69 = arith.mulf %64, %64 : vector<8x128xf32>
    %70 = arith.mulf %66, %66 : vector<8x128xf32>
    %71 = arith.addf %69, %70 : vector<8x128xf32>
    %72 = arith.mulf %68, %68 : vector<8x128xf32>
    %73 = arith.addf %71, %72 : vector<8x128xf32>
    %74 = math.sqrt %73 : vector<8x128xf32>
    %cst_38 = arith.constant 1.66666663 : f32
    %75 = vector.broadcast %cst_38 : f32 to vector<8x128xf32>
    %76 = arith.mulf %74, %75 : vector<8x128xf32>
    %cst_39 = arith.constant 1.000000e+00 : f32
    %77 = vector.broadcast %cst_39 : f32 to vector<8x128xf32>
    %78 = arith.subf %77, %76 : vector<8x128xf32>
    %cst_40 = arith.constant 0.000000e+00 : f32
    %79 = vector.broadcast %cst_40 : f32 to vector<8x128xf32>
    %80 = arith.maximumf %78, %79 : vector<8x128xf32>
    %81 = vector.shape_cast %80 : vector<8x128xf32> to vector<8x1x128xf32>
    %82 = vector.broadcast %81 : vector<8x1x128xf32> to vector<8x8x128xf32>
    %83 = arith.mulf %7, %82 : vector<8x8x128xf32>
    %cst_41 = arith.constant dense<0.000000e+00> : vector<8x128xf32>
    %84 = vector.multi_reduction <add>, %83, %cst_41 [0] : vector<8x8x128xf32> to vector<8x128xf32>
    %c16 = arith.constant 16 : index
    %c0_42 = arith.constant 0 : index
    %85 = vector.load %arg6[%c16, %c0_42] : memref<40x512xf32, #tpu.memory_space<vmem>>, vector<8x128xf32>
    tpu.vector_store %arg6[%c16, %c0_42], %84 {strides = array<i32>} : memref<40x512xf32, #tpu.memory_space<vmem>>, vector<8x128xf32>,
    %c3 = arith.constant 3 : index
    %c0_43 = arith.constant 0 : index
    %86 = memref.load %arg1[%c3, %c0_43] : memref<5x12xf32, #tpu.memory_space<smem>>
    %c3_44 = arith.constant 3 : index
    %c1_45 = arith.constant 1 : index
    %87 = memref.load %arg1[%c3_44, %c1_45] : memref<5x12xf32, #tpu.memory_space<smem>>
    %c3_46 = arith.constant 3 : index
    %c2_47 = arith.constant 2 : index
    %88 = memref.load %arg1[%c3_46, %c2_47] : memref<5x12xf32, #tpu.memory_space<smem>>
    %89 = vector.broadcast %86 : f32 to vector<8x128xf32>
    %90 = arith.subf %1, %89 : vector<8x128xf32>
    %91 = vector.broadcast %87 : f32 to vector<8x128xf32>
    %92 = arith.subf %3, %91 : vector<8x128xf32>
    %93 = vector.broadcast %88 : f32 to vector<8x128xf32>
    %94 = arith.subf %5, %93 : vector<8x128xf32>
    %95 = arith.mulf %90, %90 : vector<8x128xf32>
    %96 = arith.mulf %92, %92 : vector<8x128xf32>
    %97 = arith.addf %95, %96 : vector<8x128xf32>
    %98 = arith.mulf %94, %94 : vector<8x128xf32>
    %99 = arith.addf %97, %98 : vector<8x128xf32>
    %100 = math.sqrt %99 : vector<8x128xf32>
    %cst_48 = arith.constant 1.66666663 : f32
    %101 = vector.broadcast %cst_48 : f32 to vector<8x128xf32>
    %102 = arith.mulf %100, %101 : vector<8x128xf32>
    %cst_49 = arith.constant 1.000000e+00 : f32
    %103 = vector.broadcast %cst_49 : f32 to vector<8x128xf32>
    %104 = arith.subf %103, %102 : vector<8x128xf32>
    %cst_50 = arith.constant 0.000000e+00 : f32
    %105 = vector.broadcast %cst_50 : f32 to vector<8x128xf32>
    %106 = arith.maximumf %104, %105 : vector<8x128xf32>
    %107 = vector.shape_cast %106 : vector<8x128xf32> to vector<8x1x128xf32>
    %108 = vector.broadcast %107 : vector<8x1x128xf32> to vector<8x8x128xf32>
    %109 = arith.mulf %7, %108 : vector<8x8x128xf32>
    %cst_51 = arith.constant dense<0.000000e+00> : vector<8x128xf32>
    %110 = vector.multi_reduction <add>, %109, %cst_51 [0] : vector<8x8x128xf32> to vector<8x128xf32>
    %c24 = arith.constant 24 : index
    %c0_52 = arith.constant 0 : index
    %111 = vector.load %arg6[%c24, %c0_52] : memref<40x512xf32, #tpu.memory_space<vmem>>, vector<8x128xf32>
    tpu.vector_store %arg6[%c24, %c0_52], %110 {strides = array<i32>} : memref<40x512xf32, #tpu.memory_space<vmem>>, vector<8x128xf32>,
    %c4 = arith.constant 4 : index
    %c0_53 = arith.constant 0 : index
    %112 = memref.load %arg1[%c4, %c0_53] : memref<5x12xf32, #tpu.memory_space<smem>>
    %c4_54 = arith.constant 4 : index
    %c1_55 = arith.constant 1 : index
    %113 = memref.load %arg1[%c4_54, %c1_55] : memref<5x12xf32, #tpu.memory_space<smem>>
    %c4_56 = arith.constant 4 : index
    %c2_57 = arith.constant 2 : index
    %114 = memref.load %arg1[%c4_56, %c2_57] : memref<5x12xf32, #tpu.memory_space<smem>>
    %115 = vector.broadcast %112 : f32 to vector<8x128xf32>
    %116 = arith.subf %1, %115 : vector<8x128xf32>
    %117 = vector.broadcast %113 : f32 to vector<8x128xf32>
    %118 = arith.subf %3, %117 : vector<8x128xf32>
    %119 = vector.broadcast %114 : f32 to vector<8x128xf32>
    %120 = arith.subf %5, %119 : vector<8x128xf32>
    %121 = arith.mulf %116, %116 : vector<8x128xf32>
    %122 = arith.mulf %118, %118 : vector<8x128xf32>
    %123 = arith.addf %121, %122 : vector<8x128xf32>
    %124 = arith.mulf %120, %120 : vector<8x128xf32>
    %125 = arith.addf %123, %124 : vector<8x128xf32>
    %126 = math.sqrt %125 : vector<8x128xf32>
    %cst_58 = arith.constant 1.66666663 : f32
    %127 = vector.broadcast %cst_58 : f32 to vector<8x128xf32>
    %128 = arith.mulf %126, %127 : vector<8x128xf32>
    %cst_59 = arith.constant 1.000000e+00 : f32
    %129 = vector.broadcast %cst_59 : f32 to vector<8x128xf32>
    %130 = arith.subf %129, %128 : vector<8x128xf32>
    %cst_60 = arith.constant 0.000000e+00 : f32
    %131 = vector.broadcast %cst_60 : f32 to vector<8x128xf32>
    %132 = arith.maximumf %130, %131 : vector<8x128xf32>
    %133 = vector.shape_cast %132 : vector<8x128xf32> to vector<8x1x128xf32>
    %134 = vector.broadcast %133 : vector<8x1x128xf32> to vector<8x8x128xf32>
    %135 = arith.mulf %7, %134 : vector<8x8x128xf32>
    %cst_61 = arith.constant dense<0.000000e+00> : vector<8x128xf32>
    %136 = vector.multi_reduction <add>, %135, %cst_61 [0] : vector<8x8x128xf32> to vector<8x128xf32>
    %c32 = arith.constant 32 : index
    %c0_62 = arith.constant 0 : index
    %137 = vector.load %arg6[%c32, %c0_62] : memref<40x512xf32, #tpu.memory_space<vmem>>, vector<8x128xf32>
    tpu.vector_store %arg6[%c32, %c0_62], %136 {strides = array<i32>} : memref<40x512xf32, #tpu.memory_space<vmem>>, vector<8x128xf32>,
    %c1_63 = arith.constant 1 : index
    %c0_64 = arith.constant 0 : index
    %c0_65 = arith.constant 0 : index
    %c0_66 = arith.constant 0 : index
    %138 = vector.load %arg3[%c1_63, %c0_64, %c0_65, %c0_66] : memref<4x8x8x128xf32, #tpu.memory_space<vmem>>, vector<1x8x8x128xf32>
    %139 = vector.shape_cast %138 : vector<1x8x8x128xf32> to vector<8x8x128xf32>
    %c0_67 = arith.constant 0 : index
    %c3_68 = arith.constant 3 : index
    %140 = memref.load %arg1[%c0_67, %c3_68] : memref<5x12xf32, #tpu.memory_space<smem>>
    %c0_69 = arith.constant 0 : index
    %c4_70 = arith.constant 4 : index
    %141 = memref.load %arg1[%c0_69, %c4_70] : memref<5x12xf32, #tpu.memory_space<smem>>
    %c0_71 = arith.constant 0 : index
    %c5 = arith.constant 5 : index
    %142 = memref.load %arg1[%c0_71, %c5] : memref<5x12xf32, #tpu.memory_space<smem>>
    %143 = vector.broadcast %140 : f32 to vector<8x128xf32>
    %144 = arith.subf %1, %143 : vector<8x128xf32>
    %145 = vector.broadcast %141 : f32 to vector<8x128xf32>
    %146 = arith.subf %3, %145 : vector<8x128xf32>
    %147 = vector.broadcast %142 : f32 to vector<8x128xf32>
    %148 = arith.subf %5, %147 : vector<8x128xf32>
    %149 = arith.mulf %144, %144 : vector<8x128xf32>
    %150 = arith.mulf %146, %146 : vector<8x128xf32>
    %151 = arith.addf %149, %150 : vector<8x128xf32>
    %152 = arith.mulf %148, %148 : vector<8x128xf32>
    %153 = arith.addf %151, %152 : vector<8x128xf32>
    %154 = math.sqrt %153 : vector<8x128xf32>
    %cst_72 = arith.constant 1.66666663 : f32
    %155 = vector.broadcast %cst_72 : f32 to vector<8x128xf32>
    %156 = arith.mulf %154, %155 : vector<8x128xf32>
    %cst_73 = arith.constant 1.000000e+00 : f32
    %157 = vector.broadcast %cst_73 : f32 to vector<8x128xf32>
    %158 = arith.subf %157, %156 : vector<8x128xf32>
    %cst_74 = arith.constant 0.000000e+00 : f32
    %159 = vector.broadcast %cst_74 : f32 to vector<8x128xf32>
    %160 = arith.maximumf %158, %159 : vector<8x128xf32>
    %161 = vector.shape_cast %160 : vector<8x128xf32> to vector<8x1x128xf32>
    %162 = vector.broadcast %161 : vector<8x1x128xf32> to vector<8x8x128xf32>
    %163 = arith.mulf %139, %162 : vector<8x8x128xf32>
    %cst_75 = arith.constant dense<0.000000e+00> : vector<8x128xf32>
    %164 = vector.multi_reduction <add>, %163, %cst_75 [0] : vector<8x8x128xf32> to vector<8x128xf32>
    %c0_76 = arith.constant 0 : index
    %c128 = arith.constant 128 : index
    %165 = vector.load %arg6[%c0_76, %c128] : memref<40x512xf32, #tpu.memory_space<vmem>>, vector<8x128xf32>
    tpu.vector_store %arg6[%c0_76, %c128], %164 {strides = array<i32>} : memref<40x512xf32, #tpu.memory_space<vmem>>, vector<8x128xf32>,
    %c1_77 = arith.constant 1 : index
    %c3_78 = arith.constant 3 : index
    %166 = memref.load %arg1[%c1_77, %c3_78] : memref<5x12xf32, #tpu.memory_space<smem>>
    %c1_79 = arith.constant 1 : index
    %c4_80 = arith.constant 4 : index
    %167 = memref.load %arg1[%c1_79, %c4_80] : memref<5x12xf32, #tpu.memory_space<smem>>
    %c1_81 = arith.constant 1 : index
    %c5_82 = arith.constant 5 : index
    %168 = memref.load %arg1[%c1_81, %c5_82] : memref<5x12xf32, #tpu.memory_space<smem>>
    %169 = vector.broadcast %166 : f32 to vector<8x128xf32>
    %170 = arith.subf %1, %169 : vector<8x128xf32>
    %171 = vector.broadcast %167 : f32 to vector<8x128xf32>
    %172 = arith.subf %3, %171 : vector<8x128xf32>
    %173 = vector.broadcast %168 : f32 to vector<8x128xf32>
    %174 = arith.subf %5, %173 : vector<8x128xf32>
    %175 = arith.mulf %170, %170 : vector<8x128xf32>
    %176 = arith.mulf %172, %172 : vector<8x128xf32>
    %177 = arith.addf %175, %176 : vector<8x128xf32>
    %178 = arith.mulf %174, %174 : vector<8x128xf32>
    %179 = arith.addf %177, %178 : vector<8x128xf32>
    %180 = math.sqrt %179 : vector<8x128xf32>
    %cst_83 = arith.constant 1.66666663 : f32
    %181 = vector.broadcast %cst_83 : f32 to vector<8x128xf32>
    %182 = arith.mulf %180, %181 : vector<8x128xf32>
    %cst_84 = arith.constant 1.000000e+00 : f32
    %183 = vector.broadcast %cst_84 : f32 to vector<8x128xf32>
    %184 = arith.subf %183, %182 : vector<8x128xf32>
    %cst_85 = arith.constant 0.000000e+00 : f32
    %185 = vector.broadcast %cst_85 : f32 to vector<8x128xf32>
    %186 = arith.maximumf %184, %185 : vector<8x128xf32>
    %187 = vector.shape_cast %186 : vector<8x128xf32> to vector<8x1x128xf32>
    %188 = vector.broadcast %187 : vector<8x1x128xf32> to vector<8x8x128xf32>
    %189 = arith.mulf %139, %188 : vector<8x8x128xf32>
    %cst_86 = arith.constant dense<0.000000e+00> : vector<8x128xf32>
    %190 = vector.multi_reduction <add>, %189, %cst_86 [0] : vector<8x8x128xf32> to vector<8x128xf32>
    %c8_87 = arith.constant 8 : index
    %c128_88 = arith.constant 128 : index
    %191 = vector.load %arg6[%c8_87, %c128_88] : memref<40x512xf32, #tpu.memory_space<vmem>>, vector<8x128xf32>
    tpu.vector_store %arg6[%c8_87, %c128_88], %190 {strides = array<i32>} : memref<40x512xf32, #tpu.memory_space<vmem>>, vector<8x128xf32>,
    %c2_89 = arith.constant 2 : index
    %c3_90 = arith.constant 3 : index
    %192 = memref.load %arg1[%c2_89, %c3_90] : memref<5x12xf32, #tpu.memory_space<smem>>
    %c2_91 = arith.constant 2 : index
    %c4_92 = arith.constant 4 : index
    %193 = memref.load %arg1[%c2_91, %c4_92] : memref<5x12xf32, #tpu.memory_space<smem>>
    %c2_93 = arith.constant 2 : index
    %c5_94 = arith.constant 5 : index
    %194 = memref.load %arg1[%c2_93, %c5_94] : memref<5x12xf32, #tpu.memory_space<smem>>
    %195 = vector.broadcast %192 : f32 to vector<8x128xf32>
    %196 = arith.subf %1, %195 : vector<8x128xf32>
    %197 = vector.broadcast %193 : f32 to vector<8x128xf32>
    %198 = arith.subf %3, %197 : vector<8x128xf32>
    %199 = vector.broadcast %194 : f32 to vector<8x128xf32>
    %200 = arith.subf %5, %199 : vector<8x128xf32>
    %201 = arith.mulf %196, %196 : vector<8x128xf32>
    %202 = arith.mulf %198, %198 : vector<8x128xf32>
    %203 = arith.addf %201, %202 : vector<8x128xf32>
    %204 = arith.mulf %200, %200 : vector<8x128xf32>
    %205 = arith.addf %203, %204 : vector<8x128xf32>
    %206 = math.sqrt %205 : vector<8x128xf32>
    %cst_95 = arith.constant 1.66666663 : f32
    %207 = vector.broadcast %cst_95 : f32 to vector<8x128xf32>
    %208 = arith.mulf %206, %207 : vector<8x128xf32>
    %cst_96 = arith.constant 1.000000e+00 : f32
    %209 = vector.broadcast %cst_96 : f32 to vector<8x128xf32>
    %210 = arith.subf %209, %208 : vector<8x128xf32>
    %cst_97 = arith.constant 0.000000e+00 : f32
    %211 = vector.broadcast %cst_97 : f32 to vector<8x128xf32>
    %212 = arith.maximumf %210, %211 : vector<8x128xf32>
    %213 = vector.shape_cast %212 : vector<8x128xf32> to vector<8x1x128xf32>
    %214 = vector.broadcast %213 : vector<8x1x128xf32> to vector<8x8x128xf32>
    %215 = arith.mulf %139, %214 : vector<8x8x128xf32>
    %cst_98 = arith.constant dense<0.000000e+00> : vector<8x128xf32>
    %216 = vector.multi_reduction <add>, %215, %cst_98 [0] : vector<8x8x128xf32> to vector<8x128xf32>
    %c16_99 = arith.constant 16 : index
    %c128_100 = arith.constant 128 : index
    %217 = vector.load %arg6[%c16_99, %c128_100] : memref<40x512xf32, #tpu.memory_space<vmem>>, vector<8x128xf32>
    tpu.vector_store %arg6[%c16_99, %c128_100], %216 {strides = array<i32>} : memref<40x512xf32, #tpu.memory_space<vmem>>, vector<8x128xf32>,
    %c3_101 = arith.constant 3 : index
    %c3_102 = arith.constant 3 : index
    %218 = memref.load %arg1[%c3_101, %c3_102] : memref<5x12xf32, #tpu.memory_space<smem>>
    %c3_103 = arith.constant 3 : index
    %c4_104 = arith.constant 4 : index
    %219 = memref.load %arg1[%c3_103, %c4_104] : memref<5x12xf32, #tpu.memory_space<smem>>
    %c3_105 = arith.constant 3 : index
    %c5_106 = arith.constant 5 : index
    %220 = memref.load %arg1[%c3_105, %c5_106] : memref<5x12xf32, #tpu.memory_space<smem>>
    %221 = vector.broadcast %218 : f32 to vector<8x128xf32>
    %222 = arith.subf %1, %221 : vector<8x128xf32>
    %223 = vector.broadcast %219 : f32 to vector<8x128xf32>
    %224 = arith.subf %3, %223 : vector<8x128xf32>
    %225 = vector.broadcast %220 : f32 to vector<8x128xf32>
    %226 = arith.subf %5, %225 : vector<8x128xf32>
    %227 = arith.mulf %222, %222 : vector<8x128xf32>
    %228 = arith.mulf %224, %224 : vector<8x128xf32>
    %229 = arith.addf %227, %228 : vector<8x128xf32>
    %230 = arith.mulf %226, %226 : vector<8x128xf32>
    %231 = arith.addf %229, %230 : vector<8x128xf32>
    %232 = math.sqrt %231 : vector<8x128xf32>
    %cst_107 = arith.constant 1.66666663 : f32
    %233 = vector.broadcast %cst_107 : f32 to vector<8x128xf32>
    %234 = arith.mulf %232, %233 : vector<8x128xf32>
    %cst_108 = arith.constant 1.000000e+00 : f32
    %235 = vector.broadcast %cst_108 : f32 to vector<8x128xf32>
    %236 = arith.subf %235, %234 : vector<8x128xf32>
    %cst_109 = arith.constant 0.000000e+00 : f32
    %237 = vector.broadcast %cst_109 : f32 to vector<8x128xf32>
    %238 = arith.maximumf %236, %237 : vector<8x128xf32>
    %239 = vector.shape_cast %238 : vector<8x128xf32> to vector<8x1x128xf32>
    %240 = vector.broadcast %239 : vector<8x1x128xf32> to vector<8x8x128xf32>
    %241 = arith.mulf %139, %240 : vector<8x8x128xf32>
    %cst_110 = arith.constant dense<0.000000e+00> : vector<8x128xf32>
    %242 = vector.multi_reduction <add>, %241, %cst_110 [0] : vector<8x8x128xf32> to vector<8x128xf32>
    %c24_111 = arith.constant 24 : index
    %c128_112 = arith.constant 128 : index
    %243 = vector.load %arg6[%c24_111, %c128_112] : memref<40x512xf32, #tpu.memory_space<vmem>>, vector<8x128xf32>
    tpu.vector_store %arg6[%c24_111, %c128_112], %242 {strides = array<i32>} : memref<40x512xf32, #tpu.memory_space<vmem>>, vector<8x128xf32>,
    %c4_113 = arith.constant 4 : index
    %c3_114 = arith.constant 3 : index
    %244 = memref.load %arg1[%c4_113, %c3_114] : memref<5x12xf32, #tpu.memory_space<smem>>
    %c4_115 = arith.constant 4 : index
    %c4_116 = arith.constant 4 : index
    %245 = memref.load %arg1[%c4_115, %c4_116] : memref<5x12xf32, #tpu.memory_space<smem>>
    %c4_117 = arith.constant 4 : index
    %c5_118 = arith.constant 5 : index
    %246 = memref.load %arg1[%c4_117, %c5_118] : memref<5x12xf32, #tpu.memory_space<smem>>
    %247 = vector.broadcast %244 : f32 to vector<8x128xf32>
    %248 = arith.subf %1, %247 : vector<8x128xf32>
    %249 = vector.broadcast %245 : f32 to vector<8x128xf32>
    %250 = arith.subf %3, %249 : vector<8x128xf32>
    %251 = vector.broadcast %246 : f32 to vector<8x128xf32>
    %252 = arith.subf %5, %251 : vector<8x128xf32>
    %253 = arith.mulf %248, %248 : vector<8x128xf32>
    %254 = arith.mulf %250, %250 : vector<8x128xf32>
    %255 = arith.addf %253, %254 : vector<8x128xf32>
    %256 = arith.mulf %252, %252 : vector<8x128xf32>
    %257 = arith.addf %255, %256 : vector<8x128xf32>
    %258 = math.sqrt %257 : vector<8x128xf32>
    %cst_119 = arith.constant 1.66666663 : f32
    %259 = vector.broadcast %cst_119 : f32 to vector<8x128xf32>
    %260 = arith.mulf %258, %259 : vector<8x128xf32>
    %cst_120 = arith.constant 1.000000e+00 : f32
    %261 = vector.broadcast %cst_120 : f32 to vector<8x128xf32>
    %262 = arith.subf %261, %260 : vector<8x128xf32>
    %cst_121 = arith.constant 0.000000e+00 : f32
    %263 = vector.broadcast %cst_121 : f32 to vector<8x128xf32>
    %264 = arith.maximumf %262, %263 : vector<8x128xf32>
    %265 = vector.shape_cast %264 : vector<8x128xf32> to vector<8x1x128xf32>
    %266 = vector.broadcast %265 : vector<8x1x128xf32> to vector<8x8x128xf32>
    %267 = arith.mulf %139, %266 : vector<8x8x128xf32>
    %cst_122 = arith.constant dense<0.000000e+00> : vector<8x128xf32>
    %268 = vector.multi_reduction <add>, %267, %cst_122 [0] : vector<8x8x128xf32> to vector<8x128xf32>
    %c32_123 = arith.constant 32 : index
    %c128_124 = arith.constant 128 : index
    %269 = vector.load %arg6[%c32_123, %c128_124] : memref<40x512xf32, #tpu.memory_space<vmem>>, vector<8x128xf32>
    tpu.vector_store %arg6[%c32_123, %c128_124], %268 {strides = array<i32>} : memref<40x512xf32, #tpu.memory_space<vmem>>, vector<8x128xf32>,
    %c2_125 = arith.constant 2 : index
    %c0_126 = arith.constant 0 : index
    %c0_127 = arith.constant 0 : index
    %c0_128 = arith.constant 0 : index
    %270 = vector.load %arg3[%c2_125, %c0_126, %c0_127, %c0_128] : memref<4x8x8x128xf32, #tpu.memory_space<vmem>>, vector<1x8x8x128xf32>
    %271 = vector.shape_cast %270 : vector<1x8x8x128xf32> to vector<8x8x128xf32>
    %c0_129 = arith.constant 0 : index
    %c6 = arith.constant 6 : index
    %272 = memref.load %arg1[%c0_129, %c6] : memref<5x12xf32, #tpu.memory_space<smem>>
    %c0_130 = arith.constant 0 : index
    %c7 = arith.constant 7 : index
    %273 = memref.load %arg1[%c0_130, %c7] : memref<5x12xf32, #tpu.memory_space<smem>>
    %c0_131 = arith.constant 0 : index
    %c8_132 = arith.constant 8 : index
    %274 = memref.load %arg1[%c0_131, %c8_132] : memref<5x12xf32, #tpu.memory_space<smem>>
    %275 = vector.broadcast %272 : f32 to vector<8x128xf32>
    %276 = arith.subf %1, %275 : vector<8x128xf32>
    %277 = vector.broadcast %273 : f32 to vector<8x128xf32>
    %278 = arith.subf %3, %277 : vector<8x128xf32>
    %279 = vector.broadcast %274 : f32 to vector<8x128xf32>
    %280 = arith.subf %5, %279 : vector<8x128xf32>
    %281 = arith.mulf %276, %276 : vector<8x128xf32>
    %282 = arith.mulf %278, %278 : vector<8x128xf32>
    %283 = arith.addf %281, %282 : vector<8x128xf32>
    %284 = arith.mulf %280, %280 : vector<8x128xf32>
    %285 = arith.addf %283, %284 : vector<8x128xf32>
    %286 = math.sqrt %285 : vector<8x128xf32>
    %cst_133 = arith.constant 1.66666663 : f32
    %287 = vector.broadcast %cst_133 : f32 to vector<8x128xf32>
    %288 = arith.mulf %286, %287 : vector<8x128xf32>
    %cst_134 = arith.constant 1.000000e+00 : f32
    %289 = vector.broadcast %cst_134 : f32 to vector<8x128xf32>
    %290 = arith.subf %289, %288 : vector<8x128xf32>
    %cst_135 = arith.constant 0.000000e+00 : f32
    %291 = vector.broadcast %cst_135 : f32 to vector<8x128xf32>
    %292 = arith.maximumf %290, %291 : vector<8x128xf32>
    %293 = vector.shape_cast %292 : vector<8x128xf32> to vector<8x1x128xf32>
    %294 = vector.broadcast %293 : vector<8x1x128xf32> to vector<8x8x128xf32>
    %295 = arith.mulf %271, %294 : vector<8x8x128xf32>
    %cst_136 = arith.constant dense<0.000000e+00> : vector<8x128xf32>
    %296 = vector.multi_reduction <add>, %295, %cst_136 [0] : vector<8x8x128xf32> to vector<8x128xf32>
    %c0_137 = arith.constant 0 : index
    %c256 = arith.constant 256 : index
    %297 = vector.load %arg6[%c0_137, %c256] : memref<40x512xf32, #tpu.memory_space<vmem>>, vector<8x128xf32>
    tpu.vector_store %arg6[%c0_137, %c256], %296 {strides = array<i32>} : memref<40x512xf32, #tpu.memory_space<vmem>>, vector<8x128xf32>,
    %c1_138 = arith.constant 1 : index
    %c6_139 = arith.constant 6 : index
    %298 = memref.load %arg1[%c1_138, %c6_139] : memref<5x12xf32, #tpu.memory_space<smem>>
    %c1_140 = arith.constant 1 : index
    %c7_141 = arith.constant 7 : index
    %299 = memref.load %arg1[%c1_140, %c7_141] : memref<5x12xf32, #tpu.memory_space<smem>>
    %c1_142 = arith.constant 1 : index
    %c8_143 = arith.constant 8 : index
    %300 = memref.load %arg1[%c1_142, %c8_143] : memref<5x12xf32, #tpu.memory_space<smem>>
    %301 = vector.broadcast %298 : f32 to vector<8x128xf32>
    %302 = arith.subf %1, %301 : vector<8x128xf32>
    %303 = vector.broadcast %299 : f32 to vector<8x128xf32>
    %304 = arith.subf %3, %303 : vector<8x128xf32>
    %305 = vector.broadcast %300 : f32 to vector<8x128xf32>
    %306 = arith.subf %5, %305 : vector<8x128xf32>
    %307 = arith.mulf %302, %302 : vector<8x128xf32>
    %308 = arith.mulf %304, %304 : vector<8x128xf32>
    %309 = arith.addf %307, %308 : vector<8x128xf32>
    %310 = arith.mulf %306, %306 : vector<8x128xf32>
    %311 = arith.addf %309, %310 : vector<8x128xf32>
    %312 = math.sqrt %311 : vector<8x128xf32>
    %cst_144 = arith.constant 1.66666663 : f32
    %313 = vector.broadcast %cst_144 : f32 to vector<8x128xf32>
    %314 = arith.mulf %312, %313 : vector<8x128xf32>
    %cst_145 = arith.constant 1.000000e+00 : f32
    %315 = vector.broadcast %cst_145 : f32 to vector<8x128xf32>
    %316 = arith.subf %315, %314 : vector<8x128xf32>
    %cst_146 = arith.constant 0.000000e+00 : f32
    %317 = vector.broadcast %cst_146 : f32 to vector<8x128xf32>
    %318 = arith.maximumf %316, %317 : vector<8x128xf32>
    %319 = vector.shape_cast %318 : vector<8x128xf32> to vector<8x1x128xf32>
    %320 = vector.broadcast %319 : vector<8x1x128xf32> to vector<8x8x128xf32>
    %321 = arith.mulf %271, %320 : vector<8x8x128xf32>
    %cst_147 = arith.constant dense<0.000000e+00> : vector<8x128xf32>
    %322 = vector.multi_reduction <add>, %321, %cst_147 [0] : vector<8x8x128xf32> to vector<8x128xf32>
    %c8_148 = arith.constant 8 : index
    %c256_149 = arith.constant 256 : index
    %323 = vector.load %arg6[%c8_148, %c256_149] : memref<40x512xf32, #tpu.memory_space<vmem>>, vector<8x128xf32>
    tpu.vector_store %arg6[%c8_148, %c256_149], %322 {strides = array<i32>} : memref<40x512xf32, #tpu.memory_space<vmem>>, vector<8x128xf32>,
    %c2_150 = arith.constant 2 : index
    %c6_151 = arith.constant 6 : index
    %324 = memref.load %arg1[%c2_150, %c6_151] : memref<5x12xf32, #tpu.memory_space<smem>>
    %c2_152 = arith.constant 2 : index
    %c7_153 = arith.constant 7 : index
    %325 = memref.load %arg1[%c2_152, %c7_153] : memref<5x12xf32, #tpu.memory_space<smem>>
    %c2_154 = arith.constant 2 : index
    %c8_155 = arith.constant 8 : index
    %326 = memref.load %arg1[%c2_154, %c8_155] : memref<5x12xf32, #tpu.memory_space<smem>>
    %327 = vector.broadcast %324 : f32 to vector<8x128xf32>
    %328 = arith.subf %1, %327 : vector<8x128xf32>
    %329 = vector.broadcast %325 : f32 to vector<8x128xf32>
    %330 = arith.subf %3, %329 : vector<8x128xf32>
    %331 = vector.broadcast %326 : f32 to vector<8x128xf32>
    %332 = arith.subf %5, %331 : vector<8x128xf32>
    %333 = arith.mulf %328, %328 : vector<8x128xf32>
    %334 = arith.mulf %330, %330 : vector<8x128xf32>
    %335 = arith.addf %333, %334 : vector<8x128xf32>
    %336 = arith.mulf %332, %332 : vector<8x128xf32>
    %337 = arith.addf %335, %336 : vector<8x128xf32>
    %338 = math.sqrt %337 : vector<8x128xf32>
    %cst_156 = arith.constant 1.66666663 : f32
    %339 = vector.broadcast %cst_156 : f32 to vector<8x128xf32>
    %340 = arith.mulf %338, %339 : vector<8x128xf32>
    %cst_157 = arith.constant 1.000000e+00 : f32
    %341 = vector.broadcast %cst_157 : f32 to vector<8x128xf32>
    %342 = arith.subf %341, %340 : vector<8x128xf32>
    %cst_158 = arith.constant 0.000000e+00 : f32
    %343 = vector.broadcast %cst_158 : f32 to vector<8x128xf32>
    %344 = arith.maximumf %342, %343 : vector<8x128xf32>
    %345 = vector.shape_cast %344 : vector<8x128xf32> to vector<8x1x128xf32>
    %346 = vector.broadcast %345 : vector<8x1x128xf32> to vector<8x8x128xf32>
    %347 = arith.mulf %271, %346 : vector<8x8x128xf32>
    %cst_159 = arith.constant dense<0.000000e+00> : vector<8x128xf32>
    %348 = vector.multi_reduction <add>, %347, %cst_159 [0] : vector<8x8x128xf32> to vector<8x128xf32>
    %c16_160 = arith.constant 16 : index
    %c256_161 = arith.constant 256 : index
    %349 = vector.load %arg6[%c16_160, %c256_161] : memref<40x512xf32, #tpu.memory_space<vmem>>, vector<8x128xf32>
    tpu.vector_store %arg6[%c16_160, %c256_161], %348 {strides = array<i32>} : memref<40x512xf32, #tpu.memory_space<vmem>>, vector<8x128xf32>,
    %c3_162 = arith.constant 3 : index
    %c6_163 = arith.constant 6 : index
    %350 = memref.load %arg1[%c3_162, %c6_163] : memref<5x12xf32, #tpu.memory_space<smem>>
    %c3_164 = arith.constant 3 : index
    %c7_165 = arith.constant 7 : index
    %351 = memref.load %arg1[%c3_164, %c7_165] : memref<5x12xf32, #tpu.memory_space<smem>>
    %c3_166 = arith.constant 3 : index
    %c8_167 = arith.constant 8 : index
    %352 = memref.load %arg1[%c3_166, %c8_167] : memref<5x12xf32, #tpu.memory_space<smem>>
    %353 = vector.broadcast %350 : f32 to vector<8x128xf32>
    %354 = arith.subf %1, %353 : vector<8x128xf32>
    %355 = vector.broadcast %351 : f32 to vector<8x128xf32>
    %356 = arith.subf %3, %355 : vector<8x128xf32>
    %357 = vector.broadcast %352 : f32 to vector<8x128xf32>
    %358 = arith.subf %5, %357 : vector<8x128xf32>
    %359 = arith.mulf %354, %354 : vector<8x128xf32>
    %360 = arith.mulf %356, %356 : vector<8x128xf32>
    %361 = arith.addf %359, %360 : vector<8x128xf32>
    %362 = arith.mulf %358, %358 : vector<8x128xf32>
    %363 = arith.addf %361, %362 : vector<8x128xf32>
    %364 = math.sqrt %363 : vector<8x128xf32>
    %cst_168 = arith.constant 1.66666663 : f32
    %365 = vector.broadcast %cst_168 : f32 to vector<8x128xf32>
    %366 = arith.mulf %364, %365 : vector<8x128xf32>
    %cst_169 = arith.constant 1.000000e+00 : f32
    %367 = vector.broadcast %cst_169 : f32 to vector<8x128xf32>
    %368 = arith.subf %367, %366 : vector<8x128xf32>
    %cst_170 = arith.constant 0.000000e+00 : f32
    %369 = vector.broadcast %cst_170 : f32 to vector<8x128xf32>
    %370 = arith.maximumf %368, %369 : vector<8x128xf32>
    %371 = vector.shape_cast %370 : vector<8x128xf32> to vector<8x1x128xf32>
    %372 = vector.broadcast %371 : vector<8x1x128xf32> to vector<8x8x128xf32>
    %373 = arith.mulf %271, %372 : vector<8x8x128xf32>
    %cst_171 = arith.constant dense<0.000000e+00> : vector<8x128xf32>
    %374 = vector.multi_reduction <add>, %373, %cst_171 [0] : vector<8x8x128xf32> to vector<8x128xf32>
    %c24_172 = arith.constant 24 : index
    %c256_173 = arith.constant 256 : index
    %375 = vector.load %arg6[%c24_172, %c256_173] : memref<40x512xf32, #tpu.memory_space<vmem>>, vector<8x128xf32>
    tpu.vector_store %arg6[%c24_172, %c256_173], %374 {strides = array<i32>} : memref<40x512xf32, #tpu.memory_space<vmem>>, vector<8x128xf32>,
    %c4_174 = arith.constant 4 : index
    %c6_175 = arith.constant 6 : index
    %376 = memref.load %arg1[%c4_174, %c6_175] : memref<5x12xf32, #tpu.memory_space<smem>>
    %c4_176 = arith.constant 4 : index
    %c7_177 = arith.constant 7 : index
    %377 = memref.load %arg1[%c4_176, %c7_177] : memref<5x12xf32, #tpu.memory_space<smem>>
    %c4_178 = arith.constant 4 : index
    %c8_179 = arith.constant 8 : index
    %378 = memref.load %arg1[%c4_178, %c8_179] : memref<5x12xf32, #tpu.memory_space<smem>>
    %379 = vector.broadcast %376 : f32 to vector<8x128xf32>
    %380 = arith.subf %1, %379 : vector<8x128xf32>
    %381 = vector.broadcast %377 : f32 to vector<8x128xf32>
    %382 = arith.subf %3, %381 : vector<8x128xf32>
    %383 = vector.broadcast %378 : f32 to vector<8x128xf32>
    %384 = arith.subf %5, %383 : vector<8x128xf32>
    %385 = arith.mulf %380, %380 : vector<8x128xf32>
    %386 = arith.mulf %382, %382 : vector<8x128xf32>
    %387 = arith.addf %385, %386 : vector<8x128xf32>
    %388 = arith.mulf %384, %384 : vector<8x128xf32>
    %389 = arith.addf %387, %388 : vector<8x128xf32>
    %390 = math.sqrt %389 : vector<8x128xf32>
    %cst_180 = arith.constant 1.66666663 : f32
    %391 = vector.broadcast %cst_180 : f32 to vector<8x128xf32>
    %392 = arith.mulf %390, %391 : vector<8x128xf32>
    %cst_181 = arith.constant 1.000000e+00 : f32
    %393 = vector.broadcast %cst_181 : f32 to vector<8x128xf32>
    %394 = arith.subf %393, %392 : vector<8x128xf32>
    %cst_182 = arith.constant 0.000000e+00 : f32
    %395 = vector.broadcast %cst_182 : f32 to vector<8x128xf32>
    %396 = arith.maximumf %394, %395 : vector<8x128xf32>
    %397 = vector.shape_cast %396 : vector<8x128xf32> to vector<8x1x128xf32>
    %398 = vector.broadcast %397 : vector<8x1x128xf32> to vector<8x8x128xf32>
    %399 = arith.mulf %271, %398 : vector<8x8x128xf32>
    %cst_183 = arith.constant dense<0.000000e+00> : vector<8x128xf32>
    %400 = vector.multi_reduction <add>, %399, %cst_183 [0] : vector<8x8x128xf32> to vector<8x128xf32>
    %c32_184 = arith.constant 32 : index
    %c256_185 = arith.constant 256 : index
    %401 = vector.load %arg6[%c32_184, %c256_185] : memref<40x512xf32, #tpu.memory_space<vmem>>, vector<8x128xf32>
    tpu.vector_store %arg6[%c32_184, %c256_185], %400 {strides = array<i32>} : memref<40x512xf32, #tpu.memory_space<vmem>>, vector<8x128xf32>,
    %c3_186 = arith.constant 3 : index
    %c0_187 = arith.constant 0 : index
    %c0_188 = arith.constant 0 : index
    %c0_189 = arith.constant 0 : index
    %402 = vector.load %arg3[%c3_186, %c0_187, %c0_188, %c0_189] : memref<4x8x8x128xf32, #tpu.memory_space<vmem>>, vector<1x8x8x128xf32>
    %403 = vector.shape_cast %402 : vector<1x8x8x128xf32> to vector<8x8x128xf32>
    %c0_190 = arith.constant 0 : index
    %c9 = arith.constant 9 : index
    %404 = memref.load %arg1[%c0_190, %c9] : memref<5x12xf32, #tpu.memory_space<smem>>
    %c0_191 = arith.constant 0 : index
    %c10 = arith.constant 10 : index
    %405 = memref.load %arg1[%c0_191, %c10] : memref<5x12xf32, #tpu.memory_space<smem>>
    %c0_192 = arith.constant 0 : index
    %c11 = arith.constant 11 : index
    %406 = memref.load %arg1[%c0_192, %c11] : memref<5x12xf32, #tpu.memory_space<smem>>
    %407 = vector.broadcast %404 : f32 to vector<8x128xf32>
    %408 = arith.subf %1, %407 : vector<8x128xf32>
    %409 = vector.broadcast %405 : f32 to vector<8x128xf32>
    %410 = arith.subf %3, %409 : vector<8x128xf32>
    %411 = vector.broadcast %406 : f32 to vector<8x128xf32>
    %412 = arith.subf %5, %411 : vector<8x128xf32>
    %413 = arith.mulf %408, %408 : vector<8x128xf32>
    %414 = arith.mulf %410, %410 : vector<8x128xf32>
    %415 = arith.addf %413, %414 : vector<8x128xf32>
    %416 = arith.mulf %412, %412 : vector<8x128xf32>
    %417 = arith.addf %415, %416 : vector<8x128xf32>
    %418 = math.sqrt %417 : vector<8x128xf32>
    %cst_193 = arith.constant 1.66666663 : f32
    %419 = vector.broadcast %cst_193 : f32 to vector<8x128xf32>
    %420 = arith.mulf %418, %419 : vector<8x128xf32>
    %cst_194 = arith.constant 1.000000e+00 : f32
    %421 = vector.broadcast %cst_194 : f32 to vector<8x128xf32>
    %422 = arith.subf %421, %420 : vector<8x128xf32>
    %cst_195 = arith.constant 0.000000e+00 : f32
    %423 = vector.broadcast %cst_195 : f32 to vector<8x128xf32>
    %424 = arith.maximumf %422, %423 : vector<8x128xf32>
    %425 = vector.shape_cast %424 : vector<8x128xf32> to vector<8x1x128xf32>
    %426 = vector.broadcast %425 : vector<8x1x128xf32> to vector<8x8x128xf32>
    %427 = arith.mulf %403, %426 : vector<8x8x128xf32>
    %cst_196 = arith.constant dense<0.000000e+00> : vector<8x128xf32>
    %428 = vector.multi_reduction <add>, %427, %cst_196 [0] : vector<8x8x128xf32> to vector<8x128xf32>
    %c0_197 = arith.constant 0 : index
    %c384 = arith.constant 384 : index
    %429 = vector.load %arg6[%c0_197, %c384] : memref<40x512xf32, #tpu.memory_space<vmem>>, vector<8x128xf32>
    tpu.vector_store %arg6[%c0_197, %c384], %428 {strides = array<i32>} : memref<40x512xf32, #tpu.memory_space<vmem>>, vector<8x128xf32>,
    %c1_198 = arith.constant 1 : index
    %c9_199 = arith.constant 9 : index
    %430 = memref.load %arg1[%c1_198, %c9_199] : memref<5x12xf32, #tpu.memory_space<smem>>
    %c1_200 = arith.constant 1 : index
    %c10_201 = arith.constant 10 : index
    %431 = memref.load %arg1[%c1_200, %c10_201] : memref<5x12xf32, #tpu.memory_space<smem>>
    %c1_202 = arith.constant 1 : index
    %c11_203 = arith.constant 11 : index
    %432 = memref.load %arg1[%c1_202, %c11_203] : memref<5x12xf32, #tpu.memory_space<smem>>
    %433 = vector.broadcast %430 : f32 to vector<8x128xf32>
    %434 = arith.subf %1, %433 : vector<8x128xf32>
    %435 = vector.broadcast %431 : f32 to vector<8x128xf32>
    %436 = arith.subf %3, %435 : vector<8x128xf32>
    %437 = vector.broadcast %432 : f32 to vector<8x128xf32>
    %438 = arith.subf %5, %437 : vector<8x128xf32>
    %439 = arith.mulf %434, %434 : vector<8x128xf32>
    %440 = arith.mulf %436, %436 : vector<8x128xf32>
    %441 = arith.addf %439, %440 : vector<8x128xf32>
    %442 = arith.mulf %438, %438 : vector<8x128xf32>
    %443 = arith.addf %441, %442 : vector<8x128xf32>
    %444 = math.sqrt %443 : vector<8x128xf32>
    %cst_204 = arith.constant 1.66666663 : f32
    %445 = vector.broadcast %cst_204 : f32 to vector<8x128xf32>
    %446 = arith.mulf %444, %445 : vector<8x128xf32>
    %cst_205 = arith.constant 1.000000e+00 : f32
    %447 = vector.broadcast %cst_205 : f32 to vector<8x128xf32>
    %448 = arith.subf %447, %446 : vector<8x128xf32>
    %cst_206 = arith.constant 0.000000e+00 : f32
    %449 = vector.broadcast %cst_206 : f32 to vector<8x128xf32>
    %450 = arith.maximumf %448, %449 : vector<8x128xf32>
    %451 = vector.shape_cast %450 : vector<8x128xf32> to vector<8x1x128xf32>
    %452 = vector.broadcast %451 : vector<8x1x128xf32> to vector<8x8x128xf32>
    %453 = arith.mulf %403, %452 : vector<8x8x128xf32>
    %cst_207 = arith.constant dense<0.000000e+00> : vector<8x128xf32>
    %454 = vector.multi_reduction <add>, %453, %cst_207 [0] : vector<8x8x128xf32> to vector<8x128xf32>
    %c8_208 = arith.constant 8 : index
    %c384_209 = arith.constant 384 : index
    %455 = vector.load %arg6[%c8_208, %c384_209] : memref<40x512xf32, #tpu.memory_space<vmem>>, vector<8x128xf32>
    tpu.vector_store %arg6[%c8_208, %c384_209], %454 {strides = array<i32>} : memref<40x512xf32, #tpu.memory_space<vmem>>, vector<8x128xf32>,
    %c2_210 = arith.constant 2 : index
    %c9_211 = arith.constant 9 : index
    %456 = memref.load %arg1[%c2_210, %c9_211] : memref<5x12xf32, #tpu.memory_space<smem>>
    %c2_212 = arith.constant 2 : index
    %c10_213 = arith.constant 10 : index
    %457 = memref.load %arg1[%c2_212, %c10_213] : memref<5x12xf32, #tpu.memory_space<smem>>
    %c2_214 = arith.constant 2 : index
    %c11_215 = arith.constant 11 : index
    %458 = memref.load %arg1[%c2_214, %c11_215] : memref<5x12xf32, #tpu.memory_space<smem>>
    %459 = vector.broadcast %456 : f32 to vector<8x128xf32>
    %460 = arith.subf %1, %459 : vector<8x128xf32>
    %461 = vector.broadcast %457 : f32 to vector<8x128xf32>
    %462 = arith.subf %3, %461 : vector<8x128xf32>
    %463 = vector.broadcast %458 : f32 to vector<8x128xf32>
    %464 = arith.subf %5, %463 : vector<8x128xf32>
    %465 = arith.mulf %460, %460 : vector<8x128xf32>
    %466 = arith.mulf %462, %462 : vector<8x128xf32>
    %467 = arith.addf %465, %466 : vector<8x128xf32>
    %468 = arith.mulf %464, %464 : vector<8x128xf32>
    %469 = arith.addf %467, %468 : vector<8x128xf32>
    %470 = math.sqrt %469 : vector<8x128xf32>
    %cst_216 = arith.constant 1.66666663 : f32
    %471 = vector.broadcast %cst_216 : f32 to vector<8x128xf32>
    %472 = arith.mulf %470, %471 : vector<8x128xf32>
    %cst_217 = arith.constant 1.000000e+00 : f32
    %473 = vector.broadcast %cst_217 : f32 to vector<8x128xf32>
    %474 = arith.subf %473, %472 : vector<8x128xf32>
    %cst_218 = arith.constant 0.000000e+00 : f32
    %475 = vector.broadcast %cst_218 : f32 to vector<8x128xf32>
    %476 = arith.maximumf %474, %475 : vector<8x128xf32>
    %477 = vector.shape_cast %476 : vector<8x128xf32> to vector<8x1x128xf32>
    %478 = vector.broadcast %477 : vector<8x1x128xf32> to vector<8x8x128xf32>
    %479 = arith.mulf %403, %478 : vector<8x8x128xf32>
    %cst_219 = arith.constant dense<0.000000e+00> : vector<8x128xf32>
    %480 = vector.multi_reduction <add>, %479, %cst_219 [0] : vector<8x8x128xf32> to vector<8x128xf32>
    %c16_220 = arith.constant 16 : index
    %c384_221 = arith.constant 384 : index
    %481 = vector.load %arg6[%c16_220, %c384_221] : memref<40x512xf32, #tpu.memory_space<vmem>>, vector<8x128xf32>
    tpu.vector_store %arg6[%c16_220, %c384_221], %480 {strides = array<i32>} : memref<40x512xf32, #tpu.memory_space<vmem>>, vector<8x128xf32>,
    %c3_222 = arith.constant 3 : index
    %c9_223 = arith.constant 9 : index
    %482 = memref.load %arg1[%c3_222, %c9_223] : memref<5x12xf32, #tpu.memory_space<smem>>
    %c3_224 = arith.constant 3 : index
    %c10_225 = arith.constant 10 : index
    %483 = memref.load %arg1[%c3_224, %c10_225] : memref<5x12xf32, #tpu.memory_space<smem>>
    %c3_226 = arith.constant 3 : index
    %c11_227 = arith.constant 11 : index
    %484 = memref.load %arg1[%c3_226, %c11_227] : memref<5x12xf32, #tpu.memory_space<smem>>
    %485 = vector.broadcast %482 : f32 to vector<8x128xf32>
    %486 = arith.subf %1, %485 : vector<8x128xf32>
    %487 = vector.broadcast %483 : f32 to vector<8x128xf32>
    %488 = arith.subf %3, %487 : vector<8x128xf32>
    %489 = vector.broadcast %484 : f32 to vector<8x128xf32>
    %490 = arith.subf %5, %489 : vector<8x128xf32>
    %491 = arith.mulf %486, %486 : vector<8x128xf32>
    %492 = arith.mulf %488, %488 : vector<8x128xf32>
    %493 = arith.addf %491, %492 : vector<8x128xf32>
    %494 = arith.mulf %490, %490 : vector<8x128xf32>
    %495 = arith.addf %493, %494 : vector<8x128xf32>
    %496 = math.sqrt %495 : vector<8x128xf32>
    %cst_228 = arith.constant 1.66666663 : f32
    %497 = vector.broadcast %cst_228 : f32 to vector<8x128xf32>
    %498 = arith.mulf %496, %497 : vector<8x128xf32>
    %cst_229 = arith.constant 1.000000e+00 : f32
    %499 = vector.broadcast %cst_229 : f32 to vector<8x128xf32>
    %500 = arith.subf %499, %498 : vector<8x128xf32>
    %cst_230 = arith.constant 0.000000e+00 : f32
    %501 = vector.broadcast %cst_230 : f32 to vector<8x128xf32>
    %502 = arith.maximumf %500, %501 : vector<8x128xf32>
    %503 = vector.shape_cast %502 : vector<8x128xf32> to vector<8x1x128xf32>
    %504 = vector.broadcast %503 : vector<8x1x128xf32> to vector<8x8x128xf32>
    %505 = arith.mulf %403, %504 : vector<8x8x128xf32>
    %cst_231 = arith.constant dense<0.000000e+00> : vector<8x128xf32>
    %506 = vector.multi_reduction <add>, %505, %cst_231 [0] : vector<8x8x128xf32> to vector<8x128xf32>
    %c24_232 = arith.constant 24 : index
    %c384_233 = arith.constant 384 : index
    %507 = vector.load %arg6[%c24_232, %c384_233] : memref<40x512xf32, #tpu.memory_space<vmem>>, vector<8x128xf32>
    tpu.vector_store %arg6[%c24_232, %c384_233], %506 {strides = array<i32>} : memref<40x512xf32, #tpu.memory_space<vmem>>, vector<8x128xf32>,
    %c4_234 = arith.constant 4 : index
    %c9_235 = arith.constant 9 : index
    %508 = memref.load %arg1[%c4_234, %c9_235] : memref<5x12xf32, #tpu.memory_space<smem>>
    %c4_236 = arith.constant 4 : index
    %c10_237 = arith.constant 10 : index
    %509 = memref.load %arg1[%c4_236, %c10_237] : memref<5x12xf32, #tpu.memory_space<smem>>
    %c4_238 = arith.constant 4 : index
    %c11_239 = arith.constant 11 : index
    %510 = memref.load %arg1[%c4_238, %c11_239] : memref<5x12xf32, #tpu.memory_space<smem>>
    %511 = vector.broadcast %508 : f32 to vector<8x128xf32>
    %512 = arith.subf %1, %511 : vector<8x128xf32>
    %513 = vector.broadcast %509 : f32 to vector<8x128xf32>
    %514 = arith.subf %3, %513 : vector<8x128xf32>
    %515 = vector.broadcast %510 : f32 to vector<8x128xf32>
    %516 = arith.subf %5, %515 : vector<8x128xf32>
    %517 = arith.mulf %512, %512 : vector<8x128xf32>
    %518 = arith.mulf %514, %514 : vector<8x128xf32>
    %519 = arith.addf %517, %518 : vector<8x128xf32>
    %520 = arith.mulf %516, %516 : vector<8x128xf32>
    %521 = arith.addf %519, %520 : vector<8x128xf32>
    %522 = math.sqrt %521 : vector<8x128xf32>
    %cst_240 = arith.constant 1.66666663 : f32
    %523 = vector.broadcast %cst_240 : f32 to vector<8x128xf32>
    %524 = arith.mulf %522, %523 : vector<8x128xf32>
    %cst_241 = arith.constant 1.000000e+00 : f32
    %525 = vector.broadcast %cst_241 : f32 to vector<8x128xf32>
    %526 = arith.subf %525, %524 : vector<8x128xf32>
    %cst_242 = arith.constant 0.000000e+00 : f32
    %527 = vector.broadcast %cst_242 : f32 to vector<8x128xf32>
    %528 = arith.maximumf %526, %527 : vector<8x128xf32>
    %529 = vector.shape_cast %528 : vector<8x128xf32> to vector<8x1x128xf32>
    %530 = vector.broadcast %529 : vector<8x1x128xf32> to vector<8x8x128xf32>
    %531 = arith.mulf %403, %530 : vector<8x8x128xf32>
    %cst_243 = arith.constant dense<0.000000e+00> : vector<8x128xf32>
    %532 = vector.multi_reduction <add>, %531, %cst_243 [0] : vector<8x8x128xf32> to vector<8x128xf32>
    %c32_244 = arith.constant 32 : index
    %c384_245 = arith.constant 384 : index
    %533 = vector.load %arg6[%c32_244, %c384_245] : memref<40x512xf32, #tpu.memory_space<vmem>>, vector<8x128xf32>
    tpu.vector_store %arg6[%c32_244, %c384_245], %532 {strides = array<i32>} : memref<40x512xf32, #tpu.memory_space<vmem>>, vector<8x128xf32>,
    %c0_246 = arith.constant 0 : index
    %c0_247 = arith.constant 0 : index
    %534 = vector.load %arg4[%c0_246, %c0_247] : memref<16x40xf32, #tpu.memory_space<vmem>>, vector<16x40xf32>
    %c0_248 = arith.constant 0 : index
    %c0_249 = arith.constant 0 : index
    %535 = vector.load %arg6[%c0_248, %c0_249] : memref<40x512xf32, #tpu.memory_space<vmem>>, vector<40x512xf32>
    %cst_250 = arith.constant dense<0.000000e+00> : vector<16x512xf32>
    %536 = tpu.matmul %534, %535, %cst_250 {dimension_numbers = #tpu.dot_dimension_numbers<[1], [0], [0], [1], [0, 0, 1, 1], [], []>} : vector<16x40xf32>, vector<40x512xf32>, vector<16x512xf32> -> vector<16x512xf32>
    %c0_251 = arith.constant 0 : index
    %c0_252 = arith.constant 0 : index
    %c0_253 = arith.constant 0 : index
    %537 = vector.load %arg5[%c0_251, %c0_252, %c0_253] : memref<1x16x512xf32, #tpu.memory_space<vmem>>, vector<1x16x512xf32>
    %538 = vector.shape_cast %537 : vector<1x16x512xf32> to vector<16x512xf32>
    %539 = vector.shape_cast %536 : vector<16x512xf32> to vector<1x16x512xf32>
    tpu.vector_store %arg5[%c0_251, %c0_252, %c0_253], %539 {strides = array<i32>} : memref<1x16x512xf32, #tpu.memory_space<vmem>>, vector<1x16x512xf32>,
    return
  }
  func.func @transform_0(%arg0: i32) -> (i32, i32) {
    %c0_i32 = arith.constant 0 : i32
    %c0_i32_0 = arith.constant 0 : i32
    %c0_i32_1 = arith.constant 0 : i32
    return %c0_i32, %c0_i32_0 : i32, i32
  }
  func.func @transform_1(%arg0: i32) -> (i32, i32, i32) {
    %c0_i32 = arith.constant 0 : i32
    %c0_i32_0 = arith.constant 0 : i32
    %c0_i32_1 = arith.constant 0 : i32
    return %c0_i32, %c0_i32_0, %arg0 : i32, i32, i32
  }
  func.func @transform_2(%arg0: i32) -> (i32, i32, i32, i32) {
    %c0_i32 = arith.constant 0 : i32
    %c0_i32_0 = arith.constant 0 : i32
    %c0_i32_1 = arith.constant 0 : i32
    %c0_i32_2 = arith.constant 0 : i32
    return %c0_i32, %c0_i32_0, %c0_i32_1, %arg0 : i32, i32, i32, i32
  }
  func.func @transform_3(%arg0: i32) -> (i32, i32) {
    %c0_i32 = arith.constant 0 : i32
    %c0_i32_0 = arith.constant 0 : i32
    %c0_i32_1 = arith.constant 0 : i32
    return %c0_i32, %c0_i32_0 : i32, i32
  }
  func.func @transform_4(%arg0: i32) -> (i32, i32, i32) {
    %c0_i32 = arith.constant 0 : i32
    %c0_i32_0 = arith.constant 0 : i32
    %c0_i32_1 = arith.constant 0 : i32
    return %arg0, %c0_i32, %c0_i32_0 : i32, i32, i32
  }
}

</mosaic_0001>

<llo_original>
// kernel: tpu_custom_call.1
$region0: #{tpu_custom_call.1}
  #allocation0 [shape = 'u32[]', space=smem, size = 0x4, offset = 0x4, fixed_abs, tag = 'smem constant byte address 0x4 - core index']
  #allocation1 [shape = 'u32[144,128]{1,0:T(1,128)}', space=vmem, size = 0x12000, scoped, tag = 'internal scratch']
  #allocation2 [shape = 'f32[40,512]{1,0:T(8,128)}', space=vmem, size = 0x14000, scoped, tag = 'scratch operand']
  %s0 = inlined_call_operand.hbm [shape: f32[5,12], index: 0, kind: input, shape index: {}]
  %s1 = inlined_call_operand.hbm [shape: f32[3,8,128], index: 1, kind: input, shape index: {}]
  %s2 = inlined_call_operand.hbm [shape: f32[4,8,8,128], index: 2, kind: input, shape index: {}]
  %s3 = inlined_call_operand.hbm [shape: f32[16,40], index: 3, kind: input, shape index: {}]
  %s4 = inlined_call_operand.hbm [shape: f32[1,16,512], index: 4, kind: output, shape index: {}]
  %s5 = sld [smem:[#allocation0]]
  $region42: #{tpu_custom_call.1} parent=0
    _
  %s7 = ssub.s32 1, %s5
  %s8 = scalar_select 0, %s7, %s5
  $region1: #{tpu_custom_call.1} parent=0
    #allocation3 [shape = 'u8[4096]{0}', space=smem, size = 0x1000, scoped, tag = 'input window, operand 0, single buffered']
    #allocation4 [shape = 's32[1]{0}', space=sflag, size = 0x4, scoped, tag = 'scoped memory for tpu_custom_call.1']
    #allocation5 [shape = 's32[1]{0}', space=sflag, size = 0x4, scoped, tag = 'scoped memory for tpu_custom_call.1']
    #allocation6 [shape = 's32[1]{0}', space=sflag, size = 0x4, scoped, tag = 'scoped memory for tpu_custom_call.1']
    #allocation7 [shape = 'u8[12288]{0}', space=vmem, size = 0x3000, scoped, tag = 'input window, operand 1, single buffered']
    #allocation8 [shape = 'u8[131072]{0}', space=vmem, size = 0x20000, scoped, tag = 'input window, operand 2, single buffered']
    #allocation9 [shape = 's32[1]{0}', space=sflag, size = 0x4, scoped, tag = 'scoped memory for tpu_custom_call.1']
    #allocation10 [shape = 'u8[8192]{0}', space=vmem, size = 0x2000, scoped, tag = 'input window, operand 3, single buffered']
    #allocation11 [shape = 'u8[32768]{0}', space=vmem, size = 0x8000, scoped, tag = 'output window, operand 0, single buffered']
    %9 = vsyncpa [#allocation6], 0
    %10 = vsyncpa [#allocation4], 0
    %11 = vsyncpa [#allocation9], 0
    %12 = vsyncpa [#allocation5], 0
    // Predicated region
    $region2: #{tpu_custom_call.1} parent=1 // pred_check
      _
    $region3: #{tpu_custom_call.1} parent=1 // pred_check_branch
      %14 = sbr.rel (0) target = $region5
    $region4: #{tpu_custom_call.1} parent=1 // pred_region
      %s16 = ssub.s32 128, 128
      %17 = vsyncadd [#allocation6], %s16
      %20 = dma.hbm_to_smem %s0, 128, [#allocation3], [#allocation6]
    $region5: #{tpu_custom_call.1} parent=1 // pred_fallthru
      _
    // Predicated region
    $region6: #{tpu_custom_call.1} parent=1 // pred_check
      _
    $region7: #{tpu_custom_call.1} parent=1 // pred_check_branch
      %22 = sbr.rel (0) target = $region9
    $region8: #{tpu_custom_call.1} parent=1 // pred_region
      %s24 = ssub.s32 384, 384
      %25 = vsyncadd [#allocation4], %s24
      %s26 = sshll.u32 [#allocation7], 4
      %s27 = int_to_ptr.vmem [resolvable:$true] %s26
      %32 = dma.hbm_to_vmem [thread:$0]  %s1, 384, %s27, [#allocation4], 128, 128, 8
    $region9: #{tpu_custom_call.1} parent=1 // pred_fallthru
      _
    // Predicated region
    $region10: #{tpu_custom_call.1} parent=1 // pred_check
      _
    $region11: #{tpu_custom_call.1} parent=1 // pred_check_branch
      %34 = sbr.rel (0) target = $region13
    $region12: #{tpu_custom_call.1} parent=1 // pred_region
      %s36 = ssub.s32 4096, 4096
      %37 = vsyncadd [#allocation9], %s36
      %s38 = sshll.u32 [#allocation8], 4
      %s39 = int_to_ptr.vmem [resolvable:$true] %s38
      %44 = dma.hbm_to_vmem [thread:$0]  %s2, 4096, %s39, [#allocation9], 128, 128, 8
    $region13: #{tpu_custom_call.1} parent=1 // pred_fallthru
      _
    // Predicated region
    $region14: #{tpu_custom_call.1} parent=1 // pred_check
      _
    $region15: #{tpu_custom_call.1} parent=1 // pred_check_branch
      %46 = sbr.rel (0) target = $region17
    $region16: #{tpu_custom_call.1} parent=1 // pred_region
      %s48 = ssub.s32 256, 256
      %49 = vsyncadd [#allocation9], %s48
      %s50 = sshll.u32 [#allocation10], 4
      %s51 = int_to_ptr.vmem [resolvable:$true] %s50
      %56 = dma.hbm_to_vmem [thread:$0]  %s3, 256, %s51, [#allocation9], 128, 128, 8
    $region17: #{tpu_custom_call.1} parent=1 // pred_fallthru
      _
    // Predicated region
    $region18: #{tpu_custom_call.1} parent=1 // pred_check
      _
    $region19: #{tpu_custom_call.1} parent=1 // pred_check_branch
      %58 = sbr.rel (0) target = $region21
    $region20: #{tpu_custom_call.1} parent=1 // pred_region
      %59 = dma.done [#allocation6], 128
    $region21: #{tpu_custom_call.1} parent=1 // pred_fallthru
      _
    // Predicated region
    $region22: #{tpu_custom_call.1} parent=1 // pred_check
      _
    $region23: #{tpu_custom_call.1} parent=1 // pred_check_branch
      %61 = sbr.rel (0) target = $region25
    $region24: #{tpu_custom_call.1} parent=1 // pred_region
      %62 = dma.done [#allocation4], 384
    $region25: #{tpu_custom_call.1} parent=1 // pred_fallthru
      _
    // Predicated region
    $region26: #{tpu_custom_call.1} parent=1 // pred_check
      _
    $region27: #{tpu_custom_call.1} parent=1 // pred_check_branch
      %64 = sbr.rel (0) target = $region29
    $region28: #{tpu_custom_call.1} parent=1 // pred_region
      %65 = dma.done [#allocation9], 4096
    $region29: #{tpu_custom_call.1} parent=1 // pred_fallthru
      _
    // Predicated region
    $region30: #{tpu_custom_call.1} parent=1 // pred_check
      _
    $region31: #{tpu_custom_call.1} parent=1 // pred_check_branch
      %67 = sbr.rel (0) target = $region33
    $region32: #{tpu_custom_call.1} parent=1 // pred_region
      %68 = dma.done [#allocation9], 256
    $region33: #{tpu_custom_call.1} parent=1 // pred_fallthru
      _
    %69 = sfence
    %v70 = vld [vmem:[#allocation7] sm:$0xff]
    %s71 = scalar_lea.vmem [#allocation7], 8
    %v72 = vld [vmem:[%s71] sm:$0xff]
    %s73 = scalar_lea.vmem [#allocation7], 16
    %v74 = vld [vmem:[%s73] sm:$0xff]
    %v75 = vld [vmem:[#allocation8] sm:$0xff]
    %v76 = vld [vmem:[#allocation8 + $0x8] sm:$0xff]
    %v77 = vld [vmem:[#allocation8 + $0x10] sm:$0xff]
    %v78 = vld [vmem:[#allocation8 + $0x18] sm:$0xff]
    %v79 = vld [vmem:[#allocation8 + $0x20] sm:$0xff]
    %v80 = vld [vmem:[#allocation8 + $0x28] sm:$0xff]
    %v81 = vld [vmem:[#allocation8 + $0x30] sm:$0xff]
    %v82 = vld [vmem:[#allocation8 + $0x38] sm:$0xff]
    %s83 = sld [smem:[#allocation3]]
    %s84 = sld [smem:[#allocation3 + $0x1]]
    %s85 = sld [smem:[#allocation3 + $0x2]]
    %v86 = vstv %s83
    %v87 = vsub.f32 %v70, %v86
    %v88 = vstv %s84
    %v89 = vsub.f32 %v72, %v88
    %v90 = vstv %s85
    %v91 = vsub.f32 %v74, %v90
    %v92 = vmul.f32 %v87, %v87
    %v93 = vmul.f32 %v89, %v89
    %v94 = vadd.f32 %v92, %v93
    %v95 = vmul.f32 %v91, %v91
    %v96 = vadd.f32 %v94, %v95
    %v97 = vrsqrt.pop %v96
    %v98 = vmul.f32 %v96, %v97
    %vm99 = vcmp.eq.f32.partialorder %v96, inf
    %v100 = vsel %vm99, %v96, %v98
    %vm101 = vcmp.eq.f32.partialorder %v96, 0.0
    %v102 = vand.u32 %v96, 2147483648
    %v103 = vsel %vm101, %v102, %v100
    %v104 = vmul.f32 %v103, 1.6666666
    %v105 = vsub.f32 1.0, %v104
    %v106 = vmax.f32 %v105, 0.0
    %v108 = vcombine.high %v106, %v106
    %v110 = vunpack.c.l.s4 1966171168
    %v111 = vunpack.c.0.s8 %v110
    %v112 = vlaneseq
    %v113 = vshrl.u32 %v112, 7
    %v114 = vsub.s32 %v111, %v113
    %v115 = vrot.slane %v106, %v114
    %v117 = vunpack.c.l.s4 1966171168
    %v118 = vunpack.c.0.s8 %v117
    %v119 = vlaneseq
    %v120 = vshrl.u32 %v119, 7
    %v121 = vsub.s32 %v118, %v120
    %v122 = vrot.slane %v108, %v121
    %v123 = vcombine.high %v115, %v115
    %v124 = vcombine.high %v122, %v122
    %v126 = vunpack.c.l.s4 1966171168
    %v127 = vunpack.c.0.s8 %v126
    %v128 = vlaneseq
    %v129 = vshrl.u32 %v128, 7
    %v130 = vsub.s32 %v127, %v129
    %v131 = vrot.slane %v115, %v130
    %v133 = vunpack.c.l.s4 1966171168
    %v134 = vunpack.c.0.s8 %v133
    %v135 = vlaneseq
    %v136 = vshrl.u32 %v135, 7
    %v137 = vsub.s32 %v134, %v136
    %v138 = vrot.slane %v122, %v137
    %v140 = vunpack.c.l.s4 1966171168
    %v141 = vunpack.c.0.s8 %v140
    %v142 = vlaneseq
    %v143 = vshrl.u32 %v142, 7
    %v144 = vsub.s32 %v141, %v143
    %v145 = vrot.slane %v123, %v144
    %v147 = vunpack.c.l.s4 1966171168
    %v148 = vunpack.c.0.s8 %v147
    %v149 = vlaneseq
    %v150 = vshrl.u32 %v149, 7
    %v151 = vsub.s32 %v148, %v150
    %v152 = vrot.slane %v124, %v151
    %v153 = vcombine.high %v131, %v131
    %v154 = vcombine.high %v138, %v138
    %v155 = vcombine.high %v145, %v145
    %v156 = vcombine.high %v152, %v152
    %v157 = vlaneseq
    %v158 = vshrl.u32 %v157, 7
    %v159 = vsub.s32 0, %v158
    %v160 = vrot.slane %v131, %v159
    %v161 = vlaneseq
    %v162 = vshrl.u32 %v161, 7
    %v163 = vsub.s32 0, %v162
    %v164 = vrot.slane %v145, %v163
    %v165 = vlaneseq
    %v166 = vshrl.u32 %v165, 7
    %v167 = vsub.s32 0, %v166
    %v168 = vrot.slane %v153, %v167
    %v169 = vlaneseq
    %v170 = vshrl.u32 %v169, 7
    %v171 = vsub.s32 0, %v170
    %v172 = vrot.slane %v155, %v171
    %v173 = vlaneseq
    %v174 = vshrl.u32 %v173, 7
    %v175 = vsub.s32 0, %v174
    %v176 = vrot.slane %v138, %v175
    %v177 = vlaneseq
    %v178 = vshrl.u32 %v177, 7
    %v179 = vsub.s32 0, %v178
    %v180 = vrot.slane %v152, %v179
    %v181 = vlaneseq
    %v182 = vshrl.u32 %v181, 7
    %v183 = vsub.s32 0, %v182
    %v184 = vrot.slane %v154, %v183
    %v185 = vlaneseq
    %v186 = vshrl.u32 %v185, 7
    %v187 = vsub.s32 0, %v186
    %v188 = vrot.slane %v156, %v187
    %v197 = vmul.f32 %v75, %v160
    %v198 = vmul.f32 %v76, %v164
    %v199 = vmul.f32 %v77, %v168
    %v200 = vmul.f32 %v78, %v172
    %v201 = vmul.f32 %v79, %v176
    %v202 = vmul.f32 %v80, %v180
    %v203 = vmul.f32 %v81, %v184
    %v204 = vmul.f32 %v82, %v188
    %v205 = vadd.f32 %v197, %v198
    %v206 = vadd.f32 %v205, %v199
    %v207 = vadd.f32 %v206, %v200
    %v208 = vadd.f32 %v207, %v201
    %v209 = vadd.f32 %v208, %v202
    %v210 = vadd.f32 %v209, %v203
    %v211 = vadd.f32 %v210, %v204
    %212 = vst [vmem:[#allocation2] sm:$0xff] %v211
    %s213 = sld [smem:[#allocation3 + $0x80]]
    %s214 = sld [smem:[#allocation3 + $0x81]]
    %s215 = sld [smem:[#allocation3 + $0x82]]
    %v216 = vstv %s213
    %v217 = vsub.f32 %v70, %v216
    %v218 = vstv %s214
    %v219 = vsub.f32 %v72, %v218
    %v220 = vstv %s215
    %v221 = vsub.f32 %v74, %v220
    %v222 = vmul.f32 %v217, %v217
    %v223 = vmul.f32 %v219, %v219
    %v224 = vadd.f32 %v222, %v223
    %v225 = vmul.f32 %v221, %v221
    %v226 = vadd.f32 %v224, %v225
    %v227 = vrsqrt.pop %v226
    %v228 = vmul.f32 %v226, %v227
    %vm229 = vcmp.eq.f32.partialorder %v226, inf
    %v230 = vsel %vm229, %v226, %v228
    %vm231 = vcmp.eq.f32.partialorder %v226, 0.0
    %v232 = vand.u32 %v226, 2147483648
    %v233 = vsel %vm231, %v232, %v230
    %v234 = vmul.f32 %v233, 1.6666666
    %v235 = vsub.f32 1.0, %v234
    %v236 = vmax.f32 %v235, 0.0
    %v238 = vcombine.high %v236, %v236
    %v240 = vunpack.c.l.s4 1966171168
    %v241 = vunpack.c.0.s8 %v240
    %v242 = vlaneseq
    %v243 = vshrl.u32 %v242, 7
    %v244 = vsub.s32 %v241, %v243
    %v245 = vrot.slane %v236, %v244
    %v247 = vunpack.c.l.s4 1966171168
    %v248 = vunpack.c.0.s8 %v247
    %v249 = vlaneseq
    %v250 = vshrl.u32 %v249, 7
    %v251 = vsub.s32 %v248, %v250
    %v252 = vrot.slane %v238, %v251
    %v253 = vcombine.high %v245, %v245
    %v254 = vcombine.high %v252, %v252
    %v256 = vunpack.c.l.s4 1966171168
    %v257 = vunpack.c.0.s8 %v256
    %v258 = vlaneseq
    %v259 = vshrl.u32 %v258, 7
    %v260 = vsub.s32 %v257, %v259
    %v261 = vrot.slane %v245, %v260
    %v263 = vunpack.c.l.s4 1966171168
    %v264 = vunpack.c.0.s8 %v263
    %v265 = vlaneseq
    %v266 = vshrl.u32 %v265, 7
    %v267 = vsub.s32 %v264, %v266
    %v268 = vrot.slane %v252, %v267
    %v270 = vunpack.c.l.s4 1966171168
    %v271 = vunpack.c.0.s8 %v270
    %v272 = vlaneseq
    %v273 = vshrl.u32 %v272, 7
    %v274 = vsub.s32 %v271, %v273
    %v275 = vrot.slane %v253, %v274
    %v277 = vunpack.c.l.s4 1966171168
    %v278 = vunpack.c.0.s8 %v277
    %v279 = vlaneseq
    %v280 = vshrl.u32 %v279, 7
    %v281 = vsub.s32 %v278, %v280
    %v282 = vrot.slane %v254, %v281
    %v283 = vcombine.high %v261, %v261
    %v284 = vcombine.high %v268, %v268
    %v285 = vcombine.high %v275, %v275
    %v286 = vcombine.high %v282, %v282
    %v287 = vlaneseq
    %v288 = vshrl.u32 %v287, 7
    %v289 = vsub.s32 0, %v288
    %v290 = vrot.slane %v261, %v289
    %v291 = vlaneseq
    %v292 = vshrl.u32 %v291, 7
    %v293 = vsub.s32 0, %v292
    %v294 = vrot.slane %v275, %v293
    %v295 = vlaneseq
    %v296 = vshrl.u32 %v295, 7
    %v297 = vsub.s32 0, %v296
    %v298 = vrot.slane %v283, %v297
    %v299 = vlaneseq
    %v300 = vshrl.u32 %v299, 7
    %v301 = vsub.s32 0, %v300
    %v302 = vrot.slane %v285, %v301
    %v303 = vlaneseq
    %v304 = vshrl.u32 %v303, 7
    %v305 = vsub.s32 0, %v304
    %v306 = vrot.slane %v268, %v305
    %v307 = vlaneseq
    %v308 = vshrl.u32 %v307, 7
    %v309 = vsub.s32 0, %v308
    %v310 = vrot.slane %v282, %v309
    %v311 = vlaneseq
    %v312 = vshrl.u32 %v311, 7
    %v313 = vsub.s32 0, %v312
    %v314 = vrot.slane %v284, %v313
    %v315 = vlaneseq
    %v316 = vshrl.u32 %v315, 7
    %v317 = vsub.s32 0, %v316
    %v318 = vrot.slane %v286, %v317
    %v327 = vmul.f32 %v75, %v290
    %v328 = vmul.f32 %v76, %v294
    %v329 = vmul.f32 %v77, %v298
    %v330 = vmul.f32 %v78, %v302
    %v331 = vmul.f32 %v79, %v306
    %v332 = vmul.f32 %v80, %v310
    %v333 = vmul.f32 %v81, %v314
    %v334 = vmul.f32 %v82, %v318
    %v335 = vadd.f32 %v327, %v328
    %v336 = vadd.f32 %v335, %v329
    %v337 = vadd.f32 %v336, %v330
    %v338 = vadd.f32 %v337, %v331
    %v339 = vadd.f32 %v338, %v332
    %v340 = vadd.f32 %v339, %v333
    %v341 = vadd.f32 %v340, %v334
    %342 = vst [vmem:[#allocation2 + $0x20] sm:$0xff] %v341
    %s343 = sld [smem:[#allocation3 + $0x100]]
    %s344 = sld [smem:[#allocation3 + $0x101]]
    %s345 = sld [smem:[#allocation3 + $0x102]]
    %v346 = vstv %s343
    %v347 = vsub.f32 %v70, %v346
    %v348 = vstv %s344
    %v349 = vsub.f32 %v72, %v348
    %v350 = vstv %s345
    %v351 = vsub.f32 %v74, %v350
    %v352 = vmul.f32 %v347, %v347
    %v353 = vmul.f32 %v349, %v349
    %v354 = vadd.f32 %v352, %v353
    %v355 = vmul.f32 %v351, %v351
    %v356 = vadd.f32 %v354, %v355
    %v357 = vrsqrt.pop %v356
    %v358 = vmul.f32 %v356, %v357
    %vm359 = vcmp.eq.f32.partialorder %v356, inf
    %v360 = vsel %vm359, %v356, %v358
    %vm361 = vcmp.eq.f32.partialorder %v356, 0.0
    %v362 = vand.u32 %v356, 2147483648
    %v363 = vsel %vm361, %v362, %v360
    %v364 = vmul.f32 %v363, 1.6666666
    %v365 = vsub.f32 1.0, %v364
    %v366 = vmax.f32 %v365, 0.0
    %v368 = vcombine.high %v366, %v366
    %v370 = vunpack.c.l.s4 1966171168
    %v371 = vunpack.c.0.s8 %v370
    %v372 = vlaneseq
    %v373 = vshrl.u32 %v372, 7
    %v374 = vsub.s32 %v371, %v373
    %v375 = vrot.slane %v366, %v374
    %v377 = vunpack.c.l.s4 1966171168
    %v378 = vunpack.c.0.s8 %v377
    %v379 = vlaneseq
    %v380 = vshrl.u32 %v379, 7
    %v381 = vsub.s32 %v378, %v380
    %v382 = vrot.slane %v368, %v381
    %v383 = vcombine.high %v375, %v375
    %v384 = vcombine.high %v382, %v382
    %v386 = vunpack.c.l.s4 1966171168
    %v387 = vunpack.c.0.s8 %v386
    %v388 = vlaneseq
    %v389 = vshrl.u32 %v388, 7
    %v390 = vsub.s32 %v387, %v389
    %v391 = vrot.slane %v375, %v390
    %v393 = vunpack.c.l.s4 1966171168
    %v394 = vunpack.c.0.s8 %v393
    %v395 = vlaneseq
    %v396 = vshrl.u32 %v395, 7
    %v397 = vsub.s32 %v394, %v396
    %v398 = vrot.slane %v382, %v397
    %v400 = vunpack.c.l.s4 1966171168
    %v401 = vunpack.c.0.s8 %v400
    %v402 = vlaneseq
    %v403 = vshrl.u32 %v402, 7
    %v404 = vsub.s32 %v401, %v403
    %v405 = vrot.slane %v383, %v404
    %v407 = vunpack.c.l.s4 1966171168
    %v408 = vunpack.c.0.s8 %v407
    %v409 = vlaneseq
    %v410 = vshrl.u32 %v409, 7
    %v411 = vsub.s32 %v408, %v410
    %v412 = vrot.slane %v384, %v411
    %v413 = vcombine.high %v391, %v391
    %v414 = vcombine.high %v398, %v398
    %v415 = vcombine.high %v405, %v405
    %v416 = vcombine.high %v412, %v412
    %v417 = vlaneseq
    %v418 = vshrl.u32 %v417, 7
    %v419 = vsub.s32 0, %v418
    %v420 = vrot.slane %v391, %v419
    %v421 = vlaneseq
    %v422 = vshrl.u32 %v421, 7
    %v423 = vsub.s32 0, %v422
    %v424 = vrot.slane %v405, %v423
    %v425 = vlaneseq
    %v426 = vshrl.u32 %v425, 7
    %v427 = vsub.s32 0, %v426
    %v428 = vrot.slane %v413, %v427
    %v429 = vlaneseq
    %v430 = vshrl.u32 %v429, 7
    %v431 = vsub.s32 0, %v430
    %v432 = vrot.slane %v415, %v431
    %v433 = vlaneseq
    %v434 = vshrl.u32 %v433, 7
    %v435 = vsub.s32 0, %v434
    %v436 = vrot.slane %v398, %v435
    %v437 = vlaneseq
    %v438 = vshrl.u32 %v437, 7
    %v439 = vsub.s32 0, %v438
    %v440 = vrot.slane %v412, %v439
    %v441 = vlaneseq
    %v442 = vshrl.u32 %v441, 7
    %v443 = vsub.s32 0, %v442
    %v444 = vrot.slane %v414, %v443
    %v445 = vlaneseq
    %v446 = vshrl.u32 %v445, 7
    %v447 = vsub.s32 0, %v446
    %v448 = vrot.slane %v416, %v447
    %v457 = vmul.f32 %v75, %v420
    %v458 = vmul.f32 %v76, %v424
    %v459 = vmul.f32 %v77, %v428
    %v460 = vmul.f32 %v78, %v432
    %v461 = vmul.f32 %v79, %v436
    %v462 = vmul.f32 %v80, %v440
    %v463 = vmul.f32 %v81, %v444
    %v464 = vmul.f32 %v82, %v448
    %v465 = vadd.f32 %v457, %v458
    %v466 = vadd.f32 %v465, %v459
    %v467 = vadd.f32 %v466, %v460
    %v468 = vadd.f32 %v467, %v461
    %v469 = vadd.f32 %v468, %v462
    %v470 = vadd.f32 %v469, %v463
    %v471 = vadd.f32 %v470, %v464
    %472 = vst [vmem:[#allocation2 + $0x40] sm:$0xff] %v471
    %s473 = sld [smem:[#allocation3 + $0x180]]
    %s474 = sld [smem:[#allocation3 + $0x181]]
    %s475 = sld [smem:[#allocation3 + $0x182]]
    %v476 = vstv %s473
    %v477 = vsub.f32 %v70, %v476
    %v478 = vstv %s474
    %v479 = vsub.f32 %v72, %v478
    %v480 = vstv %s475
    %v481 = vsub.f32 %v74, %v480
    %v482 = vmul.f32 %v477, %v477
    %v483 = vmul.f32 %v479, %v479
    %v484 = vadd.f32 %v482, %v483
    %v485 = vmul.f32 %v481, %v481
    %v486 = vadd.f32 %v484, %v485
    %v487 = vrsqrt.pop %v486
    %v488 = vmul.f32 %v486, %v487
    %vm489 = vcmp.eq.f32.partialorder %v486, inf
    %v490 = vsel %vm489, %v486, %v488
    %vm491 = vcmp.eq.f32.partialorder %v486, 0.0
    %v492 = vand.u32 %v486, 2147483648
    %v493 = vsel %vm491, %v492, %v490
    %v494 = vmul.f32 %v493, 1.6666666
    %v495 = vsub.f32 1.0, %v494
    %v496 = vmax.f32 %v495, 0.0
    %v498 = vcombine.high %v496, %v496
    %v500 = vunpack.c.l.s4 1966171168
    %v501 = vunpack.c.0.s8 %v500
    %v502 = vlaneseq
    %v503 = vshrl.u32 %v502, 7
    %v504 = vsub.s32 %v501, %v503
    %v505 = vrot.slane %v496, %v504
    %v507 = vunpack.c.l.s4 1966171168
    %v508 = vunpack.c.0.s8 %v507
    %v509 = vlaneseq
    %v510 = vshrl.u32 %v509, 7
    %v511 = vsub.s32 %v508, %v510
    %v512 = vrot.slane %v498, %v511
    %v513 = vcombine.high %v505, %v505
    %v514 = vcombine.high %v512, %v512
    %v516 = vunpack.c.l.s4 1966171168
    %v517 = vunpack.c.0.s8 %v516
    %v518 = vlaneseq
    %v519 = vshrl.u32 %v518, 7
    %v520 = vsub.s32 %v517, %v519
    %v521 = vrot.slane %v505, %v520
    %v523 = vunpack.c.l.s4 1966171168
    %v524 = vunpack.c.0.s8 %v523
    %v525 = vlaneseq
    %v526 = vshrl.u32 %v525, 7
    %v527 = vsub.s32 %v524, %v526
    %v528 = vrot.slane %v512, %v527
    %v530 = vunpack.c.l.s4 1966171168
    %v531 = vunpack.c.0.s8 %v530
    %v532 = vlaneseq
    %v533 = vshrl.u32 %v532, 7
    %v534 = vsub.s32 %v531, %v533
    %v535 = vrot.slane %v513, %v534
    %v537 = vunpack.c.l.s4 1966171168
    %v538 = vunpack.c.0.s8 %v537
    %v539 = vlaneseq
    %v540 = vshrl.u32 %v539, 7
    %v541 = vsub.s32 %v538, %v540
    %v542 = vrot.slane %v514, %v541
    %v543 = vcombine.high %v521, %v521
    %v544 = vcombine.high %v528, %v528
    %v545 = vcombine.high %v535, %v535
    %v546 = vcombine.high %v542, %v542
    %v547 = vlaneseq
    %v548 = vshrl.u32 %v547, 7
    %v549 = vsub.s32 0, %v548
    %v550 = vrot.slane %v521, %v549
    %v551 = vlaneseq
    %v552 = vshrl.u32 %v551, 7
    %v553 = vsub.s32 0, %v552
    %v554 = vrot.slane %v535, %v553
    %v555 = vlaneseq
    %v556 = vshrl.u32 %v555, 7
    %v557 = vsub.s32 0, %v556
    %v558 = vrot.slane %v543, %v557
    %v559 = vlaneseq
    %v560 = vshrl.u32 %v559, 7
    %v561 = vsub.s32 0, %v560
    %v562 = vrot.slane %v545, %v561
    %v563 = vlaneseq
    %v564 = vshrl.u32 %v563, 7
    %v565 = vsub.s32 0, %v564
    %v566 = vrot.slane %v528, %v565
    %v567 = vlaneseq
    %v568 = vshrl.u32 %v567, 7
    %v569 = vsub.s32 0, %v568
    %v570 = vrot.slane %v542, %v569
    %v571 = vlaneseq
    %v572 = vshrl.u32 %v571, 7
    %v573 = vsub.s32 0, %v572
    %v574 = vrot.slane %v544, %v573
    %v575 = vlaneseq
    %v576 = vshrl.u32 %v575, 7
    %v577 = vsub.s32 0, %v576
    %v578 = vrot.slane %v546, %v577
    %v587 = vmul.f32 %v75, %v550
    %v588 = vmul.f32 %v76, %v554
    %v589 = vmul.f32 %v77, %v558
    %v590 = vmul.f32 %v78, %v562
    %v591 = vmul.f32 %v79, %v566
    %v592 = vmul.f32 %v80, %v570
    %v593 = vmul.f32 %v81, %v574
    %v594 = vmul.f32 %v82, %v578
    %v595 = vadd.f32 %v587, %v588
    %v596 = vadd.f32 %v595, %v589
    %v597 = vadd.f32 %v596, %v590
    %v598 = vadd.f32 %v597, %v591
    %v599 = vadd.f32 %v598, %v592
    %v600 = vadd.f32 %v599, %v593
    %v601 = vadd.f32 %v600, %v594
    %602 = vst [vmem:[#allocation2 + $0x60] sm:$0xff] %v601
    %s603 = sld [smem:[#allocation3 + $0x200]]
    %s604 = sld [smem:[#allocation3 + $0x201]]
    %s605 = sld [smem:[#allocation3 + $0x202]]
    %v606 = vstv %s603
    %v607 = vsub.f32 %v70, %v606
    %v608 = vstv %s604
    %v609 = vsub.f32 %v72, %v608
    %v610 = vstv %s605
    %v611 = vsub.f32 %v74, %v610
    %v612 = vmul.f32 %v607, %v607
    %v613 = vmul.f32 %v609, %v609
    %v614 = vadd.f32 %v612, %v613
    %v615 = vmul.f32 %v611, %v611
    %v616 = vadd.f32 %v614, %v615
    %v617 = vrsqrt.pop %v616
    %v618 = vmul.f32 %v616, %v617
    %vm619 = vcmp.eq.f32.partialorder %v616, inf
    %v620 = vsel %vm619, %v616, %v618
    %vm621 = vcmp.eq.f32.partialorder %v616, 0.0
    %v622 = vand.u32 %v616, 2147483648
    %v623 = vsel %vm621, %v622, %v620
    %v624 = vmul.f32 %v623, 1.6666666
    %v625 = vsub.f32 1.0, %v624
    %v626 = vmax.f32 %v625, 0.0
    %v628 = vcombine.high %v626, %v626
    %v630 = vunpack.c.l.s4 1966171168
    %v631 = vunpack.c.0.s8 %v630
    %v632 = vlaneseq
    %v633 = vshrl.u32 %v632, 7
    %v634 = vsub.s32 %v631, %v633
    %v635 = vrot.slane %v626, %v634
    %v637 = vunpack.c.l.s4 1966171168
    %v638 = vunpack.c.0.s8 %v637
    %v639 = vlaneseq
    %v640 = vshrl.u32 %v639, 7
    %v641 = vsub.s32 %v638, %v640
    %v642 = vrot.slane %v628, %v641
    %v643 = vcombine.high %v635, %v635
    %v644 = vcombine.high %v642, %v642
    %v646 = vunpack.c.l.s4 1966171168
    %v647 = vunpack.c.0.s8 %v646
    %v648 = vlaneseq
    %v649 = vshrl.u32 %v648, 7
    %v650 = vsub.s32 %v647, %v649
    %v651 = vrot.slane %v635, %v650
    %v653 = vunpack.c.l.s4 1966171168
    %v654 = vunpack.c.0.s8 %v653
    %v655 = vlaneseq
    %v656 = vshrl.u32 %v655, 7
    %v657 = vsub.s32 %v654, %v656
    %v658 = vrot.slane %v642, %v657
    %v660 = vunpack.c.l.s4 1966171168
    %v661 = vunpack.c.0.s8 %v660
    %v662 = vlaneseq
    %v663 = vshrl.u32 %v662, 7
    %v664 = vsub.s32 %v661, %v663
    %v665 = vrot.slane %v643, %v664
    %v667 = vunpack.c.l.s4 1966171168
    %v668 = vunpack.c.0.s8 %v667
    %v669 = vlaneseq
    %v670 = vshrl.u32 %v669, 7
    %v671 = vsub.s32 %v668, %v670
    %v672 = vrot.slane %v644, %v671
    %v673 = vcombine.high %v651, %v651
    %v674 = vcombine.high %v658, %v658
    %v675 = vcombine.high %v665, %v665
    %v676 = vcombine.high %v672, %v672
    %v677 = vlaneseq
    %v678 = vshrl.u32 %v677, 7
    %v679 = vsub.s32 0, %v678
    %v680 = vrot.slane %v651, %v679
    %v681 = vlaneseq
    %v682 = vshrl.u32 %v681, 7
    %v683 = vsub.s32 0, %v682
    %v684 = vrot.slane %v665, %v683
    %v685 = vlaneseq
    %v686 = vshrl.u32 %v685, 7
    %v687 = vsub.s32 0, %v686
    %v688 = vrot.slane %v673, %v687
    %v689 = vlaneseq
    %v690 = vshrl.u32 %v689, 7
    %v691 = vsub.s32 0, %v690
    %v692 = vrot.slane %v675, %v691
    %v693 = vlaneseq
    %v694 = vshrl.u32 %v693, 7
    %v695 = vsub.s32 0, %v694
    %v696 = vrot.slane %v658, %v695
    %v697 = vlaneseq
    %v698 = vshrl.u32 %v697, 7
    %v699 = vsub.s32 0, %v698
    %v700 = vrot.slane %v672, %v699
    %v701 = vlaneseq
    %v702 = vshrl.u32 %v701, 7
    %v703 = vsub.s32 0, %v702
    %v704 = vrot.slane %v674, %v703
    %v705 = vlaneseq
    %v706 = vshrl.u32 %v705, 7
    %v707 = vsub.s32 0, %v706
    %v708 = vrot.slane %v676, %v707
    %v717 = vmul.f32 %v75, %v680
    %v718 = vmul.f32 %v76, %v684
    %v719 = vmul.f32 %v77, %v688
    %v720 = vmul.f32 %v78, %v692
    %v721 = vmul.f32 %v79, %v696
    %v722 = vmul.f32 %v80, %v700
    %v723 = vmul.f32 %v81, %v704
    %v724 = vmul.f32 %v82, %v708
    %v725 = vadd.f32 %v717, %v718
    %v726 = vadd.f32 %v725, %v719
    %v727 = vadd.f32 %v726, %v720
    %v728 = vadd.f32 %v727, %v721
    %v729 = vadd.f32 %v728, %v722
    %v730 = vadd.f32 %v729, %v723
    %v731 = vadd.f32 %v730, %v724
    %732 = vst [vmem:[#allocation2 + $0x80] sm:$0xff] %v731
    %s733 = scalar_lea.vmem [#allocation8], 64
    %v734 = vld [vmem:[%s733] sm:$0xff]
    %v735 = vld [vmem:[%s733 + $0x8] sm:$0xff]
    %v736 = vld [vmem:[%s733 + $0x10] sm:$0xff]
    %v737 = vld [vmem:[%s733 + $0x18] sm:$0xff]
    %v738 = vld [vmem:[%s733 + $0x20] sm:$0xff]
    %v739 = vld [vmem:[%s733 + $0x28] sm:$0xff]
    %v740 = vld [vmem:[%s733 + $0x30] sm:$0xff]
    %v741 = vld [vmem:[%s733 + $0x38] sm:$0xff]
    %s742 = sld [smem:[#allocation3 + $0x3]]
    %s743 = sld [smem:[#allocation3 + $0x4]]
    %s744 = sld [smem:[#allocation3 + $0x5]]
    %v745 = vstv %s742
    %v746 = vsub.f32 %v70, %v745
    %v747 = vstv %s743
    %v748 = vsub.f32 %v72, %v747
    %v749 = vstv %s744
    %v750 = vsub.f32 %v74, %v749
    %v751 = vmul.f32 %v746, %v746
    %v752 = vmul.f32 %v748, %v748
    %v753 = vadd.f32 %v751, %v752
    %v754 = vmul.f32 %v750, %v750
    %v755 = vadd.f32 %v753, %v754
    %v756 = vrsqrt.pop %v755
    %v757 = vmul.f32 %v755, %v756
    %vm758 = vcmp.eq.f32.partialorder %v755, inf
    %v759 = vsel %vm758, %v755, %v757
    %vm760 = vcmp.eq.f32.partialorder %v755, 0.0
    %v761 = vand.u32 %v755, 2147483648
    %v762 = vsel %vm760, %v761, %v759
    %v763 = vmul.f32 %v762, 1.6666666
    %v764 = vsub.f32 1.0, %v763
    %v765 = vmax.f32 %v764, 0.0
    %v767 = vcombine.high %v765, %v765
    %v769 = vunpack.c.l.s4 1966171168
    %v770 = vunpack.c.0.s8 %v769
    %v771 = vlaneseq
    %v772 = vshrl.u32 %v771, 7
    %v773 = vsub.s32 %v770, %v772
    %v774 = vrot.slane %v765, %v773
    %v776 = vunpack.c.l.s4 1966171168
    %v777 = vunpack.c.0.s8 %v776
    %v778 = vlaneseq
    %v779 = vshrl.u32 %v778, 7
    %v780 = vsub.s32 %v777, %v779
    %v781 = vrot.slane %v767, %v780
    %v782 = vcombine.high %v774, %v774
    %v783 = vcombine.high %v781, %v781
    %v785 = vunpack.c.l.s4 1966171168
    %v786 = vunpack.c.0.s8 %v785
    %v787 = vlaneseq
    %v788 = vshrl.u32 %v787, 7
    %v789 = vsub.s32 %v786, %v788
    %v790 = vrot.slane %v774, %v789
    %v792 = vunpack.c.l.s4 1966171168
    %v793 = vunpack.c.0.s8 %v792
    %v794 = vlaneseq
    %v795 = vshrl.u32 %v794, 7
    %v796 = vsub.s32 %v793, %v795
    %v797 = vrot.slane %v781, %v796
    %v799 = vunpack.c.l.s4 1966171168
    %v800 = vunpack.c.0.s8 %v799
    %v801 = vlaneseq
    %v802 = vshrl.u32 %v801, 7
    %v803 = vsub.s32 %v800, %v802
    %v804 = vrot.slane %v782, %v803
    %v806 = vunpack.c.l.s4 1966171168
    %v807 = vunpack.c.0.s8 %v806
    %v808 = vlaneseq
    %v809 = vshrl.u32 %v808, 7
    %v810 = vsub.s32 %v807, %v809
    %v811 = vrot.slane %v783, %v810
    %v812 = vcombine.high %v790, %v790
    %v813 = vcombine.high %v797, %v797
    %v814 = vcombine.high %v804, %v804
    %v815 = vcombine.high %v811, %v811
    %v816 = vlaneseq
    %v817 = vshrl.u32 %v816, 7
    %v818 = vsub.s32 0, %v817
    %v819 = vrot.slane %v790, %v818
    %v820 = vlaneseq
    %v821 = vshrl.u32 %v820, 7
    %v822 = vsub.s32 0, %v821
    %v823 = vrot.slane %v804, %v822
    %v824 = vlaneseq
    %v825 = vshrl.u32 %v824, 7
    %v826 = vsub.s32 0, %v825
    %v827 = vrot.slane %v812, %v826
    %v828 = vlaneseq
    %v829 = vshrl.u32 %v828, 7
    %v830 = vsub.s32 0, %v829
    %v831 = vrot.slane %v814, %v830
    %v832 = vlaneseq
    %v833 = vshrl.u32 %v832, 7
    %v834 = vsub.s32 0, %v833
    %v835 = vrot.slane %v797, %v834
    %v836 = vlaneseq
    %v837 = vshrl.u32 %v836, 7
    %v838 = vsub.s32 0, %v837
    %v839 = vrot.slane %v811, %v838
    %v840 = vlaneseq
    %v841 = vshrl.u32 %v840, 7
    %v842 = vsub.s32 0, %v841
    %v843 = vrot.slane %v813, %v842
    %v844 = vlaneseq
    %v845 = vshrl.u32 %v844, 7
    %v846 = vsub.s32 0, %v845
    %v847 = vrot.slane %v815, %v846
    %v856 = vmul.f32 %v734, %v819
    %v857 = vmul.f32 %v735, %v823
    %v858 = vmul.f32 %v736, %v827
    %v859 = vmul.f32 %v737, %v831
    %v860 = vmul.f32 %v738, %v835
    %v861 = vmul.f32 %v739, %v839
    %v862 = vmul.f32 %v740, %v843
    %v863 = vmul.f32 %v741, %v847
    %v864 = vadd.f32 %v856, %v857
    %v865 = vadd.f32 %v864, %v858
    %v866 = vadd.f32 %v865, %v859
    %v867 = vadd.f32 %v866, %v860
    %v868 = vadd.f32 %v867, %v861
    %v869 = vadd.f32 %v868, %v862
    %v870 = vadd.f32 %v869, %v863
    %871 = vst [vmem:[#allocation2 + $0x8] sm:$0xff] %v870
    %s872 = sld [smem:[#allocation3 + $0x83]]
    %s873 = sld [smem:[#allocation3 + $0x84]]
    %s874 = sld [smem:[#allocation3 + $0x85]]
    %v875 = vstv %s872
    %v876 = vsub.f32 %v70, %v875
    %v877 = vstv %s873
    %v878 = vsub.f32 %v72, %v877
    %v879 = vstv %s874
    %v880 = vsub.f32 %v74, %v879
    %v881 = vmul.f32 %v876, %v876
    %v882 = vmul.f32 %v878, %v878
    %v883 = vadd.f32 %v881, %v882
    %v884 = vmul.f32 %v880, %v880
    %v885 = vadd.f32 %v883, %v884
    %v886 = vrsqrt.pop %v885
    %v887 = vmul.f32 %v885, %v886
    %vm888 = vcmp.eq.f32.partialorder %v885, inf
    %v889 = vsel %vm888, %v885, %v887
    %vm890 = vcmp.eq.f32.partialorder %v885, 0.0
    %v891 = vand.u32 %v885, 2147483648
    %v892 = vsel %vm890, %v891, %v889
    %v893 = vmul.f32 %v892, 1.6666666
    %v894 = vsub.f32 1.0, %v893
    %v895 = vmax.f32 %v894, 0.0
    %v897 = vcombine.high %v895, %v895
    %v899 = vunpack.c.l.s4 1966171168
    %v900 = vunpack.c.0.s8 %v899
    %v901 = vlaneseq
    %v902 = vshrl.u32 %v901, 7
    %v903 = vsub.s32 %v900, %v902
    %v904 = vrot.slane %v895, %v903
    %v906 = vunpack.c.l.s4 1966171168
    %v907 = vunpack.c.0.s8 %v906
    %v908 = vlaneseq
    %v909 = vshrl.u32 %v908, 7
    %v910 = vsub.s32 %v907, %v909
    %v911 = vrot.slane %v897, %v910
    %v912 = vcombine.high %v904, %v904
    %v913 = vcombine.high %v911, %v911
    %v915 = vunpack.c.l.s4 1966171168
    %v916 = vunpack.c.0.s8 %v915
    %v917 = vlaneseq
    %v918 = vshrl.u32 %v917, 7
    %v919 = vsub.s32 %v916, %v918
    %v920 = vrot.slane %v904, %v919
    %v922 = vunpack.c.l.s4 1966171168
    %v923 = vunpack.c.0.s8 %v922
    %v924 = vlaneseq
    %v925 = vshrl.u32 %v924, 7
    %v926 = vsub.s32 %v923, %v925
    %v927 = vrot.slane %v911, %v926
    %v929 = vunpack.c.l.s4 1966171168
    %v930 = vunpack.c.0.s8 %v929
    %v931 = vlaneseq
    %v932 = vshrl.u32 %v931, 7
    %v933 = vsub.s32 %v930, %v932
    %v934 = vrot.slane %v912, %v933
    %v936 = vunpack.c.l.s4 1966171168
    %v937 = vunpack.c.0.s8 %v936
    %v938 = vlaneseq
    %v939 = vshrl.u32 %v938, 7
    %v940 = vsub.s32 %v937, %v939
    %v941 = vrot.slane %v913, %v940
    %v942 = vcombine.high %v920, %v920
    %v943 = vcombine.high %v927, %v927
    %v944 = vcombine.high %v934, %v934
    %v945 = vcombine.high %v941, %v941
    %v946 = vlaneseq
    %v947 = vshrl.u32 %v946, 7
    %v948 = vsub.s32 0, %v947
    %v949 = vrot.slane %v920, %v948
    %v950 = vlaneseq
    %v951 = vshrl.u32 %v950, 7
    %v952 = vsub.s32 0, %v951
    %v953 = vrot.slane %v934, %v952
    %v954 = vlaneseq
    %v955 = vshrl.u32 %v954, 7
    %v956 = vsub.s32 0, %v955
    %v957 = vrot.slane %v942, %v956
    %v958 = vlaneseq
    %v959 = vshrl.u32 %v958, 7
    %v960 = vsub.s32 0, %v959
    %v961 = vrot.slane %v944, %v960
    %v962 = vlaneseq
    %v963 = vshrl.u32 %v962, 7
    %v964 = vsub.s32 0, %v963
    %v965 = vrot.slane %v927, %v964
    %v966 = vlaneseq
    %v967 = vshrl.u32 %v966, 7
    %v968 = vsub.s32 0, %v967
    %v969 = vrot.slane %v941, %v968
    %v970 = vlaneseq
    %v971 = vshrl.u32 %v970, 7
    %v972 = vsub.s32 0, %v971
    %v973 = vrot.slane %v943, %v972
    %v974 = vlaneseq
    %v975 = vshrl.u32 %v974, 7
    %v976 = vsub.s32 0, %v975
    %v977 = vrot.slane %v945, %v976
    %v986 = vmul.f32 %v734, %v949
    %v987 = vmul.f32 %v735, %v953
    %v988 = vmul.f32 %v736, %v957
    %v989 = vmul.f32 %v737, %v961
    %v990 = vmul.f32 %v738, %v965
    %v991 = vmul.f32 %v739, %v969
    %v992 = vmul.f32 %v740, %v973
    %v993 = vmul.f32 %v741, %v977
    %v994 = vadd.f32 %v986, %v987
    %v995 = vadd.f32 %v994, %v988
    %v996 = vadd.f32 %v995, %v989
    %v997 = vadd.f32 %v996, %v990
    %v998 = vadd.f32 %v997, %v991
    %v999 = vadd.f32 %v998, %v992
    %v1000 = vadd.f32 %v999, %v993
    %1001 = vst [vmem:[#allocation2 + $0x28] sm:$0xff] %v1000
    %s1002 = sld [smem:[#allocation3 + $0x103]]
    %s1003 = sld [smem:[#allocation3 + $0x104]]
    %s1004 = sld [smem:[#allocation3 + $0x105]]
    %v1005 = vstv %s1002
    %v1006 = vsub.f32 %v70, %v1005
    %v1007 = vstv %s1003
    %v1008 = vsub.f32 %v72, %v1007
    %v1009 = vstv %s1004
    %v1010 = vsub.f32 %v74, %v1009
    %v1011 = vmul.f32 %v1006, %v1006
    %v1012 = vmul.f32 %v1008, %v1008
    %v1013 = vadd.f32 %v1011, %v1012
    %v1014 = vmul.f32 %v1010, %v1010
    %v1015 = vadd.f32 %v1013, %v1014
    %v1016 = vrsqrt.pop %v1015
    %v1017 = vmul.f32 %v1015, %v1016
    %vm1018 = vcmp.eq.f32.partialorder %v1015, inf
    %v1019 = vsel %vm1018, %v1015, %v1017
    %vm1020 = vcmp.eq.f32.partialorder %v1015, 0.0
    %v1021 = vand.u32 %v1015, 2147483648
    %v1022 = vsel %vm1020, %v1021, %v1019
    %v1023 = vmul.f32 %v1022, 1.6666666
    %v1024 = vsub.f32 1.0, %v1023
    %v1025 = vmax.f32 %v1024, 0.0
    %v1027 = vcombine.high %v1025, %v1025
    %v1029 = vunpack.c.l.s4 1966171168
    %v1030 = vunpack.c.0.s8 %v1029
    %v1031 = vlaneseq
    %v1032 = vshrl.u32 %v1031, 7
    %v1033 = vsub.s32 %v1030, %v1032
    %v1034 = vrot.slane %v1025, %v1033
    %v1036 = vunpack.c.l.s4 1966171168
    %v1037 = vunpack.c.0.s8 %v1036
    %v1038 = vlaneseq
    %v1039 = vshrl.u32 %v1038, 7
    %v1040 = vsub.s32 %v1037, %v1039
    %v1041 = vrot.slane %v1027, %v1040
    %v1042 = vcombine.high %v1034, %v1034
    %v1043 = vcombine.high %v1041, %v1041
    %v1045 = vunpack.c.l.s4 1966171168
    %v1046 = vunpack.c.0.s8 %v1045
    %v1047 = vlaneseq
    %v1048 = vshrl.u32 %v1047, 7
    %v1049 = vsub.s32 %v1046, %v1048
    %v1050 = vrot.slane %v1034, %v1049
    %v1052 = vunpack.c.l.s4 1966171168
    %v1053 = vunpack.c.0.s8 %v1052
    %v1054 = vlaneseq
    %v1055 = vshrl.u32 %v1054, 7
    %v1056 = vsub.s32 %v1053, %v1055
    %v1057 = vrot.slane %v1041, %v1056
    %v1059 = vunpack.c.l.s4 1966171168
    %v1060 = vunpack.c.0.s8 %v1059
    %v1061 = vlaneseq
    %v1062 = vshrl.u32 %v1061, 7
    %v1063 = vsub.s32 %v1060, %v1062
    %v1064 = vrot.slane %v1042, %v1063
    %v1066 = vunpack.c.l.s4 1966171168
    %v1067 = vunpack.c.0.s8 %v1066
    %v1068 = vlaneseq
    %v1069 = vshrl.u32 %v1068, 7
    %v1070 = vsub.s32 %v1067, %v1069
    %v1071 = vrot.slane %v1043, %v1070
    %v1072 = vcombine.high %v1050, %v1050
    %v1073 = vcombine.high %v1057, %v1057
    %v1074 = vcombine.high %v1064, %v1064
    %v1075 = vcombine.high %v1071, %v1071
    %v1076 = vlaneseq
    %v1077 = vshrl.u32 %v1076, 7
    %v1078 = vsub.s32 0, %v1077
    %v1079 = vrot.slane %v1050, %v1078
    %v1080 = vlaneseq
    %v1081 = vshrl.u32 %v1080, 7
    %v1082 = vsub.s32 0, %v1081
    %v1083 = vrot.slane %v1064, %v1082
    %v1084 = vlaneseq
    %v1085 = vshrl.u32 %v1084, 7
    %v1086 = vsub.s32 0, %v1085
    %v1087 = vrot.slane %v1072, %v1086
    %v1088 = vlaneseq
    %v1089 = vshrl.u32 %v1088, 7
    %v1090 = vsub.s32 0, %v1089
    %v1091 = vrot.slane %v1074, %v1090
    %v1092 = vlaneseq
    %v1093 = vshrl.u32 %v1092, 7
    %v1094 = vsub.s32 0, %v1093
    %v1095 = vrot.slane %v1057, %v1094
    %v1096 = vlaneseq
    %v1097 = vshrl.u32 %v1096, 7
    %v1098 = vsub.s32 0, %v1097
    %v1099 = vrot.slane %v1071, %v1098
    %v1100 = vlaneseq
    %v1101 = vshrl.u32 %v1100, 7
    %v1102 = vsub.s32 0, %v1101
    %v1103 = vrot.slane %v1073, %v1102
    %v1104 = vlaneseq
    %v1105 = vshrl.u32 %v1104, 7
    %v1106 = vsub.s32 0, %v1105
    %v1107 = vrot.slane %v1075, %v1106
    %v1116 = vmul.f32 %v734, %v1079
    %v1117 = vmul.f32 %v735, %v1083
    %v1118 = vmul.f32 %v736, %v1087
    %v1119 = vmul.f32 %v737, %v1091
    %v1120 = vmul.f32 %v738, %v1095
    %v1121 = vmul.f32 %v739, %v1099
    %v1122 = vmul.f32 %v740, %v1103
    %v1123 = vmul.f32 %v741, %v1107
    %v1124 = vadd.f32 %v1116, %v1117
    %v1125 = vadd.f32 %v1124, %v1118
    %v1126 = vadd.f32 %v1125, %v1119
    %v1127 = vadd.f32 %v1126, %v1120
    %v1128 = vadd.f32 %v1127, %v1121
    %v1129 = vadd.f32 %v1128, %v1122
    %v1130 = vadd.f32 %v1129, %v1123
    %1131 = vst [vmem:[#allocation2 + $0x48] sm:$0xff] %v1130
    %s1132 = sld [smem:[#allocation3 + $0x183]]
    %s1133 = sld [smem:[#allocation3 + $0x184]]
    %s1134 = sld [smem:[#allocation3 + $0x185]]
    %v1135 = vstv %s1132
    %v1136 = vsub.f32 %v70, %v1135
    %v1137 = vstv %s1133
    %v1138 = vsub.f32 %v72, %v1137
    %v1139 = vstv %s1134
    %v1140 = vsub.f32 %v74, %v1139
    %v1141 = vmul.f32 %v1136, %v1136
    %v1142 = vmul.f32 %v1138, %v1138
    %v1143 = vadd.f32 %v1141, %v1142
    %v1144 = vmul.f32 %v1140, %v1140
    %v1145 = vadd.f32 %v1143, %v1144
    %v1146 = vrsqrt.pop %v1145
    %v1147 = vmul.f32 %v1145, %v1146
    %vm1148 = vcmp.eq.f32.partialorder %v1145, inf
    %v1149 = vsel %vm1148, %v1145, %v1147
    %vm1150 = vcmp.eq.f32.partialorder %v1145, 0.0
    %v1151 = vand.u32 %v1145, 2147483648
    %v1152 = vsel %vm1150, %v1151, %v1149
    %v1153 = vmul.f32 %v1152, 1.6666666
    %v1154 = vsub.f32 1.0, %v1153
    %v1155 = vmax.f32 %v1154, 0.0
    %v1157 = vcombine.high %v1155, %v1155
    %v1159 = vunpack.c.l.s4 1966171168
    %v1160 = vunpack.c.0.s8 %v1159
    %v1161 = vlaneseq
    %v1162 = vshrl.u32 %v1161, 7
    %v1163 = vsub.s32 %v1160, %v1162
    %v1164 = vrot.slane %v1155, %v1163
    %v1166 = vunpack.c.l.s4 1966171168
    %v1167 = vunpack.c.0.s8 %v1166
    %v1168 = vlaneseq
    %v1169 = vshrl.u32 %v1168, 7
    %v1170 = vsub.s32 %v1167, %v1169
    %v1171 = vrot.slane %v1157, %v1170
    %v1172 = vcombine.high %v1164, %v1164
    %v1173 = vcombine.high %v1171, %v1171
    %v1175 = vunpack.c.l.s4 1966171168
    %v1176 = vunpack.c.0.s8 %v1175
    %v1177 = vlaneseq
    %v1178 = vshrl.u32 %v1177, 7
    %v1179 = vsub.s32 %v1176, %v1178
    %v1180 = vrot.slane %v1164, %v1179
    %v1182 = vunpack.c.l.s4 1966171168
    %v1183 = vunpack.c.0.s8 %v1182
    %v1184 = vlaneseq
    %v1185 = vshrl.u32 %v1184, 7
    %v1186 = vsub.s32 %v1183, %v1185
    %v1187 = vrot.slane %v1171, %v1186
    %v1189 = vunpack.c.l.s4 1966171168
    %v1190 = vunpack.c.0.s8 %v1189
    %v1191 = vlaneseq
    %v1192 = vshrl.u32 %v1191, 7
    %v1193 = vsub.s32 %v1190, %v1192
    %v1194 = vrot.slane %v1172, %v1193
    %v1196 = vunpack.c.l.s4 1966171168
    %v1197 = vunpack.c.0.s8 %v1196
    %v1198 = vlaneseq
    %v1199 = vshrl.u32 %v1198, 7
    %v1200 = vsub.s32 %v1197, %v1199
    %v1201 = vrot.slane %v1173, %v1200
    %v1202 = vcombine.high %v1180, %v1180
    %v1203 = vcombine.high %v1187, %v1187
    %v1204 = vcombine.high %v1194, %v1194
    %v1205 = vcombine.high %v1201, %v1201
    %v1206 = vlaneseq
    %v1207 = vshrl.u32 %v1206, 7
    %v1208 = vsub.s32 0, %v1207
    %v1209 = vrot.slane %v1180, %v1208
    %v1210 = vlaneseq
    %v1211 = vshrl.u32 %v1210, 7
    %v1212 = vsub.s32 0, %v1211
    %v1213 = vrot.slane %v1194, %v1212
    %v1214 = vlaneseq
    %v1215 = vshrl.u32 %v1214, 7
    %v1216 = vsub.s32 0, %v1215
    %v1217 = vrot.slane %v1202, %v1216
    %v1218 = vlaneseq
    %v1219 = vshrl.u32 %v1218, 7
    %v1220 = vsub.s32 0, %v1219
    %v1221 = vrot.slane %v1204, %v1220
    %v1222 = vlaneseq
    %v1223 = vshrl.u32 %v1222, 7
    %v1224 = vsub.s32 0, %v1223
    %v1225 = vrot.slane %v1187, %v1224
    %v1226 = vlaneseq
    %v1227 = vshrl.u32 %v1226, 7
    %v1228 = vsub.s32 0, %v1227
    %v1229 = vrot.slane %v1201, %v1228
    %v1230 = vlaneseq
    %v1231 = vshrl.u32 %v1230, 7
    %v1232 = vsub.s32 0, %v1231
    %v1233 = vrot.slane %v1203, %v1232
    %v1234 = vlaneseq
    %v1235 = vshrl.u32 %v1234, 7
    %v1236 = vsub.s32 0, %v1235
    %v1237 = vrot.slane %v1205, %v1236
    %v1246 = vmul.f32 %v734, %v1209
    %v1247 = vmul.f32 %v735, %v1213
    %v1248 = vmul.f32 %v736, %v1217
    %v1249 = vmul.f32 %v737, %v1221
    %v1250 = vmul.f32 %v738, %v1225
    %v1251 = vmul.f32 %v739, %v1229
    %v1252 = vmul.f32 %v740, %v1233
    %v1253 = vmul.f32 %v741, %v1237
    %v1254 = vadd.f32 %v1246, %v1247
    %v1255 = vadd.f32 %v1254, %v1248
    %v1256 = vadd.f32 %v1255, %v1249
    %v1257 = vadd.f32 %v1256, %v1250
    %v1258 = vadd.f32 %v1257, %v1251
    %v1259 = vadd.f32 %v1258, %v1252
    %v1260 = vadd.f32 %v1259, %v1253
    %1261 = vst [vmem:[#allocation2 + $0x68] sm:$0xff] %v1260
    %s1262 = sld [smem:[#allocation3 + $0x203]]
    %s1263 = sld [smem:[#allocation3 + $0x204]]
    %s1264 = sld [smem:[#allocation3 + $0x205]]
    %v1265 = vstv %s1262
    %v1266 = vsub.f32 %v70, %v1265
    %v1267 = vstv %s1263
    %v1268 = vsub.f32 %v72, %v1267
    %v1269 = vstv %s1264
    %v1270 = vsub.f32 %v74, %v1269
    %v1271 = vmul.f32 %v1266, %v1266
    %v1272 = vmul.f32 %v1268, %v1268
    %v1273 = vadd.f32 %v1271, %v1272
    %v1274 = vmul.f32 %v1270, %v1270
    %v1275 = vadd.f32 %v1273, %v1274
    %v1276 = vrsqrt.pop %v1275
    %v1277 = vmul.f32 %v1275, %v1276
    %vm1278 = vcmp.eq.f32.partialorder %v1275, inf
    %v1279 = vsel %vm1278, %v1275, %v1277
    %vm1280 = vcmp.eq.f32.partialorder %v1275, 0.0
    %v1281 = vand.u32 %v1275, 2147483648
    %v1282 = vsel %vm1280, %v1281, %v1279
    %v1283 = vmul.f32 %v1282, 1.6666666
    %v1284 = vsub.f32 1.0, %v1283
    %v1285 = vmax.f32 %v1284, 0.0
    %v1287 = vcombine.high %v1285, %v1285
    %v1289 = vunpack.c.l.s4 1966171168
    %v1290 = vunpack.c.0.s8 %v1289
    %v1291 = vlaneseq
    %v1292 = vshrl.u32 %v1291, 7
    %v1293 = vsub.s32 %v1290, %v1292
    %v1294 = vrot.slane %v1285, %v1293
    %v1296 = vunpack.c.l.s4 1966171168
    %v1297 = vunpack.c.0.s8 %v1296
    %v1298 = vlaneseq
    %v1299 = vshrl.u32 %v1298, 7
    %v1300 = vsub.s32 %v1297, %v1299
    %v1301 = vrot.slane %v1287, %v1300
    %v1302 = vcombine.high %v1294, %v1294
    %v1303 = vcombine.high %v1301, %v1301
    %v1305 = vunpack.c.l.s4 1966171168
    %v1306 = vunpack.c.0.s8 %v1305
    %v1307 = vlaneseq
    %v1308 = vshrl.u32 %v1307, 7
    %v1309 = vsub.s32 %v1306, %v1308
    %v1310 = vrot.slane %v1294, %v1309
    %v1312 = vunpack.c.l.s4 1966171168
    %v1313 = vunpack.c.0.s8 %v1312
    %v1314 = vlaneseq
    %v1315 = vshrl.u32 %v1314, 7
    %v1316 = vsub.s32 %v1313, %v1315
    %v1317 = vrot.slane %v1301, %v1316
    %v1319 = vunpack.c.l.s4 1966171168
    %v1320 = vunpack.c.0.s8 %v1319
    %v1321 = vlaneseq
    %v1322 = vshrl.u32 %v1321, 7
    %v1323 = vsub.s32 %v1320, %v1322
    %v1324 = vrot.slane %v1302, %v1323
    %v1326 = vunpack.c.l.s4 1966171168
    %v1327 = vunpack.c.0.s8 %v1326
    %v1328 = vlaneseq
    %v1329 = vshrl.u32 %v1328, 7
    %v1330 = vsub.s32 %v1327, %v1329
    %v1331 = vrot.slane %v1303, %v1330
    %v1332 = vcombine.high %v1310, %v1310
    %v1333 = vcombine.high %v1317, %v1317
    %v1334 = vcombine.high %v1324, %v1324
    %v1335 = vcombine.high %v1331, %v1331
    %v1336 = vlaneseq
    %v1337 = vshrl.u32 %v1336, 7
    %v1338 = vsub.s32 0, %v1337
    %v1339 = vrot.slane %v1310, %v1338
    %v1340 = vlaneseq
    %v1341 = vshrl.u32 %v1340, 7
    %v1342 = vsub.s32 0, %v1341
    %v1343 = vrot.slane %v1324, %v1342
    %v1344 = vlaneseq
    %v1345 = vshrl.u32 %v1344, 7
    %v1346 = vsub.s32 0, %v1345
    %v1347 = vrot.slane %v1332, %v1346
    %v1348 = vlaneseq
    %v1349 = vshrl.u32 %v1348, 7
    %v1350 = vsub.s32 0, %v1349
    %v1351 = vrot.slane %v1334, %v1350
    %v1352 = vlaneseq
    %v1353 = vshrl.u32 %v1352, 7
    %v1354 = vsub.s32 0, %v1353
    %v1355 = vrot.slane %v1317, %v1354
    %v1356 = vlaneseq
    %v1357 = vshrl.u32 %v1356, 7
    %v1358 = vsub.s32 0, %v1357
    %v1359 = vrot.slane %v1331, %v1358
    %v1360 = vlaneseq
    %v1361 = vshrl.u32 %v1360, 7
    %v1362 = vsub.s32 0, %v1361
    %v1363 = vrot.slane %v1333, %v1362
    %v1364 = vlaneseq
    %v1365 = vshrl.u32 %v1364, 7
    %v1366 = vsub.s32 0, %v1365
    %v1367 = vrot.slane %v1335, %v1366
    %v1376 = vmul.f32 %v734, %v1339
    %v1377 = vmul.f32 %v735, %v1343
    %v1378 = vmul.f32 %v736, %v1347
    %v1379 = vmul.f32 %v737, %v1351
    %v1380 = vmul.f32 %v738, %v1355
    %v1381 = vmul.f32 %v739, %v1359
    %v1382 = vmul.f32 %v740, %v1363
    %v1383 = vmul.f32 %v741, %v1367
    %v1384 = vadd.f32 %v1376, %v1377
    %v1385 = vadd.f32 %v1384, %v1378
    %v1386 = vadd.f32 %v1385, %v1379
    %v1387 = vadd.f32 %v1386, %v1380
    %v1388 = vadd.f32 %v1387, %v1381
    %v1389 = vadd.f32 %v1388, %v1382
    %v1390 = vadd.f32 %v1389, %v1383
    %1391 = vst [vmem:[#allocation2 + $0x88] sm:$0xff] %v1390
    %s1392 = scalar_lea.vmem [#allocation8], 128
    %v1393 = vld [vmem:[%s1392] sm:$0xff]
    %v1394 = vld [vmem:[%s1392 + $0x8] sm:$0xff]
    %v1395 = vld [vmem:[%s1392 + $0x10] sm:$0xff]
    %v1396 = vld [vmem:[%s1392 + $0x18] sm:$0xff]
    %v1397 = vld [vmem:[%s1392 + $0x20] sm:$0xff]
    %v1398 = vld [vmem:[%s1392 + $0x28] sm:$0xff]
    %v1399 = vld [vmem:[%s1392 + $0x30] sm:$0xff]
    %v1400 = vld [vmem:[%s1392 + $0x38] sm:$0xff]
    %s1401 = sld [smem:[#allocation3 + $0x6]]
    %s1402 = sld [smem:[#allocation3 + $0x7]]
    %s1403 = sld [smem:[#allocation3 + $0x8]]
    %v1404 = vstv %s1401
    %v1405 = vsub.f32 %v70, %v1404
    %v1406 = vstv %s1402
    %v1407 = vsub.f32 %v72, %v1406
    %v1408 = vstv %s1403
    %v1409 = vsub.f32 %v74, %v1408
    %v1410 = vmul.f32 %v1405, %v1405
    %v1411 = vmul.f32 %v1407, %v1407
    %v1412 = vadd.f32 %v1410, %v1411
    %v1413 = vmul.f32 %v1409, %v1409
    %v1414 = vadd.f32 %v1412, %v1413
    %v1415 = vrsqrt.pop %v1414
    %v1416 = vmul.f32 %v1414, %v1415
    %vm1417 = vcmp.eq.f32.partialorder %v1414, inf
    %v1418 = vsel %vm1417, %v1414, %v1416
    %vm1419 = vcmp.eq.f32.partialorder %v1414, 0.0
    %v1420 = vand.u32 %v1414, 2147483648
    %v1421 = vsel %vm1419, %v1420, %v1418
    %v1422 = vmul.f32 %v1421, 1.6666666
    %v1423 = vsub.f32 1.0, %v1422
    %v1424 = vmax.f32 %v1423, 0.0
    %v1426 = vcombine.high %v1424, %v1424
    %v1428 = vunpack.c.l.s4 1966171168
    %v1429 = vunpack.c.0.s8 %v1428
    %v1430 = vlaneseq
    %v1431 = vshrl.u32 %v1430, 7
    %v1432 = vsub.s32 %v1429, %v1431
    %v1433 = vrot.slane %v1424, %v1432
    %v1435 = vunpack.c.l.s4 1966171168
    %v1436 = vunpack.c.0.s8 %v1435
    %v1437 = vlaneseq
    %v1438 = vshrl.u32 %v1437, 7
    %v1439 = vsub.s32 %v1436, %v1438
    %v1440 = vrot.slane %v1426, %v1439
    %v1441 = vcombine.high %v1433, %v1433
    %v1442 = vcombine.high %v1440, %v1440
    %v1444 = vunpack.c.l.s4 1966171168
    %v1445 = vunpack.c.0.s8 %v1444
    %v1446 = vlaneseq
    %v1447 = vshrl.u32 %v1446, 7
    %v1448 = vsub.s32 %v1445, %v1447
    %v1449 = vrot.slane %v1433, %v1448
    %v1451 = vunpack.c.l.s4 1966171168
    %v1452 = vunpack.c.0.s8 %v1451
    %v1453 = vlaneseq
    %v1454 = vshrl.u32 %v1453, 7
    %v1455 = vsub.s32 %v1452, %v1454
    %v1456 = vrot.slane %v1440, %v1455
    %v1458 = vunpack.c.l.s4 1966171168
    %v1459 = vunpack.c.0.s8 %v1458
    %v1460 = vlaneseq
    %v1461 = vshrl.u32 %v1460, 7
    %v1462 = vsub.s32 %v1459, %v1461
    %v1463 = vrot.slane %v1441, %v1462
    %v1465 = vunpack.c.l.s4 1966171168
    %v1466 = vunpack.c.0.s8 %v1465
    %v1467 = vlaneseq
    %v1468 = vshrl.u32 %v1467, 7
    %v1469 = vsub.s32 %v1466, %v1468
    %v1470 = vrot.slane %v1442, %v1469
    %v1471 = vcombine.high %v1449, %v1449
    %v1472 = vcombine.high %v1456, %v1456
    %v1473 = vcombine.high %v1463, %v1463
    %v1474 = vcombine.high %v1470, %v1470
    %v1475 = vlaneseq
    %v1476 = vshrl.u32 %v1475, 7
    %v1477 = vsub.s32 0, %v1476
    %v1478 = vrot.slane %v1449, %v1477
    %v1479 = vlaneseq
    %v1480 = vshrl.u32 %v1479, 7
    %v1481 = vsub.s32 0, %v1480
    %v1482 = vrot.slane %v1463, %v1481
    %v1483 = vlaneseq
    %v1484 = vshrl.u32 %v1483, 7
    %v1485 = vsub.s32 0, %v1484
    %v1486 = vrot.slane %v1471, %v1485
    %v1487 = vlaneseq
    %v1488 = vshrl.u32 %v1487, 7
    %v1489 = vsub.s32 0, %v1488
    %v1490 = vrot.slane %v1473, %v1489
    %v1491 = vlaneseq
    %v1492 = vshrl.u32 %v1491, 7
    %v1493 = vsub.s32 0, %v1492
    %v1494 = vrot.slane %v1456, %v1493
    %v1495 = vlaneseq
    %v1496 = vshrl.u32 %v1495, 7
    %v1497 = vsub.s32 0, %v1496
    %v1498 = vrot.slane %v1470, %v1497
    %v1499 = vlaneseq
    %v1500 = vshrl.u32 %v1499, 7
    %v1501 = vsub.s32 0, %v1500
    %v1502 = vrot.slane %v1472, %v1501
    %v1503 = vlaneseq
    %v1504 = vshrl.u32 %v1503, 7
    %v1505 = vsub.s32 0, %v1504
    %v1506 = vrot.slane %v1474, %v1505
    %v1515 = vmul.f32 %v1393, %v1478
    %v1516 = vmul.f32 %v1394, %v1482
    %v1517 = vmul.f32 %v1395, %v1486
    %v1518 = vmul.f32 %v1396, %v1490
    %v1519 = vmul.f32 %v1397, %v1494
    %v1520 = vmul.f32 %v1398, %v1498
    %v1521 = vmul.f32 %v1399, %v1502
    %v1522 = vmul.f32 %v1400, %v1506
    %v1523 = vadd.f32 %v1515, %v1516
    %v1524 = vadd.f32 %v1523, %v1517
    %v1525 = vadd.f32 %v1524, %v1518
    %v1526 = vadd.f32 %v1525, %v1519
    %v1527 = vadd.f32 %v1526, %v1520
    %v1528 = vadd.f32 %v1527, %v1521
    %v1529 = vadd.f32 %v1528, %v1522
    %1530 = vst [vmem:[#allocation2 + $0x10] sm:$0xff] %v1529
    %s1531 = sld [smem:[#allocation3 + $0x86]]
    %s1532 = sld [smem:[#allocation3 + $0x87]]
    %s1533 = sld [smem:[#allocation3 + $0x88]]
    %v1534 = vstv %s1531
    %v1535 = vsub.f32 %v70, %v1534
    %v1536 = vstv %s1532
    %v1537 = vsub.f32 %v72, %v1536
    %v1538 = vstv %s1533
    %v1539 = vsub.f32 %v74, %v1538
    %v1540 = vmul.f32 %v1535, %v1535
    %v1541 = vmul.f32 %v1537, %v1537
    %v1542 = vadd.f32 %v1540, %v1541
    %v1543 = vmul.f32 %v1539, %v1539
    %v1544 = vadd.f32 %v1542, %v1543
    %v1545 = vrsqrt.pop %v1544
    %v1546 = vmul.f32 %v1544, %v1545
    %vm1547 = vcmp.eq.f32.partialorder %v1544, inf
    %v1548 = vsel %vm1547, %v1544, %v1546
    %vm1549 = vcmp.eq.f32.partialorder %v1544, 0.0
    %v1550 = vand.u32 %v1544, 2147483648
    %v1551 = vsel %vm1549, %v1550, %v1548
    %v1552 = vmul.f32 %v1551, 1.6666666
    %v1553 = vsub.f32 1.0, %v1552
    %v1554 = vmax.f32 %v1553, 0.0
    %v1556 = vcombine.high %v1554, %v1554
    %v1558 = vunpack.c.l.s4 1966171168
    %v1559 = vunpack.c.0.s8 %v1558
    %v1560 = vlaneseq
    %v1561 = vshrl.u32 %v1560, 7
    %v1562 = vsub.s32 %v1559, %v1561
    %v1563 = vrot.slane %v1554, %v1562
    %v1565 = vunpack.c.l.s4 1966171168
    %v1566 = vunpack.c.0.s8 %v1565
    %v1567 = vlaneseq
    %v1568 = vshrl.u32 %v1567, 7
    %v1569 = vsub.s32 %v1566, %v1568
    %v1570 = vrot.slane %v1556, %v1569
    %v1571 = vcombine.high %v1563, %v1563
    %v1572 = vcombine.high %v1570, %v1570
    %v1574 = vunpack.c.l.s4 1966171168
    %v1575 = vunpack.c.0.s8 %v1574
    %v1576 = vlaneseq
    %v1577 = vshrl.u32 %v1576, 7
    %v1578 = vsub.s32 %v1575, %v1577
    %v1579 = vrot.slane %v1563, %v1578
    %v1581 = vunpack.c.l.s4 1966171168
    %v1582 = vunpack.c.0.s8 %v1581
    %v1583 = vlaneseq
    %v1584 = vshrl.u32 %v1583, 7
    %v1585 = vsub.s32 %v1582, %v1584
    %v1586 = vrot.slane %v1570, %v1585
    %v1588 = vunpack.c.l.s4 1966171168
    %v1589 = vunpack.c.0.s8 %v1588
    %v1590 = vlaneseq
    %v1591 = vshrl.u32 %v1590, 7
    %v1592 = vsub.s32 %v1589, %v1591
    %v1593 = vrot.slane %v1571, %v1592
    %v1595 = vunpack.c.l.s4 1966171168
    %v1596 = vunpack.c.0.s8 %v1595
    %v1597 = vlaneseq
    %v1598 = vshrl.u32 %v1597, 7
    %v1599 = vsub.s32 %v1596, %v1598
    %v1600 = vrot.slane %v1572, %v1599
    %v1601 = vcombine.high %v1579, %v1579
    %v1602 = vcombine.high %v1586, %v1586
    %v1603 = vcombine.high %v1593, %v1593
    %v1604 = vcombine.high %v1600, %v1600
    %v1605 = vlaneseq
    %v1606 = vshrl.u32 %v1605, 7
    %v1607 = vsub.s32 0, %v1606
    %v1608 = vrot.slane %v1579, %v1607
    %v1609 = vlaneseq
    %v1610 = vshrl.u32 %v1609, 7
    %v1611 = vsub.s32 0, %v1610
    %v1612 = vrot.slane %v1593, %v1611
    %v1613 = vlaneseq
    %v1614 = vshrl.u32 %v1613, 7
    %v1615 = vsub.s32 0, %v1614
    %v1616 = vrot.slane %v1601, %v1615
    %v1617 = vlaneseq
    %v1618 = vshrl.u32 %v1617, 7
    %v1619 = vsub.s32 0, %v1618
    %v1620 = vrot.slane %v1603, %v1619
    %v1621 = vlaneseq
    %v1622 = vshrl.u32 %v1621, 7
    %v1623 = vsub.s32 0, %v1622
    %v1624 = vrot.slane %v1586, %v1623
    %v1625 = vlaneseq
    %v1626 = vshrl.u32 %v1625, 7
    %v1627 = vsub.s32 0, %v1626
    %v1628 = vrot.slane %v1600, %v1627
    %v1629 = vlaneseq
    %v1630 = vshrl.u32 %v1629, 7
    %v1631 = vsub.s32 0, %v1630
    %v1632 = vrot.slane %v1602, %v1631
    %v1633 = vlaneseq
    %v1634 = vshrl.u32 %v1633, 7
    %v1635 = vsub.s32 0, %v1634
    %v1636 = vrot.slane %v1604, %v1635
    %v1645 = vmul.f32 %v1393, %v1608
    %v1646 = vmul.f32 %v1394, %v1612
    %v1647 = vmul.f32 %v1395, %v1616
    %v1648 = vmul.f32 %v1396, %v1620
    %v1649 = vmul.f32 %v1397, %v1624
    %v1650 = vmul.f32 %v1398, %v1628
    %v1651 = vmul.f32 %v1399, %v1632
    %v1652 = vmul.f32 %v1400, %v1636
    %v1653 = vadd.f32 %v1645, %v1646
    %v1654 = vadd.f32 %v1653, %v1647
    %v1655 = vadd.f32 %v1654, %v1648
    %v1656 = vadd.f32 %v1655, %v1649
    %v1657 = vadd.f32 %v1656, %v1650
    %v1658 = vadd.f32 %v1657, %v1651
    %v1659 = vadd.f32 %v1658, %v1652
    %1660 = vst [vmem:[#allocation2 + $0x30] sm:$0xff] %v1659
    %s1661 = sld [smem:[#allocation3 + $0x106]]
    %s1662 = sld [smem:[#allocation3 + $0x107]]
    %s1663 = sld [smem:[#allocation3 + $0x108]]
    %v1664 = vstv %s1661
    %v1665 = vsub.f32 %v70, %v1664
    %v1666 = vstv %s1662
    %v1667 = vsub.f32 %v72, %v1666
    %v1668 = vstv %s1663
    %v1669 = vsub.f32 %v74, %v1668
    %v1670 = vmul.f32 %v1665, %v1665
    %v1671 = vmul.f32 %v1667, %v1667
    %v1672 = vadd.f32 %v1670, %v1671
    %v1673 = vmul.f32 %v1669, %v1669
    %v1674 = vadd.f32 %v1672, %v1673
    %v1675 = vrsqrt.pop %v1674
    %v1676 = vmul.f32 %v1674, %v1675
    %vm1677 = vcmp.eq.f32.partialorder %v1674, inf
    %v1678 = vsel %vm1677, %v1674, %v1676
    %vm1679 = vcmp.eq.f32.partialorder %v1674, 0.0
    %v1680 = vand.u32 %v1674, 2147483648
    %v1681 = vsel %vm1679, %v1680, %v1678
    %v1682 = vmul.f32 %v1681, 1.6666666
    %v1683 = vsub.f32 1.0, %v1682
    %v1684 = vmax.f32 %v1683, 0.0
    %v1686 = vcombine.high %v1684, %v1684
    %v1688 = vunpack.c.l.s4 1966171168
    %v1689 = vunpack.c.0.s8 %v1688
    %v1690 = vlaneseq
    %v1691 = vshrl.u32 %v1690, 7
    %v1692 = vsub.s32 %v1689, %v1691
    %v1693 = vrot.slane %v1684, %v1692
    %v1695 = vunpack.c.l.s4 1966171168
    %v1696 = vunpack.c.0.s8 %v1695
    %v1697 = vlaneseq
    %v1698 = vshrl.u32 %v1697, 7
    %v1699 = vsub.s32 %v1696, %v1698
    %v1700 = vrot.slane %v1686, %v1699
    %v1701 = vcombine.high %v1693, %v1693
    %v1702 = vcombine.high %v1700, %v1700
    %v1704 = vunpack.c.l.s4 1966171168
    %v1705 = vunpack.c.0.s8 %v1704
    %v1706 = vlaneseq
    %v1707 = vshrl.u32 %v1706, 7
    %v1708 = vsub.s32 %v1705, %v1707
    %v1709 = vrot.slane %v1693, %v1708
    %v1711 = vunpack.c.l.s4 1966171168
    %v1712 = vunpack.c.0.s8 %v1711
    %v1713 = vlaneseq
    %v1714 = vshrl.u32 %v1713, 7
    %v1715 = vsub.s32 %v1712, %v1714
    %v1716 = vrot.slane %v1700, %v1715
    %v1718 = vunpack.c.l.s4 1966171168
    %v1719 = vunpack.c.0.s8 %v1718
    %v1720 = vlaneseq
    %v1721 = vshrl.u32 %v1720, 7
    %v1722 = vsub.s32 %v1719, %v1721
    %v1723 = vrot.slane %v1701, %v1722
    %v1725 = vunpack.c.l.s4 1966171168
    %v1726 = vunpack.c.0.s8 %v1725
    %v1727 = vlaneseq
    %v1728 = vshrl.u32 %v1727, 7
    %v1729 = vsub.s32 %v1726, %v1728
    %v1730 = vrot.slane %v1702, %v1729
    %v1731 = vcombine.high %v1709, %v1709
    %v1732 = vcombine.high %v1716, %v1716
    %v1733 = vcombine.high %v1723, %v1723
    %v1734 = vcombine.high %v1730, %v1730
    %v1735 = vlaneseq
    %v1736 = vshrl.u32 %v1735, 7
    %v1737 = vsub.s32 0, %v1736
    %v1738 = vrot.slane %v1709, %v1737
    %v1739 = vlaneseq
    %v1740 = vshrl.u32 %v1739, 7
    %v1741 = vsub.s32 0, %v1740
    %v1742 = vrot.slane %v1723, %v1741
    %v1743 = vlaneseq
    %v1744 = vshrl.u32 %v1743, 7
    %v1745 = vsub.s32 0, %v1744
    %v1746 = vrot.slane %v1731, %v1745
    %v1747 = vlaneseq
    %v1748 = vshrl.u32 %v1747, 7
    %v1749 = vsub.s32 0, %v1748
    %v1750 = vrot.slane %v1733, %v1749
    %v1751 = vlaneseq
    %v1752 = vshrl.u32 %v1751, 7
    %v1753 = vsub.s32 0, %v1752
    %v1754 = vrot.slane %v1716, %v1753
    %v1755 = vlaneseq
    %v1756 = vshrl.u32 %v1755, 7
    %v1757 = vsub.s32 0, %v1756
    %v1758 = vrot.slane %v1730, %v1757
    %v1759 = vlaneseq
    %v1760 = vshrl.u32 %v1759, 7
    %v1761 = vsub.s32 0, %v1760
    %v1762 = vrot.slane %v1732, %v1761
    %v1763 = vlaneseq
    %v1764 = vshrl.u32 %v1763, 7
    %v1765 = vsub.s32 0, %v1764
    %v1766 = vrot.slane %v1734, %v1765
    %v1775 = vmul.f32 %v1393, %v1738
    %v1776 = vmul.f32 %v1394, %v1742
    %v1777 = vmul.f32 %v1395, %v1746
    %v1778 = vmul.f32 %v1396, %v1750
    %v1779 = vmul.f32 %v1397, %v1754
    %v1780 = vmul.f32 %v1398, %v1758
    %v1781 = vmul.f32 %v1399, %v1762
    %v1782 = vmul.f32 %v1400, %v1766
    %v1783 = vadd.f32 %v1775, %v1776
    %v1784 = vadd.f32 %v1783, %v1777
    %v1785 = vadd.f32 %v1784, %v1778
    %v1786 = vadd.f32 %v1785, %v1779
    %v1787 = vadd.f32 %v1786, %v1780
    %v1788 = vadd.f32 %v1787, %v1781
    %v1789 = vadd.f32 %v1788, %v1782
    %1790 = vst [vmem:[#allocation2 + $0x50] sm:$0xff] %v1789
    %s1791 = sld [smem:[#allocation3 + $0x186]]
    %s1792 = sld [smem:[#allocation3 + $0x187]]
    %s1793 = sld [smem:[#allocation3 + $0x188]]
    %v1794 = vstv %s1791
    %v1795 = vsub.f32 %v70, %v1794
    %v1796 = vstv %s1792
    %v1797 = vsub.f32 %v72, %v1796
    %v1798 = vstv %s1793
    %v1799 = vsub.f32 %v74, %v1798
    %v1800 = vmul.f32 %v1795, %v1795
    %v1801 = vmul.f32 %v1797, %v1797
    %v1802 = vadd.f32 %v1800, %v1801
    %v1803 = vmul.f32 %v1799, %v1799
    %v1804 = vadd.f32 %v1802, %v1803
    %v1805 = vrsqrt.pop %v1804
    %v1806 = vmul.f32 %v1804, %v1805
    %vm1807 = vcmp.eq.f32.partialorder %v1804, inf
    %v1808 = vsel %vm1807, %v1804, %v1806
    %vm1809 = vcmp.eq.f32.partialorder %v1804, 0.0
    %v1810 = vand.u32 %v1804, 2147483648
    %v1811 = vsel %vm1809, %v1810, %v1808
    %v1812 = vmul.f32 %v1811, 1.6666666
    %v1813 = vsub.f32 1.0, %v1812
    %v1814 = vmax.f32 %v1813, 0.0
    %v1816 = vcombine.high %v1814, %v1814
    %v1818 = vunpack.c.l.s4 1966171168
    %v1819 = vunpack.c.0.s8 %v1818
    %v1820 = vlaneseq
    %v1821 = vshrl.u32 %v1820, 7
    %v1822 = vsub.s32 %v1819, %v1821
    %v1823 = vrot.slane %v1814, %v1822
    %v1825 = vunpack.c.l.s4 1966171168
    %v1826 = vunpack.c.0.s8 %v1825
    %v1827 = vlaneseq
    %v1828 = vshrl.u32 %v1827, 7
    %v1829 = vsub.s32 %v1826, %v1828
    %v1830 = vrot.slane %v1816, %v1829
    %v1831 = vcombine.high %v1823, %v1823
    %v1832 = vcombine.high %v1830, %v1830
    %v1834 = vunpack.c.l.s4 1966171168
    %v1835 = vunpack.c.0.s8 %v1834
    %v1836 = vlaneseq
    %v1837 = vshrl.u32 %v1836, 7
    %v1838 = vsub.s32 %v1835, %v1837
    %v1839 = vrot.slane %v1823, %v1838
    %v1841 = vunpack.c.l.s4 1966171168
    %v1842 = vunpack.c.0.s8 %v1841
    %v1843 = vlaneseq
    %v1844 = vshrl.u32 %v1843, 7
    %v1845 = vsub.s32 %v1842, %v1844
    %v1846 = vrot.slane %v1830, %v1845
    %v1848 = vunpack.c.l.s4 1966171168
    %v1849 = vunpack.c.0.s8 %v1848
    %v1850 = vlaneseq
    %v1851 = vshrl.u32 %v1850, 7
    %v1852 = vsub.s32 %v1849, %v1851
    %v1853 = vrot.slane %v1831, %v1852
    %v1855 = vunpack.c.l.s4 1966171168
    %v1856 = vunpack.c.0.s8 %v1855
    %v1857 = vlaneseq
    %v1858 = vshrl.u32 %v1857, 7
    %v1859 = vsub.s32 %v1856, %v1858
    %v1860 = vrot.slane %v1832, %v1859
    %v1861 = vcombine.high %v1839, %v1839
    %v1862 = vcombine.high %v1846, %v1846
    %v1863 = vcombine.high %v1853, %v1853
    %v1864 = vcombine.high %v1860, %v1860
    %v1865 = vlaneseq
    %v1866 = vshrl.u32 %v1865, 7
    %v1867 = vsub.s32 0, %v1866
    %v1868 = vrot.slane %v1839, %v1867
    %v1869 = vlaneseq
    %v1870 = vshrl.u32 %v1869, 7
    %v1871 = vsub.s32 0, %v1870
    %v1872 = vrot.slane %v1853, %v1871
    %v1873 = vlaneseq
    %v1874 = vshrl.u32 %v1873, 7
    %v1875 = vsub.s32 0, %v1874
    %v1876 = vrot.slane %v1861, %v1875
    %v1877 = vlaneseq
    %v1878 = vshrl.u32 %v1877, 7
    %v1879 = vsub.s32 0, %v1878
    %v1880 = vrot.slane %v1863, %v1879
    %v1881 = vlaneseq
    %v1882 = vshrl.u32 %v1881, 7
    %v1883 = vsub.s32 0, %v1882
    %v1884 = vrot.slane %v1846, %v1883
    %v1885 = vlaneseq
    %v1886 = vshrl.u32 %v1885, 7
    %v1887 = vsub.s32 0, %v1886
    %v1888 = vrot.slane %v1860, %v1887
    %v1889 = vlaneseq
    %v1890 = vshrl.u32 %v1889, 7
    %v1891 = vsub.s32 0, %v1890
    %v1892 = vrot.slane %v1862, %v1891
    %v1893 = vlaneseq
    %v1894 = vshrl.u32 %v1893, 7
    %v1895 = vsub.s32 0, %v1894
    %v1896 = vrot.slane %v1864, %v1895
    %v1905 = vmul.f32 %v1393, %v1868
    %v1906 = vmul.f32 %v1394, %v1872
    %v1907 = vmul.f32 %v1395, %v1876
    %v1908 = vmul.f32 %v1396, %v1880
    %v1909 = vmul.f32 %v1397, %v1884
    %v1910 = vmul.f32 %v1398, %v1888
    %v1911 = vmul.f32 %v1399, %v1892
    %v1912 = vmul.f32 %v1400, %v1896
    %v1913 = vadd.f32 %v1905, %v1906
    %v1914 = vadd.f32 %v1913, %v1907
    %v1915 = vadd.f32 %v1914, %v1908
    %v1916 = vadd.f32 %v1915, %v1909
    %v1917 = vadd.f32 %v1916, %v1910
    %v1918 = vadd.f32 %v1917, %v1911
    %v1919 = vadd.f32 %v1918, %v1912
    %1920 = vst [vmem:[#allocation2 + $0x70] sm:$0xff] %v1919
    %s1921 = sld [smem:[#allocation3 + $0x206]]
    %s1922 = sld [smem:[#allocation3 + $0x207]]
    %s1923 = sld [smem:[#allocation3 + $0x208]]
    %v1924 = vstv %s1921
    %v1925 = vsub.f32 %v70, %v1924
    %v1926 = vstv %s1922
    %v1927 = vsub.f32 %v72, %v1926
    %v1928 = vstv %s1923
    %v1929 = vsub.f32 %v74, %v1928
    %v1930 = vmul.f32 %v1925, %v1925
    %v1931 = vmul.f32 %v1927, %v1927
    %v1932 = vadd.f32 %v1930, %v1931
    %v1933 = vmul.f32 %v1929, %v1929
    %v1934 = vadd.f32 %v1932, %v1933
    %v1935 = vrsqrt.pop %v1934
    %v1936 = vmul.f32 %v1934, %v1935
    %vm1937 = vcmp.eq.f32.partialorder %v1934, inf
    %v1938 = vsel %vm1937, %v1934, %v1936
    %vm1939 = vcmp.eq.f32.partialorder %v1934, 0.0
    %v1940 = vand.u32 %v1934, 2147483648
    %v1941 = vsel %vm1939, %v1940, %v1938
    %v1942 = vmul.f32 %v1941, 1.6666666
    %v1943 = vsub.f32 1.0, %v1942
    %v1944 = vmax.f32 %v1943, 0.0
    %v1946 = vcombine.high %v1944, %v1944
    %v1948 = vunpack.c.l.s4 1966171168
    %v1949 = vunpack.c.0.s8 %v1948
    %v1950 = vlaneseq
    %v1951 = vshrl.u32 %v1950, 7
    %v1952 = vsub.s32 %v1949, %v1951
    %v1953 = vrot.slane %v1944, %v1952
    %v1955 = vunpack.c.l.s4 1966171168
    %v1956 = vunpack.c.0.s8 %v1955
    %v1957 = vlaneseq
    %v1958 = vshrl.u32 %v1957, 7
    %v1959 = vsub.s32 %v1956, %v1958
    %v1960 = vrot.slane %v1946, %v1959
    %v1961 = vcombine.high %v1953, %v1953
    %v1962 = vcombine.high %v1960, %v1960
    %v1964 = vunpack.c.l.s4 1966171168
    %v1965 = vunpack.c.0.s8 %v1964
    %v1966 = vlaneseq
    %v1967 = vshrl.u32 %v1966, 7
    %v1968 = vsub.s32 %v1965, %v1967
    %v1969 = vrot.slane %v1953, %v1968
    %v1971 = vunpack.c.l.s4 1966171168
    %v1972 = vunpack.c.0.s8 %v1971
    %v1973 = vlaneseq
    %v1974 = vshrl.u32 %v1973, 7
    %v1975 = vsub.s32 %v1972, %v1974
    %v1976 = vrot.slane %v1960, %v1975
    %v1978 = vunpack.c.l.s4 1966171168
    %v1979 = vunpack.c.0.s8 %v1978
    %v1980 = vlaneseq
    %v1981 = vshrl.u32 %v1980, 7
    %v1982 = vsub.s32 %v1979, %v1981
    %v1983 = vrot.slane %v1961, %v1982
    %v1985 = vunpack.c.l.s4 1966171168
    %v1986 = vunpack.c.0.s8 %v1985
    %v1987 = vlaneseq
    %v1988 = vshrl.u32 %v1987, 7
    %v1989 = vsub.s32 %v1986, %v1988
    %v1990 = vrot.slane %v1962, %v1989
    %v1991 = vcombine.high %v1969, %v1969
    %v1992 = vcombine.high %v1976, %v1976
    %v1993 = vcombine.high %v1983, %v1983
    %v1994 = vcombine.high %v1990, %v1990
    %v1995 = vlaneseq
    %v1996 = vshrl.u32 %v1995, 7
    %v1997 = vsub.s32 0, %v1996
    %v1998 = vrot.slane %v1969, %v1997
    %v1999 = vlaneseq
    %v2000 = vshrl.u32 %v1999, 7
    %v2001 = vsub.s32 0, %v2000
    %v2002 = vrot.slane %v1983, %v2001
    %v2003 = vlaneseq
    %v2004 = vshrl.u32 %v2003, 7
    %v2005 = vsub.s32 0, %v2004
    %v2006 = vrot.slane %v1991, %v2005
    %v2007 = vlaneseq
    %v2008 = vshrl.u32 %v2007, 7
    %v2009 = vsub.s32 0, %v2008
    %v2010 = vrot.slane %v1993, %v2009
    %v2011 = vlaneseq
    %v2012 = vshrl.u32 %v2011, 7
    %v2013 = vsub.s32 0, %v2012
    %v2014 = vrot.slane %v1976, %v2013
    %v2015 = vlaneseq
    %v2016 = vshrl.u32 %v2015, 7
    %v2017 = vsub.s32 0, %v2016
    %v2018 = vrot.slane %v1990, %v2017
    %v2019 = vlaneseq
    %v2020 = vshrl.u32 %v2019, 7
    %v2021 = vsub.s32 0, %v2020
    %v2022 = vrot.slane %v1992, %v2021
    %v2023 = vlaneseq
    %v2024 = vshrl.u32 %v2023, 7
    %v2025 = vsub.s32 0, %v2024
    %v2026 = vrot.slane %v1994, %v2025
    %v2035 = vmul.f32 %v1393, %v1998
    %v2036 = vmul.f32 %v1394, %v2002
    %v2037 = vmul.f32 %v1395, %v2006
    %v2038 = vmul.f32 %v1396, %v2010
    %v2039 = vmul.f32 %v1397, %v2014
    %v2040 = vmul.f32 %v1398, %v2018
    %v2041 = vmul.f32 %v1399, %v2022
    %v2042 = vmul.f32 %v1400, %v2026
    %v2043 = vadd.f32 %v2035, %v2036
    %v2044 = vadd.f32 %v2043, %v2037
    %v2045 = vadd.f32 %v2044, %v2038
    %v2046 = vadd.f32 %v2045, %v2039
    %v2047 = vadd.f32 %v2046, %v2040
    %v2048 = vadd.f32 %v2047, %v2041
    %v2049 = vadd.f32 %v2048, %v2042
    %2050 = vst [vmem:[#allocation2 + $0x90] sm:$0xff] %v2049
    %s2051 = scalar_lea.vmem [#allocation8], 192
    %v2052 = vld [vmem:[%s2051] sm:$0xff]
    %v2053 = vld [vmem:[%s2051 + $0x8] sm:$0xff]
    %v2054 = vld [vmem:[%s2051 + $0x10] sm:$0xff]
    %v2055 = vld [vmem:[%s2051 + $0x18] sm:$0xff]
    %v2056 = vld [vmem:[%s2051 + $0x20] sm:$0xff]
    %v2057 = vld [vmem:[%s2051 + $0x28] sm:$0xff]
    %v2058 = vld [vmem:[%s2051 + $0x30] sm:$0xff]
    %v2059 = vld [vmem:[%s2051 + $0x38] sm:$0xff]
    %s2060 = sld [smem:[#allocation3 + $0x9]]
    %s2061 = sld [smem:[#allocation3 + $0xa]]
    %s2062 = sld [smem:[#allocation3 + $0xb]]
    %v2063 = vstv %s2060
    %v2064 = vsub.f32 %v70, %v2063
    %v2065 = vstv %s2061
    %v2066 = vsub.f32 %v72, %v2065
    %v2067 = vstv %s2062
    %v2068 = vsub.f32 %v74, %v2067
    %v2069 = vmul.f32 %v2064, %v2064
    %v2070 = vmul.f32 %v2066, %v2066
    %v2071 = vadd.f32 %v2069, %v2070
    %v2072 = vmul.f32 %v2068, %v2068
    %v2073 = vadd.f32 %v2071, %v2072
    %v2074 = vrsqrt.pop %v2073
    %v2075 = vmul.f32 %v2073, %v2074
    %vm2076 = vcmp.eq.f32.partialorder %v2073, inf
    %v2077 = vsel %vm2076, %v2073, %v2075
    %vm2078 = vcmp.eq.f32.partialorder %v2073, 0.0
    %v2079 = vand.u32 %v2073, 2147483648
    %v2080 = vsel %vm2078, %v2079, %v2077
    %v2081 = vmul.f32 %v2080, 1.6666666
    %v2082 = vsub.f32 1.0, %v2081
    %v2083 = vmax.f32 %v2082, 0.0
    %v2085 = vcombine.high %v2083, %v2083
    %v2087 = vunpack.c.l.s4 1966171168
    %v2088 = vunpack.c.0.s8 %v2087
    %v2089 = vlaneseq
    %v2090 = vshrl.u32 %v2089, 7
    %v2091 = vsub.s32 %v2088, %v2090
    %v2092 = vrot.slane %v2083, %v2091
    %v2094 = vunpack.c.l.s4 1966171168
    %v2095 = vunpack.c.0.s8 %v2094
    %v2096 = vlaneseq
    %v2097 = vshrl.u32 %v2096, 7
    %v2098 = vsub.s32 %v2095, %v2097
    %v2099 = vrot.slane %v2085, %v2098
    %v2100 = vcombine.high %v2092, %v2092
    %v2101 = vcombine.high %v2099, %v2099
    %v2103 = vunpack.c.l.s4 1966171168
    %v2104 = vunpack.c.0.s8 %v2103
    %v2105 = vlaneseq
    %v2106 = vshrl.u32 %v2105, 7
    %v2107 = vsub.s32 %v2104, %v2106
    %v2108 = vrot.slane %v2092, %v2107
    %v2110 = vunpack.c.l.s4 1966171168
    %v2111 = vunpack.c.0.s8 %v2110
    %v2112 = vlaneseq
    %v2113 = vshrl.u32 %v2112, 7
    %v2114 = vsub.s32 %v2111, %v2113
    %v2115 = vrot.slane %v2099, %v2114
    %v2117 = vunpack.c.l.s4 1966171168
    %v2118 = vunpack.c.0.s8 %v2117
    %v2119 = vlaneseq
    %v2120 = vshrl.u32 %v2119, 7
    %v2121 = vsub.s32 %v2118, %v2120
    %v2122 = vrot.slane %v2100, %v2121
    %v2124 = vunpack.c.l.s4 1966171168
    %v2125 = vunpack.c.0.s8 %v2124
    %v2126 = vlaneseq
    %v2127 = vshrl.u32 %v2126, 7
    %v2128 = vsub.s32 %v2125, %v2127
    %v2129 = vrot.slane %v2101, %v2128
    %v2130 = vcombine.high %v2108, %v2108
    %v2131 = vcombine.high %v2115, %v2115
    %v2132 = vcombine.high %v2122, %v2122
    %v2133 = vcombine.high %v2129, %v2129
    %v2134 = vlaneseq
    %v2135 = vshrl.u32 %v2134, 7
    %v2136 = vsub.s32 0, %v2135
    %v2137 = vrot.slane %v2108, %v2136
    %v2138 = vlaneseq
    %v2139 = vshrl.u32 %v2138, 7
    %v2140 = vsub.s32 0, %v2139
    %v2141 = vrot.slane %v2122, %v2140
    %v2142 = vlaneseq
    %v2143 = vshrl.u32 %v2142, 7
    %v2144 = vsub.s32 0, %v2143
    %v2145 = vrot.slane %v2130, %v2144
    %v2146 = vlaneseq
    %v2147 = vshrl.u32 %v2146, 7
    %v2148 = vsub.s32 0, %v2147
    %v2149 = vrot.slane %v2132, %v2148
    %v2150 = vlaneseq
    %v2151 = vshrl.u32 %v2150, 7
    %v2152 = vsub.s32 0, %v2151
    %v2153 = vrot.slane %v2115, %v2152
    %v2154 = vlaneseq
    %v2155 = vshrl.u32 %v2154, 7
    %v2156 = vsub.s32 0, %v2155
    %v2157 = vrot.slane %v2129, %v2156
    %v2158 = vlaneseq
    %v2159 = vshrl.u32 %v2158, 7
    %v2160 = vsub.s32 0, %v2159
    %v2161 = vrot.slane %v2131, %v2160
    %v2162 = vlaneseq
    %v2163 = vshrl.u32 %v2162, 7
    %v2164 = vsub.s32 0, %v2163
    %v2165 = vrot.slane %v2133, %v2164
    %v2174 = vmul.f32 %v2052, %v2137
    %v2175 = vmul.f32 %v2053, %v2141
    %v2176 = vmul.f32 %v2054, %v2145
    %v2177 = vmul.f32 %v2055, %v2149
    %v2178 = vmul.f32 %v2056, %v2153
    %v2179 = vmul.f32 %v2057, %v2157
    %v2180 = vmul.f32 %v2058, %v2161
    %v2181 = vmul.f32 %v2059, %v2165
    %v2182 = vadd.f32 %v2174, %v2175
    %v2183 = vadd.f32 %v2182, %v2176
    %v2184 = vadd.f32 %v2183, %v2177
    %v2185 = vadd.f32 %v2184, %v2178
    %v2186 = vadd.f32 %v2185, %v2179
    %v2187 = vadd.f32 %v2186, %v2180
    %v2188 = vadd.f32 %v2187, %v2181
    %2189 = vst [vmem:[#allocation2 + $0x18] sm:$0xff] %v2188
    %s2190 = sld [smem:[#allocation3 + $0x89]]
    %s2191 = sld [smem:[#allocation3 + $0x8a]]
    %s2192 = sld [smem:[#allocation3 + $0x8b]]
    %v2193 = vstv %s2190
    %v2194 = vsub.f32 %v70, %v2193
    %v2195 = vstv %s2191
    %v2196 = vsub.f32 %v72, %v2195
    %v2197 = vstv %s2192
    %v2198 = vsub.f32 %v74, %v2197
    %v2199 = vmul.f32 %v2194, %v2194
    %v2200 = vmul.f32 %v2196, %v2196
    %v2201 = vadd.f32 %v2199, %v2200
    %v2202 = vmul.f32 %v2198, %v2198
    %v2203 = vadd.f32 %v2201, %v2202
    %v2204 = vrsqrt.pop %v2203
    %v2205 = vmul.f32 %v2203, %v2204
    %vm2206 = vcmp.eq.f32.partialorder %v2203, inf
    %v2207 = vsel %vm2206, %v2203, %v2205
    %vm2208 = vcmp.eq.f32.partialorder %v2203, 0.0
    %v2209 = vand.u32 %v2203, 2147483648
    %v2210 = vsel %vm2208, %v2209, %v2207
    %v2211 = vmul.f32 %v2210, 1.6666666
    %v2212 = vsub.f32 1.0, %v2211
    %v2213 = vmax.f32 %v2212, 0.0
    %v2215 = vcombine.high %v2213, %v2213
    %v2217 = vunpack.c.l.s4 1966171168
    %v2218 = vunpack.c.0.s8 %v2217
    %v2219 = vlaneseq
    %v2220 = vshrl.u32 %v2219, 7
    %v2221 = vsub.s32 %v2218, %v2220
    %v2222 = vrot.slane %v2213, %v2221
    %v2224 = vunpack.c.l.s4 1966171168
    %v2225 = vunpack.c.0.s8 %v2224
    %v2226 = vlaneseq
    %v2227 = vshrl.u32 %v2226, 7
    %v2228 = vsub.s32 %v2225, %v2227
    %v2229 = vrot.slane %v2215, %v2228
    %v2230 = vcombine.high %v2222, %v2222
    %v2231 = vcombine.high %v2229, %v2229
    %v2233 = vunpack.c.l.s4 1966171168
    %v2234 = vunpack.c.0.s8 %v2233
    %v2235 = vlaneseq
    %v2236 = vshrl.u32 %v2235, 7
    %v2237 = vsub.s32 %v2234, %v2236
    %v2238 = vrot.slane %v2222, %v2237
    %v2240 = vunpack.c.l.s4 1966171168
    %v2241 = vunpack.c.0.s8 %v2240
    %v2242 = vlaneseq
    %v2243 = vshrl.u32 %v2242, 7
    %v2244 = vsub.s32 %v2241, %v2243
    %v2245 = vrot.slane %v2229, %v2244
    %v2247 = vunpack.c.l.s4 1966171168
    %v2248 = vunpack.c.0.s8 %v2247
    %v2249 = vlaneseq
    %v2250 = vshrl.u32 %v2249, 7
    %v2251 = vsub.s32 %v2248, %v2250
    %v2252 = vrot.slane %v2230, %v2251
    %v2254 = vunpack.c.l.s4 1966171168
    %v2255 = vunpack.c.0.s8 %v2254
    %v2256 = vlaneseq
    %v2257 = vshrl.u32 %v2256, 7
    %v2258 = vsub.s32 %v2255, %v2257
    %v2259 = vrot.slane %v2231, %v2258
    %v2260 = vcombine.high %v2238, %v2238
    %v2261 = vcombine.high %v2245, %v2245
    %v2262 = vcombine.high %v2252, %v2252
    %v2263 = vcombine.high %v2259, %v2259
    %v2264 = vlaneseq
    %v2265 = vshrl.u32 %v2264, 7
    %v2266 = vsub.s32 0, %v2265
    %v2267 = vrot.slane %v2238, %v2266
    %v2268 = vlaneseq
    %v2269 = vshrl.u32 %v2268, 7
    %v2270 = vsub.s32 0, %v2269
    %v2271 = vrot.slane %v2252, %v2270
    %v2272 = vlaneseq
    %v2273 = vshrl.u32 %v2272, 7
    %v2274 = vsub.s32 0, %v2273
    %v2275 = vrot.slane %v2260, %v2274
    %v2276 = vlaneseq
    %v2277 = vshrl.u32 %v2276, 7
    %v2278 = vsub.s32 0, %v2277
    %v2279 = vrot.slane %v2262, %v2278
    %v2280 = vlaneseq
    %v2281 = vshrl.u32 %v2280, 7
    %v2282 = vsub.s32 0, %v2281
    %v2283 = vrot.slane %v2245, %v2282
    %v2284 = vlaneseq
    %v2285 = vshrl.u32 %v2284, 7
    %v2286 = vsub.s32 0, %v2285
    %v2287 = vrot.slane %v2259, %v2286
    %v2288 = vlaneseq
    %v2289 = vshrl.u32 %v2288, 7
    %v2290 = vsub.s32 0, %v2289
    %v2291 = vrot.slane %v2261, %v2290
    %v2292 = vlaneseq
    %v2293 = vshrl.u32 %v2292, 7
    %v2294 = vsub.s32 0, %v2293
    %v2295 = vrot.slane %v2263, %v2294
    %v2304 = vmul.f32 %v2052, %v2267
    %v2305 = vmul.f32 %v2053, %v2271
    %v2306 = vmul.f32 %v2054, %v2275
    %v2307 = vmul.f32 %v2055, %v2279
    %v2308 = vmul.f32 %v2056, %v2283
    %v2309 = vmul.f32 %v2057, %v2287
    %v2310 = vmul.f32 %v2058, %v2291
    %v2311 = vmul.f32 %v2059, %v2295
    %v2312 = vadd.f32 %v2304, %v2305
    %v2313 = vadd.f32 %v2312, %v2306
    %v2314 = vadd.f32 %v2313, %v2307
    %v2315 = vadd.f32 %v2314, %v2308
    %v2316 = vadd.f32 %v2315, %v2309
    %v2317 = vadd.f32 %v2316, %v2310
    %v2318 = vadd.f32 %v2317, %v2311
    %2319 = vst [vmem:[#allocation2 + $0x38] sm:$0xff] %v2318
    %s2320 = sld [smem:[#allocation3 + $0x109]]
    %s2321 = sld [smem:[#allocation3 + $0x10a]]
    %s2322 = sld [smem:[#allocation3 + $0x10b]]
    %v2323 = vstv %s2320
    %v2324 = vsub.f32 %v70, %v2323
    %v2325 = vstv %s2321
    %v2326 = vsub.f32 %v72, %v2325
    %v2327 = vstv %s2322
    %v2328 = vsub.f32 %v74, %v2327
    %v2329 = vmul.f32 %v2324, %v2324
    %v2330 = vmul.f32 %v2326, %v2326
    %v2331 = vadd.f32 %v2329, %v2330
    %v2332 = vmul.f32 %v2328, %v2328
    %v2333 = vadd.f32 %v2331, %v2332
    %v2334 = vrsqrt.pop %v2333
    %v2335 = vmul.f32 %v2333, %v2334
    %vm2336 = vcmp.eq.f32.partialorder %v2333, inf
    %v2337 = vsel %vm2336, %v2333, %v2335
    %vm2338 = vcmp.eq.f32.partialorder %v2333, 0.0
    %v2339 = vand.u32 %v2333, 2147483648
    %v2340 = vsel %vm2338, %v2339, %v2337
    %v2341 = vmul.f32 %v2340, 1.6666666
    %v2342 = vsub.f32 1.0, %v2341
    %v2343 = vmax.f32 %v2342, 0.0
    %v2345 = vcombine.high %v2343, %v2343
    %v2347 = vunpack.c.l.s4 1966171168
    %v2348 = vunpack.c.0.s8 %v2347
    %v2349 = vlaneseq
    %v2350 = vshrl.u32 %v2349, 7
    %v2351 = vsub.s32 %v2348, %v2350
    %v2352 = vrot.slane %v2343, %v2351
    %v2354 = vunpack.c.l.s4 1966171168
    %v2355 = vunpack.c.0.s8 %v2354
    %v2356 = vlaneseq
    %v2357 = vshrl.u32 %v2356, 7
    %v2358 = vsub.s32 %v2355, %v2357
    %v2359 = vrot.slane %v2345, %v2358
    %v2360 = vcombine.high %v2352, %v2352
    %v2361 = vcombine.high %v2359, %v2359
    %v2363 = vunpack.c.l.s4 1966171168
    %v2364 = vunpack.c.0.s8 %v2363
    %v2365 = vlaneseq
    %v2366 = vshrl.u32 %v2365, 7
    %v2367 = vsub.s32 %v2364, %v2366
    %v2368 = vrot.slane %v2352, %v2367
    %v2370 = vunpack.c.l.s4 1966171168
    %v2371 = vunpack.c.0.s8 %v2370
    %v2372 = vlaneseq
    %v2373 = vshrl.u32 %v2372, 7
    %v2374 = vsub.s32 %v2371, %v2373
    %v2375 = vrot.slane %v2359, %v2374
    %v2377 = vunpack.c.l.s4 1966171168
    %v2378 = vunpack.c.0.s8 %v2377
    %v2379 = vlaneseq
    %v2380 = vshrl.u32 %v2379, 7
    %v2381 = vsub.s32 %v2378, %v2380
    %v2382 = vrot.slane %v2360, %v2381
    %v2384 = vunpack.c.l.s4 1966171168
    %v2385 = vunpack.c.0.s8 %v2384
    %v2386 = vlaneseq
    %v2387 = vshrl.u32 %v2386, 7
    %v2388 = vsub.s32 %v2385, %v2387
    %v2389 = vrot.slane %v2361, %v2388
    %v2390 = vcombine.high %v2368, %v2368
    %v2391 = vcombine.high %v2375, %v2375
    %v2392 = vcombine.high %v2382, %v2382
    %v2393 = vcombine.high %v2389, %v2389
    %v2394 = vlaneseq
    %v2395 = vshrl.u32 %v2394, 7
    %v2396 = vsub.s32 0, %v2395
    %v2397 = vrot.slane %v2368, %v2396
    %v2398 = vlaneseq
    %v2399 = vshrl.u32 %v2398, 7
    %v2400 = vsub.s32 0, %v2399
    %v2401 = vrot.slane %v2382, %v2400
    %v2402 = vlaneseq
    %v2403 = vshrl.u32 %v2402, 7
    %v2404 = vsub.s32 0, %v2403
    %v2405 = vrot.slane %v2390, %v2404
    %v2406 = vlaneseq
    %v2407 = vshrl.u32 %v2406, 7
    %v2408 = vsub.s32 0, %v2407
    %v2409 = vrot.slane %v2392, %v2408
    %v2410 = vlaneseq
    %v2411 = vshrl.u32 %v2410, 7
    %v2412 = vsub.s32 0, %v2411
    %v2413 = vrot.slane %v2375, %v2412
    %v2414 = vlaneseq
    %v2415 = vshrl.u32 %v2414, 7
    %v2416 = vsub.s32 0, %v2415
    %v2417 = vrot.slane %v2389, %v2416
    %v2418 = vlaneseq
    %v2419 = vshrl.u32 %v2418, 7
    %v2420 = vsub.s32 0, %v2419
    %v2421 = vrot.slane %v2391, %v2420
    %v2422 = vlaneseq
    %v2423 = vshrl.u32 %v2422, 7
    %v2424 = vsub.s32 0, %v2423
    %v2425 = vrot.slane %v2393, %v2424
    %v2434 = vmul.f32 %v2052, %v2397
    %v2435 = vmul.f32 %v2053, %v2401
    %v2436 = vmul.f32 %v2054, %v2405
    %v2437 = vmul.f32 %v2055, %v2409
    %v2438 = vmul.f32 %v2056, %v2413
    %v2439 = vmul.f32 %v2057, %v2417
    %v2440 = vmul.f32 %v2058, %v2421
    %v2441 = vmul.f32 %v2059, %v2425
    %v2442 = vadd.f32 %v2434, %v2435
    %v2443 = vadd.f32 %v2442, %v2436
    %v2444 = vadd.f32 %v2443, %v2437
    %v2445 = vadd.f32 %v2444, %v2438
    %v2446 = vadd.f32 %v2445, %v2439
    %v2447 = vadd.f32 %v2446, %v2440
    %v2448 = vadd.f32 %v2447, %v2441
    %2449 = vst [vmem:[#allocation2 + $0x58] sm:$0xff] %v2448
    %s2450 = sld [smem:[#allocation3 + $0x189]]
    %s2451 = sld [smem:[#allocation3 + $0x18a]]
    %s2452 = sld [smem:[#allocation3 + $0x18b]]
    %v2453 = vstv %s2450
    %v2454 = vsub.f32 %v70, %v2453
    %v2455 = vstv %s2451
    %v2456 = vsub.f32 %v72, %v2455
    %v2457 = vstv %s2452
    %v2458 = vsub.f32 %v74, %v2457
    %v2459 = vmul.f32 %v2454, %v2454
    %v2460 = vmul.f32 %v2456, %v2456
    %v2461 = vadd.f32 %v2459, %v2460
    %v2462 = vmul.f32 %v2458, %v2458
    %v2463 = vadd.f32 %v2461, %v2462
    %v2464 = vrsqrt.pop %v2463
    %v2465 = vmul.f32 %v2463, %v2464
    %vm2466 = vcmp.eq.f32.partialorder %v2463, inf
    %v2467 = vsel %vm2466, %v2463, %v2465
    %vm2468 = vcmp.eq.f32.partialorder %v2463, 0.0
    %v2469 = vand.u32 %v2463, 2147483648
    %v2470 = vsel %vm2468, %v2469, %v2467
    %v2471 = vmul.f32 %v2470, 1.6666666
    %v2472 = vsub.f32 1.0, %v2471
    %v2473 = vmax.f32 %v2472, 0.0
    %v2475 = vcombine.high %v2473, %v2473
    %v2477 = vunpack.c.l.s4 1966171168
    %v2478 = vunpack.c.0.s8 %v2477
    %v2479 = vlaneseq
    %v2480 = vshrl.u32 %v2479, 7
    %v2481 = vsub.s32 %v2478, %v2480
    %v2482 = vrot.slane %v2473, %v2481
    %v2484 = vunpack.c.l.s4 1966171168
    %v2485 = vunpack.c.0.s8 %v2484
    %v2486 = vlaneseq
    %v2487 = vshrl.u32 %v2486, 7
    %v2488 = vsub.s32 %v2485, %v2487
    %v2489 = vrot.slane %v2475, %v2488
    %v2490 = vcombine.high %v2482, %v2482
    %v2491 = vcombine.high %v2489, %v2489
    %v2493 = vunpack.c.l.s4 1966171168
    %v2494 = vunpack.c.0.s8 %v2493
    %v2495 = vlaneseq
    %v2496 = vshrl.u32 %v2495, 7
    %v2497 = vsub.s32 %v2494, %v2496
    %v2498 = vrot.slane %v2482, %v2497
    %v2500 = vunpack.c.l.s4 1966171168
    %v2501 = vunpack.c.0.s8 %v2500
    %v2502 = vlaneseq
    %v2503 = vshrl.u32 %v2502, 7
    %v2504 = vsub.s32 %v2501, %v2503
    %v2505 = vrot.slane %v2489, %v2504
    %v2507 = vunpack.c.l.s4 1966171168
    %v2508 = vunpack.c.0.s8 %v2507
    %v2509 = vlaneseq
    %v2510 = vshrl.u32 %v2509, 7
    %v2511 = vsub.s32 %v2508, %v2510
    %v2512 = vrot.slane %v2490, %v2511
    %v2514 = vunpack.c.l.s4 1966171168
    %v2515 = vunpack.c.0.s8 %v2514
    %v2516 = vlaneseq
    %v2517 = vshrl.u32 %v2516, 7
    %v2518 = vsub.s32 %v2515, %v2517
    %v2519 = vrot.slane %v2491, %v2518
    %v2520 = vcombine.high %v2498, %v2498
    %v2521 = vcombine.high %v2505, %v2505
    %v2522 = vcombine.high %v2512, %v2512
    %v2523 = vcombine.high %v2519, %v2519
    %v2524 = vlaneseq
    %v2525 = vshrl.u32 %v2524, 7
    %v2526 = vsub.s32 0, %v2525
    %v2527 = vrot.slane %v2498, %v2526
    %v2528 = vlaneseq
    %v2529 = vshrl.u32 %v2528, 7
    %v2530 = vsub.s32 0, %v2529
    %v2531 = vrot.slane %v2512, %v2530
    %v2532 = vlaneseq
    %v2533 = vshrl.u32 %v2532, 7
    %v2534 = vsub.s32 0, %v2533
    %v2535 = vrot.slane %v2520, %v2534
    %v2536 = vlaneseq
    %v2537 = vshrl.u32 %v2536, 7
    %v2538 = vsub.s32 0, %v2537
    %v2539 = vrot.slane %v2522, %v2538
    %v2540 = vlaneseq
    %v2541 = vshrl.u32 %v2540, 7
    %v2542 = vsub.s32 0, %v2541
    %v2543 = vrot.slane %v2505, %v2542
    %v2544 = vlaneseq
    %v2545 = vshrl.u32 %v2544, 7
    %v2546 = vsub.s32 0, %v2545
    %v2547 = vrot.slane %v2519, %v2546
    %v2548 = vlaneseq
    %v2549 = vshrl.u32 %v2548, 7
    %v2550 = vsub.s32 0, %v2549
    %v2551 = vrot.slane %v2521, %v2550
    %v2552 = vlaneseq
    %v2553 = vshrl.u32 %v2552, 7
    %v2554 = vsub.s32 0, %v2553
    %v2555 = vrot.slane %v2523, %v2554
    %v2564 = vmul.f32 %v2052, %v2527
    %v2565 = vmul.f32 %v2053, %v2531
    %v2566 = vmul.f32 %v2054, %v2535
    %v2567 = vmul.f32 %v2055, %v2539
    %v2568 = vmul.f32 %v2056, %v2543
    %v2569 = vmul.f32 %v2057, %v2547
    %v2570 = vmul.f32 %v2058, %v2551
    %v2571 = vmul.f32 %v2059, %v2555
    %v2572 = vadd.f32 %v2564, %v2565
    %v2573 = vadd.f32 %v2572, %v2566
    %v2574 = vadd.f32 %v2573, %v2567
    %v2575 = vadd.f32 %v2574, %v2568
    %v2576 = vadd.f32 %v2575, %v2569
    %v2577 = vadd.f32 %v2576, %v2570
    %v2578 = vadd.f32 %v2577, %v2571
    %2579 = vst [vmem:[#allocation2 + $0x78] sm:$0xff] %v2578
    %s2580 = sld [smem:[#allocation3 + $0x209]]
    %s2581 = sld [smem:[#allocation3 + $0x20a]]
    %s2582 = sld [smem:[#allocation3 + $0x20b]]
    %v2583 = vstv %s2580
    %v2584 = vsub.f32 %v70, %v2583
    %v2585 = vstv %s2581
    %v2586 = vsub.f32 %v72, %v2585
    %v2587 = vstv %s2582
    %v2588 = vsub.f32 %v74, %v2587
    %v2589 = vmul.f32 %v2584, %v2584
    %v2590 = vmul.f32 %v2586, %v2586
    %v2591 = vadd.f32 %v2589, %v2590
    %v2592 = vmul.f32 %v2588, %v2588
    %v2593 = vadd.f32 %v2591, %v2592
    %v2594 = vrsqrt.pop %v2593
    %v2595 = vmul.f32 %v2593, %v2594
    %vm2596 = vcmp.eq.f32.partialorder %v2593, inf
    %v2597 = vsel %vm2596, %v2593, %v2595
    %vm2598 = vcmp.eq.f32.partialorder %v2593, 0.0
    %v2599 = vand.u32 %v2593, 2147483648
    %v2600 = vsel %vm2598, %v2599, %v2597
    %v2601 = vmul.f32 %v2600, 1.6666666
    %v2602 = vsub.f32 1.0, %v2601
    %v2603 = vmax.f32 %v2602, 0.0
    %v2605 = vcombine.high %v2603, %v2603
    %v2607 = vunpack.c.l.s4 1966171168
    %v2608 = vunpack.c.0.s8 %v2607
    %v2609 = vlaneseq
    %v2610 = vshrl.u32 %v2609, 7
    %v2611 = vsub.s32 %v2608, %v2610
    %v2612 = vrot.slane %v2603, %v2611
    %v2614 = vunpack.c.l.s4 1966171168
    %v2615 = vunpack.c.0.s8 %v2614
    %v2616 = vlaneseq
    %v2617 = vshrl.u32 %v2616, 7
    %v2618 = vsub.s32 %v2615, %v2617
    %v2619 = vrot.slane %v2605, %v2618
    %v2620 = vcombine.high %v2612, %v2612
    %v2621 = vcombine.high %v2619, %v2619
    %v2623 = vunpack.c.l.s4 1966171168
    %v2624 = vunpack.c.0.s8 %v2623
    %v2625 = vlaneseq
    %v2626 = vshrl.u32 %v2625, 7
    %v2627 = vsub.s32 %v2624, %v2626
    %v2628 = vrot.slane %v2612, %v2627
    %v2630 = vunpack.c.l.s4 1966171168
    %v2631 = vunpack.c.0.s8 %v2630
    %v2632 = vlaneseq
    %v2633 = vshrl.u32 %v2632, 7
    %v2634 = vsub.s32 %v2631, %v2633
    %v2635 = vrot.slane %v2619, %v2634
    %v2637 = vunpack.c.l.s4 1966171168
    %v2638 = vunpack.c.0.s8 %v2637
    %v2639 = vlaneseq
    %v2640 = vshrl.u32 %v2639, 7
    %v2641 = vsub.s32 %v2638, %v2640
    %v2642 = vrot.slane %v2620, %v2641
    %v2644 = vunpack.c.l.s4 1966171168
    %v2645 = vunpack.c.0.s8 %v2644
    %v2646 = vlaneseq
    %v2647 = vshrl.u32 %v2646, 7
    %v2648 = vsub.s32 %v2645, %v2647
    %v2649 = vrot.slane %v2621, %v2648
    %v2650 = vcombine.high %v2628, %v2628
    %v2651 = vcombine.high %v2635, %v2635
    %v2652 = vcombine.high %v2642, %v2642
    %v2653 = vcombine.high %v2649, %v2649
    %v2654 = vlaneseq
    %v2655 = vshrl.u32 %v2654, 7
    %v2656 = vsub.s32 0, %v2655
    %v2657 = vrot.slane %v2628, %v2656
    %v2658 = vlaneseq
    %v2659 = vshrl.u32 %v2658, 7
    %v2660 = vsub.s32 0, %v2659
    %v2661 = vrot.slane %v2642, %v2660
    %v2662 = vlaneseq
    %v2663 = vshrl.u32 %v2662, 7
    %v2664 = vsub.s32 0, %v2663
    %v2665 = vrot.slane %v2650, %v2664
    %v2666 = vlaneseq
    %v2667 = vshrl.u32 %v2666, 7
    %v2668 = vsub.s32 0, %v2667
    %v2669 = vrot.slane %v2652, %v2668
    %v2670 = vlaneseq
    %v2671 = vshrl.u32 %v2670, 7
    %v2672 = vsub.s32 0, %v2671
    %v2673 = vrot.slane %v2635, %v2672
    %v2674 = vlaneseq
    %v2675 = vshrl.u32 %v2674, 7
    %v2676 = vsub.s32 0, %v2675
    %v2677 = vrot.slane %v2649, %v2676
    %v2678 = vlaneseq
    %v2679 = vshrl.u32 %v2678, 7
    %v2680 = vsub.s32 0, %v2679
    %v2681 = vrot.slane %v2651, %v2680
    %v2682 = vlaneseq
    %v2683 = vshrl.u32 %v2682, 7
    %v2684 = vsub.s32 0, %v2683
    %v2685 = vrot.slane %v2653, %v2684
    %v2694 = vmul.f32 %v2052, %v2657
    %v2695 = vmul.f32 %v2053, %v2661
    %v2696 = vmul.f32 %v2054, %v2665
    %v2697 = vmul.f32 %v2055, %v2669
    %v2698 = vmul.f32 %v2056, %v2673
    %v2699 = vmul.f32 %v2057, %v2677
    %v2700 = vmul.f32 %v2058, %v2681
    %v2701 = vmul.f32 %v2059, %v2685
    %v2702 = vadd.f32 %v2694, %v2695
    %v2703 = vadd.f32 %v2702, %v2696
    %v2704 = vadd.f32 %v2703, %v2697
    %v2705 = vadd.f32 %v2704, %v2698
    %v2706 = vadd.f32 %v2705, %v2699
    %v2707 = vadd.f32 %v2706, %v2700
    %v2708 = vadd.f32 %v2707, %v2701
    %2709 = vst [vmem:[#allocation2 + $0x98] sm:$0xff] %v2708
    %v2710 = vld [vmem:[#allocation10] sm:$0xff]
    %v2711 = vld [vmem:[#allocation10 + $0x8] sm:$0xff]
    %v2712 = vld [vmem:[#allocation2] sm:$0xff]
    %v2713 = vld [vmem:[#allocation2 + $0x8] sm:$0xff]
    %v2714 = vld [vmem:[#allocation2 + $0x10] sm:$0xff]
    %v2715 = vld [vmem:[#allocation2 + $0x18] sm:$0xff]
    %v2716 = vld [vmem:[#allocation2 + $0x20] sm:$0xff]
    %v2717 = vld [vmem:[#allocation2 + $0x28] sm:$0xff]
    %v2718 = vld [vmem:[#allocation2 + $0x30] sm:$0xff]
    %v2719 = vld [vmem:[#allocation2 + $0x38] sm:$0xff]
    %v2720 = vld [vmem:[#allocation2 + $0x40] sm:$0xff]
    %v2721 = vld [vmem:[#allocation2 + $0x48] sm:$0xff]
    %v2722 = vld [vmem:[#allocation2 + $0x50] sm:$0xff]
    %v2723 = vld [vmem:[#allocation2 + $0x58] sm:$0xff]
    %v2724 = vld [vmem:[#allocation2 + $0x60] sm:$0xff]
    %v2725 = vld [vmem:[#allocation2 + $0x68] sm:$0xff]
    %v2726 = vld [vmem:[#allocation2 + $0x70] sm:$0xff]
    %v2727 = vld [vmem:[#allocation2 + $0x78] sm:$0xff]
    %v2728 = vld [vmem:[#allocation2 + $0x80] sm:$0xff]
    %v2729 = vld [vmem:[#allocation2 + $0x88] sm:$0xff]
    %v2730 = vld [vmem:[#allocation2 + $0x90] sm:$0xff]
    %v2731 = vld [vmem:[#allocation2 + $0x98] sm:$0xff]
    %vm2732 = vcmask 326656
    %v2734 = vsel %vm2732, %v2710, 0
    %v2737 = vsel %vm2732, %v2711, 0
    %2739 = vmatprep.subr.mxu0 0.0
    %2740 = vmatpush1.msra.mxu0 0.0
    %2741 = vmatprep.subr.mxu0 0.0
    %2742 = vmatpush1.msra.mxu0 0.0
    %2743 = vmatprep.subr.mxu0 0.0
    %2744 = vmatpush1.msra.mxu0 0.0
    %2745 = vmatprep.subr.mxu0 0.0
    %2746 = vmatpush1.msra.mxu0 0.0
    %2747 = vmatprep.subr.mxu0 0.0
    %2748 = vmatpush1.msra.mxu0 0.0
    %2749 = vmatprep.subr.mxu0 0.0
    %2750 = vmatpush1.msra.mxu0 0.0
    %2751 = vmatprep.subr.mxu0 0.0
    %2752 = vmatpush1.msra.mxu0 0.0
    %2753 = vmatprep.subr.mxu0 0.0
    %2754 = vmatpush1.msra.mxu0 0.0
    %2755 = vmatprep.subr.mxu0 0.0
    %2756 = vmatpush1.msra.mxu0 0.0
    %2757 = vmatprep.subr.mxu0 0.0
    %2758 = vmatpush1.msra.mxu0 0.0
    %2759 = vmatprep.subr.mxu0 0.0
    %2760 = vmatpush1.msra.mxu0 0.0
    %2761 = vmatprep.subr.mxu0 %v2729
    %2762 = vmatpush1.msra.mxu0 %v2728
    %2763 = vmatprep.subr.mxu0 %v2725
    %2764 = vmatpush1.msra.mxu0 %v2724
    %2765 = vmatprep.subr.mxu0 %v2721
    %2766 = vmatpush1.msra.mxu0 %v2720
    %2767 = vmatprep.subr.mxu0 %v2717
    %2768 = vmatpush1.msra.mxu0 %v2716
    %2769 = vmatprep.subr.mxu0 %v2713
    %2770 = vmatpush1.msra.mxu0 %v2712
    %2771 = vmatprep.subr.mxu0 0.0
    %2772 = vmatpush2.msra.mxu0 0.0
    %2773 = vmatprep.subr.mxu0 0.0
    %2774 = vmatpush2.msra.mxu0 0.0
    %2775 = vmatprep.subr.mxu0 0.0
    %2776 = vmatpush2.msra.mxu0 0.0
    %2777 = vmatprep.subr.mxu0 0.0
    %2778 = vmatpush2.msra.mxu0 0.0
    %2779 = vmatprep.subr.mxu0 0.0
    %2780 = vmatpush2.msra.mxu0 0.0
    %2781 = vmatprep.subr.mxu0 0.0
    %2782 = vmatpush2.msra.mxu0 0.0
    %2783 = vmatprep.subr.mxu0 0.0
    %2784 = vmatpush2.msra.mxu0 0.0
    %2785 = vmatprep.subr.mxu0 0.0
    %2786 = vmatpush2.msra.mxu0 0.0
    %2787 = vmatprep.subr.mxu0 0.0
    %2788 = vmatpush2.msra.mxu0 0.0
    %2789 = vmatprep.subr.mxu0 0.0
    %2790 = vmatpush2.msra.mxu0 0.0
    %2791 = vmatprep.subr.mxu0 0.0
    %2792 = vmatpush2.msra.mxu0 0.0
    %2793 = vmatprep.subr.mxu0 0.0
    %2794 = vmatpush2.msra.mxu0 0.0
    %2795 = vmatprep.subr.mxu0 0.0
    %2796 = vmatpush2.msra.mxu0 0.0
    %2797 = vmatprep.subr.mxu0 0.0
    %2798 = vmatpush2.msra.mxu0 0.0
    %2799 = vmatprep.subr.mxu0 0.0
    %2800 = vmatpush2.msra.mxu0 0.0
    %2801 = vmatprep.subr.mxu0 0.0
    %2802 = vmatpush2.msra.mxu0 0.0
    %2803 = vmatprep.mubr.f32.mxu0 0.0
    %2804 = vmatmul.mubr.f32.gmra.mxu0 %v2734
    %v2805 = vpop.f32.mrf.mxu0
    %v2806 = vadd.f32 0.0, %v2805
    %v2807 = vpop.f32.mrf.mxu0
    %v2808 = vadd.f32 0.0, %v2807
    %2809 = vmatprep.mubr.f32.mxu0 0.0
    %2810 = vmatmul.mubr.f32.gmra.mxu0 %v2737
    %v2811 = vpop.f32.mrf.mxu0
    %v2812 = vadd.f32 0.0, %v2811
    %v2813 = vpop.f32.mrf.mxu0
    %v2814 = vadd.f32 0.0, %v2813
    %2815 = vdwg.mxu0
    %2816 = vmatprep.subr.mxu0 0.0
    %2817 = vmatpush1.msra.mxu0 0.0
    %2818 = vmatprep.subr.mxu0 0.0
    %2819 = vmatpush1.msra.mxu0 0.0
    %2820 = vmatprep.subr.mxu0 0.0
    %2821 = vmatpush1.msra.mxu0 0.0
    %2822 = vmatprep.subr.mxu0 0.0
    %2823 = vmatpush1.msra.mxu0 0.0
    %2824 = vmatprep.subr.mxu0 0.0
    %2825 = vmatpush1.msra.mxu0 0.0
    %2826 = vmatprep.subr.mxu0 0.0
    %2827 = vmatpush1.msra.mxu0 0.0
    %2828 = vmatprep.subr.mxu0 0.0
    %2829 = vmatpush1.msra.mxu0 0.0
    %2830 = vmatprep.subr.mxu0 0.0
    %2831 = vmatpush1.msra.mxu0 0.0
    %2832 = vmatprep.subr.mxu0 0.0
    %2833 = vmatpush1.msra.mxu0 0.0
    %2834 = vmatprep.subr.mxu0 0.0
    %2835 = vmatpush1.msra.mxu0 0.0
    %2836 = vmatprep.subr.mxu0 0.0
    %2837 = vmatpush1.msra.mxu0 0.0
    %2838 = vmatprep.subr.mxu0 %v2731
    %2839 = vmatpush1.msra.mxu0 %v2730
    %2840 = vmatprep.subr.mxu0 %v2727
    %2841 = vmatpush1.msra.mxu0 %v2726
    %2842 = vmatprep.subr.mxu0 %v2723
    %2843 = vmatpush1.msra.mxu0 %v2722
    %2844 = vmatprep.subr.mxu0 %v2719
    %2845 = vmatpush1.msra.mxu0 %v2718
    %2846 = vmatprep.subr.mxu0 %v2715
    %2847 = vmatpush1.msra.mxu0 %v2714
    %2848 = vmatprep.subr.mxu0 0.0
    %2849 = vmatpush2.msra.mxu0 0.0
    %2850 = vmatprep.subr.mxu0 0.0
    %2851 = vmatpush2.msra.mxu0 0.0
    %2852 = vmatprep.subr.mxu0 0.0
    %2853 = vmatpush2.msra.mxu0 0.0
    %2854 = vmatprep.subr.mxu0 0.0
    %2855 = vmatpush2.msra.mxu0 0.0
    %2856 = vmatprep.subr.mxu0 0.0
    %2857 = vmatpush2.msra.mxu0 0.0
    %2858 = vmatprep.subr.mxu0 0.0
    %2859 = vmatpush2.msra.mxu0 0.0
    %2860 = vmatprep.subr.mxu0 0.0
    %2861 = vmatpush2.msra.mxu0 0.0
    %2862 = vmatprep.subr.mxu0 0.0
    %2863 = vmatpush2.msra.mxu0 0.0
    %2864 = vmatprep.subr.mxu0 0.0
    %2865 = vmatpush2.msra.mxu0 0.0
    %2866 = vmatprep.subr.mxu0 0.0
    %2867 = vmatpush2.msra.mxu0 0.0
    %2868 = vmatprep.subr.mxu0 0.0
    %2869 = vmatpush2.msra.mxu0 0.0
    %2870 = vmatprep.subr.mxu0 0.0
    %2871 = vmatpush2.msra.mxu0 0.0
    %2872 = vmatprep.subr.mxu0 0.0
    %2873 = vmatpush2.msra.mxu0 0.0
    %2874 = vmatprep.subr.mxu0 0.0
    %2875 = vmatpush2.msra.mxu0 0.0
    %2876 = vmatprep.subr.mxu0 0.0
    %2877 = vmatpush2.msra.mxu0 0.0
    %2878 = vmatprep.subr.mxu0 0.0
    %2879 = vmatpush2.msra.mxu0 0.0
    %2880 = vmatprep.mubr.f32.mxu0 0.0
    %2881 = vmatmul.mubr.f32.gmra.mxu0 %v2734
    %v2882 = vpop.f32.mrf.mxu0
    %v2883 = vadd.f32 0.0, %v2882
    %v2884 = vpop.f32.mrf.mxu0
    %v2885 = vadd.f32 0.0, %v2884
    %2886 = vmatprep.mubr.f32.mxu0 0.0
    %2887 = vmatmul.mubr.f32.gmra.mxu0 %v2737
    %v2888 = vpop.f32.mrf.mxu0
    %v2889 = vadd.f32 0.0, %v2888
    %v2890 = vpop.f32.mrf.mxu0
    %v2891 = vadd.f32 0.0, %v2890
    %2892 = vdwg.mxu0
    %2893 = vst [vmem:[#allocation11] sm:$0xff] %v2806
    %2894 = vst [vmem:[#allocation11 + $0x8] sm:$0xff] %v2808
    %2895 = vst [vmem:[#allocation11 + $0x10] sm:$0xff] %v2883
    %2896 = vst [vmem:[#allocation11 + $0x18] sm:$0xff] %v2885
    %2897 = vst [vmem:[#allocation11 + $0x20] sm:$0xff] %v2812
    %2898 = vst [vmem:[#allocation11 + $0x28] sm:$0xff] %v2814
    %2899 = vst [vmem:[#allocation11 + $0x30] sm:$0xff] %v2889
    %2900 = vst [vmem:[#allocation11 + $0x38] sm:$0xff] %v2891
    // Predicated region
    $region34: #{tpu_custom_call.1} parent=1 // pred_check
      _
    $region35: #{tpu_custom_call.1} parent=1 // pred_check_branch
      %2902 = sbr.rel (0) target = $region37
    $region36: #{tpu_custom_call.1} parent=1 // pred_region
      %s2904 = ssub.s32 1024, 1024
      %2905 = vsyncadd [#allocation5], %s2904
      %s2906 = sshll.u32 [#allocation11], 4
      %s2907 = int_to_ptr.vmem [resolvable:$true] %s2906
      %2912 = dma.vmem_to_hbm [thread:$0]  %s2907, 1024, %s4, [#allocation5], 512, 512, 32
    $region37: #{tpu_custom_call.1} parent=1 // pred_fallthru
      _
    // Predicated region
    $region38: #{tpu_custom_call.1} parent=1 // pred_check
      _
    $region39: #{tpu_custom_call.1} parent=1 // pred_check_branch
      %2914 = sbr.rel (0) target = $region41
    $region40: #{tpu_custom_call.1} parent=1 // pred_region
      %2915 = dma.done [#allocation5], 1024
    $region41: #{tpu_custom_call.1} parent=1 // pred_fallthru
      _
    %2916 = vsyncpa [#allocation4], 1
    %2917 = vsyncpa [#allocation9], 1
    %2918 = vsyncpa [#allocation5], 1
    %2919 = vsyncpa [#allocation6], 1

</llo_original>
